<compile_context>
chip_gen: v7x
topology: tpu7x:2x2x1
jax: 0.10.0
libtpu: 0.0.40
codegen_flags: <defaults>
</compile_context>

<pallas_src>
import functools
import math

import jax
import jax.numpy as jnp
from jax import lax
from jax.experimental import pallas as pl
from jax.experimental.pallas import tpu as pltpu


def _layer_norm(x, gamma, beta, eps=1e-5):
    mu = jnp.mean(x, axis=-1, keepdims=True)
    xc = x - mu
    var = jnp.mean(xc * xc, axis=-1, keepdims=True)
    inv = lax.rsqrt(var + eps)          # EUP rsqrt
    return xc * inv * gamma + beta


def transformer_encoder_kernel(
    x_ref,       # [BB, S, D]   batch block (grid axis 0 = batch blocks)
    mask_ref,    # [BB, 1, S]   1.0 = valid node, 0.0 = padding
    pos_ref,     # [S, D]       position embeddings, pre-sliced to seq_len
    wqkv_ref,    # [L, D, 3D]   fused in_proj (x @ W layout, q-scale folded in)
    bqkv_ref,    # [L, 1, 3D]
    wo_ref,      # [L, D, D]    attention out_proj
    bo_ref,      # [L, 1, D]
    ln1g_ref,    # [L, 1, D]
    ln1b_ref,    # [L, 1, D]
    w1_ref,      # [L, D, FF]
    b1_ref,      # [L, 1, FF]
    w2_ref,      # [L, FF, D]
    b2_ref,      # [L, 1, D]
    ln2g_ref,    # [L, 1, D]
    ln2b_ref,    # [L, 1, D]
    lnfg_ref,    # [1, D]       final LayerNorm
    lnfb_ref,    # [1, D]
    wout_ref,    # [D, D]       output_layer
    bout_ref,    # [1, D]
    o_ref,       # [BB, S, D]
    *, num_heads,
):
    f32 = jnp.float32
    BB, S, D = x_ref.shape
    L = wo_ref.shape[0]
    H = num_heads
    Dh = D // H
    R = BB * S                                                    # fused row count

    # add positional embedding, then fold (batch, seq) into one row axis so
    # every matmul below runs on an [R, *] slab (lane layout unchanged).
    x = x_ref[...].astype(f32) + pos_ref[...]                     # [BB, S, D]
    x = x.reshape(R, D)

    # key-padding bias, hoisted out of the layer/head loops.
    key_bias = jnp.where(mask_ref[...] > 0, f32(0.0), f32(-1e30))  # [BB, 1, S]

    for l in range(L):
        # ---------- self-attention block (post-LN: x = LN1(x + SA(x))) ----------
        # fused QKV projection: single lane-dense [R, D] @ [D, 3D] matmul
        # (q-scale 1/sqrt(Dh) already folded into the q-columns of wqkv/bqkv).
        qkv = jnp.dot(x, wqkv_ref[l], preferred_element_type=f32) + bqkv_ref[l]

        sa_parts = []
        for b in range(BB):                    # per-sequence attention
            rows = slice(b * S, (b + 1) * S)   # sublane-aligned (S multiple of 8)
            bias_b = key_bias[b]               # [1, S] -> masks the key axis
            heads = []
            for h in range(H):
                qh = qkv[rows, h * Dh:(h + 1) * Dh]
                kh = qkv[rows, D + h * Dh:D + (h + 1) * Dh]
                vh = qkv[rows, 2 * D + h * Dh:2 * D + (h + 1) * Dh]
                logits = jnp.dot(qh, kh.T, preferred_element_type=f32) + bias_b
                m = jnp.max(logits, axis=-1, keepdims=True)
                p = jnp.exp(logits - m)
                s = jnp.sum(p, axis=-1, keepdims=True)
                attn = p * pl.reciprocal(s, approx=True)           # EUP reciprocal
                heads.append(jnp.dot(attn, vh, preferred_element_type=f32))
            sa_parts.append(jnp.concatenate(heads, axis=-1))       # [S, D]
        sa = jnp.concatenate(sa_parts, axis=0)                     # [R, D]

        sa = jnp.dot(sa, wo_ref[l], preferred_element_type=f32) + bo_ref[l]
        x = _layer_norm(x + sa, ln1g_ref[l], ln1b_ref[l])

        # ---------- feed-forward block (post-LN: x = LN2(x + FF(x))) ----------
        hdn = jnp.dot(x, w1_ref[l], preferred_element_type=f32) + b1_ref[l]
        hdn = jnp.maximum(hdn, f32(0.0))                           # ReLU
        ff = jnp.dot(hdn, w2_ref[l], preferred_element_type=f32) + b2_ref[l]
        x = _layer_norm(x + ff, ln2g_ref[l], ln2b_ref[l])
        # Dropout layers are identity in eval mode.

    # final LayerNorm + output projection
    x = _layer_norm(x, lnfg_ref[...], lnfb_ref[...])
    y = jnp.dot(x, wout_ref[...], preferred_element_type=f32) + bout_ref[...]
    o_ref[...] = y.reshape(BB, S, D).astype(o_ref.dtype)


def transformer_encoder_forward(x, valid_mask, params, *, num_heads):
    """x: [B, S, D] f32; valid_mask: [B, 1, S] f32 (1=valid node, 0=padding)."""
    B, S, D = x.shape
    Dh = D // num_heads

    # Process several sequences per grid step (bigger matmul M-dim, fewer
    # grid-step overheads).  Pad batch so it divides evenly; padded rows are
    # fully masked and sliced off below.
    BB = min(B, 8)
    pad = (-B) % BB
    if pad:
        x = jnp.concatenate([x, jnp.zeros((pad, S, D), x.dtype)], axis=0)
        valid_mask = jnp.concatenate(
            [valid_mask, jnp.zeros((pad, 1, S), valid_mask.dtype)], axis=0)
    Bp = B + pad
    nblk = Bp // BB

    # fold the attention q-scale into the q-columns of the fused QKV weight/bias
    scale = jnp.float32(1.0 / math.sqrt(Dh))
    wqkv = params["wqkv"].at[:, :, :D].multiply(scale)
    bqkv = params["bqkv"].at[:, :, :D].multiply(scale)

    weights = (
        params["pos"], wqkv, bqkv, params["wo"], params["bo"],
        params["ln1g"], params["ln1b"], params["w1"], params["b1"],
        params["w2"], params["b2"], params["ln2g"], params["ln2b"],
        params["lnfg"], params["lnfb"], params["wout"], params["bout"],
    )

    def const_spec(a):
        nd = a.ndim
        # whole array resident in VMEM; block index constant across the grid.
        return pl.BlockSpec(a.shape, lambda b, _nd=nd: (0,) * _nd)

    in_specs = [
        pl.BlockSpec((BB, S, D), lambda b: (b, 0, 0)),   # batch block of sequences
        pl.BlockSpec((BB, 1, S), lambda b: (b, 0, 0)),   # key-padding mask
    ] + [const_spec(w) for w in weights]

    kernel = functools.partial(transformer_encoder_kernel, num_heads=num_heads)

    out = pl.pallas_call(
        kernel,
        out_shape=jax.ShapeDtypeStruct((Bp, S, D), jnp.float32),
        grid=(nblk,),
        in_specs=in_specs,
        out_specs=pl.BlockSpec((BB, S, D), lambda b: (b, 0, 0)),
        compiler_params=pltpu.CompilerParams(
            dimension_semantics=("parallel",),   # batch blocks independent (v7x 2-TC)
        ),
    )(x, valid_mask, *weights)
    return out[:B]


def _reference_forward(x, node_mask, pos_emb, in_proj_w, in_proj_b, out_proj_w,
                       out_proj_b, lin1_w, lin1_b, lin2_w, lin2_b,
                       ln1_g, ln1_b, ln2_g, ln2_b, lnf_g, lnf_b, wout, bout,
                       num_heads):
    """Pure-JAX reference mirroring the PyTorch module (eval mode)."""
    B, S, D = x.shape
    H = num_heads
    Dh = D // H

    def ln(v, g, b):
        mu = v.mean(-1, keepdims=True)
        var = ((v - mu) ** 2).mean(-1, keepdims=True)
        return (v - mu) / jnp.sqrt(var + 1e-5) * g + b

    h = x + pos_emb[:, :S, :]
    key_pad = ~node_mask                               # True = ignore
    L = in_proj_w.shape[0]
    for l in range(L):
        qkv = h @ in_proj_w[l].T + in_proj_b[l]
        q, k, v = jnp.split(qkv, 3, axis=-1)
        q = q.reshape(B, S, H, Dh).transpose(0, 2, 1, 3)
        k = k.reshape(B, S, H, Dh).transpose(0, 2, 1, 3)
        v = v.reshape(B, S, H, Dh).transpose(0, 2, 1, 3)
        logits = (q @ jnp.swapaxes(k, -1, -2)) / math.sqrt(Dh)
        logits = jnp.where(key_pad[:, None, None, :], -1e30, logits)
        attn = jax.nn.softmax(logits, axis=-1)
        o = (attn @ v).transpose(0, 2, 1, 3).reshape(B, S, D)
        o = o @ out_proj_w[l].T + out_proj_b[l]
        h = ln(h + o, ln1_g[l], ln1_b[l])
        f = jax.nn.relu(h @ lin1_w[l].T + lin1_b[l])
        f = f @ lin2_w[l].T + lin2_b[l]
        h = ln(h + f, ln2_g[l], ln2_b[l])
    h = ln(h, lnf_g, lnf_b)
    return h @ wout.T + bout


if __name__ == "__main__":
    key = jax.random.PRNGKey(0)
    B, S = 2, 16                       # batch, num_nodes (<= max_nodes)
    D, H, L = 64, 4, 2                 # hidden_dim, num_heads, num_layers
    FF = 4 * D                         # dim_feedforward
    max_nodes = 100

    ks = jax.random.split(key, 24)

    def nrm(k, shape, scale=0.1):
        return scale * jax.random.normal(k, shape, dtype=jnp.float32)

    # --- synthetic parameters in PyTorch layout (per layer, stacked over L) ---
    in_proj_w = nrm(ks[0], (L, 3 * D, D))      # MultiheadAttention.in_proj_weight
    in_proj_b = nrm(ks[1], (L, 3 * D))
    out_proj_w = nrm(ks[2], (L, D, D))
    out_proj_b = nrm(ks[3], (L, D))
    lin1_w = nrm(ks[4], (L, FF, D))
    lin1_b = nrm(ks[5], (L, FF))
    lin2_w = nrm(ks[6], (L, D, FF))
    lin2_b = nrm(ks[7], (L, D))
    ln1_g = 1.0 + nrm(ks[8], (L, D))
    ln1_b = nrm(ks[9], (L, D))
    ln2_g = 1.0 + nrm(ks[10], (L, D))
    ln2_b = nrm(ks[11], (L, D))
    lnf_g = 1.0 + nrm(ks[12], (D,))
    lnf_b = nrm(ks[13], (D,))
    wout_pt = nrm(ks[14], (D, D))              # output_layer.weight [D, D]
    bout_pt = nrm(ks[15], (D,))
    # position_embeddings is a learned Parameter (zeros at init); random here
    # so the test exercises the add.
    pos_emb = nrm(ks[16], (1, max_nodes, D))

    # --- inputs ---
    x = jax.random.normal(ks[17], (B, S, D), dtype=jnp.float32)
    # node_mask: batch 0 fully valid; batch 1 has 4 padded nodes at the end.
    node_mask = jnp.ones((B, S), dtype=bool).at[1, S - 4:].set(False)
    valid = node_mask.astype(jnp.float32)[:, None, :]          # [B, 1, S]

    # --- fold PyTorch-layout weights into x @ W layout (plain-JAX glue) ---
    params = dict(
        pos=pos_emb[0, :S, :],                                 # [S, D]
        wqkv=jnp.transpose(in_proj_w, (0, 2, 1)),              # [L, D, 3D]
        bqkv=in_proj_b[:, None, :],                            # [L, 1, 3D]
        wo=jnp.transpose(out_proj_w, (0, 2, 1)),               # [L, D, D]
        bo=out_proj_b[:, None, :],
        ln1g=ln1_g[:, None, :], ln1b=ln1_b[:, None, :],
        w1=jnp.transpose(lin1_w, (0, 2, 1)),                   # [L, D, FF]
        b1=lin1_b[:, None, :],
        w2=jnp.transpose(lin2_w, (0, 2, 1)),                   # [L, FF, D]
        b2=lin2_b[:, None, :],
        ln2g=ln2_g[:, None, :], ln2b=ln2_b[:, None, :],
        lnfg=lnf_g[None, :], lnfb=lnf_b[None, :],
        wout=wout_pt.T, bout=bout_pt[None, :],
    )

    out = transformer_encoder_forward(x, valid, params, num_heads=H)
    out = jax.block_until_ready(out)
    assert out.shape == (B, S, D)
    assert bool(jnp.all(jnp.isfinite(out)))

    # correctness check against a pure-JAX reference (generous tol covers the
    # approximate EUP reciprocal used for the softmax denominator)
    ref = _reference_forward(
        x, node_mask, pos_emb, in_proj_w, in_proj_b, out_proj_w, out_proj_b,
        lin1_w, lin1_b, lin2_w, lin2_b, ln1_g, ln1_b, ln2_g, ln2_b,
        lnf_g, lnf_b, wout_pt, bout_pt, num_heads=H)
    assert bool(jnp.allclose(out, ref, atol=5e-2, rtol=5e-2))

    print("KERNEL_OK")
</pallas_src>

<mosaic_0001>
module attributes {stable_mosaic.version = 11 : i64} {
  func.func @transformer_encoder_kernel(%arg0: i32, %arg1: memref<2x16x64xf32, #tpu.memory_space<vmem>>, %arg2: memref<2x1x16xf32, #tpu.memory_space<vmem>>, %arg3: memref<16x64xf32, #tpu.memory_space<vmem>>, %arg4: memref<2x64x192xf32, #tpu.memory_space<vmem>>, %arg5: memref<2x1x192xf32, #tpu.memory_space<vmem>>, %arg6: memref<2x64x64xf32, #tpu.memory_space<vmem>>, %arg7: memref<2x1x64xf32, #tpu.memory_space<vmem>>, %arg8: memref<2x1x64xf32, #tpu.memory_space<vmem>>, %arg9: memref<2x1x64xf32, #tpu.memory_space<vmem>>, %arg10: memref<2x64x256xf32, #tpu.memory_space<vmem>>, %arg11: memref<2x1x256xf32, #tpu.memory_space<vmem>>, %arg12: memref<2x256x64xf32, #tpu.memory_space<vmem>>, %arg13: memref<2x1x64xf32, #tpu.memory_space<vmem>>, %arg14: memref<2x1x64xf32, #tpu.memory_space<vmem>>, %arg15: memref<2x1x64xf32, #tpu.memory_space<vmem>>, %arg16: memref<1x64xf32, #tpu.memory_space<vmem>>, %arg17: memref<1x64xf32, #tpu.memory_space<vmem>>, %arg18: memref<64x64xf32, #tpu.memory_space<vmem>>, %arg19: memref<1x64xf32, #tpu.memory_space<vmem>>, %arg20: memref<2x16x64xf32, #tpu.memory_space<vmem>>) attributes {dimension_semantics = [#tpu.dimension_semantics<parallel>], iteration_bounds = array<i64: 1>, scalar_prefetch = 0 : i64, scratch_operands = 0 : i64, tpu.core_type = #tpu.core_type<tc>, window_params = [{transform_indices = @transform_0, window_bounds = array<i64: 2, 16, 64>}, {transform_indices = @transform_1, window_bounds = array<i64: 2, 1, 16>}, {pipeline_mode = #tpu.pipeline_mode<synchronous>, transform_indices = @transform_2, window_bounds = array<i64: 16, 64>}, {pipeline_mode = #tpu.pipeline_mode<synchronous>, transform_indices = @transform_3, window_bounds = array<i64: 2, 64, 192>}, {pipeline_mode = #tpu.pipeline_mode<synchronous>, transform_indices = @transform_4, window_bounds = array<i64: 2, 1, 192>}, {pipeline_mode = #tpu.pipeline_mode<synchronous>, transform_indices = @transform_5, window_bounds = array<i64: 2, 64, 64>}, {pipeline_mode = #tpu.pipeline_mode<synchronous>, transform_indices = @transform_6, window_bounds = array<i64: 2, 1, 64>}, {pipeline_mode = #tpu.pipeline_mode<synchronous>, transform_indices = @transform_7, window_bounds = array<i64: 2, 1, 64>}, {pipeline_mode = #tpu.pipeline_mode<synchronous>, transform_indices = @transform_8, window_bounds = array<i64: 2, 1, 64>}, {pipeline_mode = #tpu.pipeline_mode<synchronous>, transform_indices = @transform_9, window_bounds = array<i64: 2, 64, 256>}, {pipeline_mode = #tpu.pipeline_mode<synchronous>, transform_indices = @transform_10, window_bounds = array<i64: 2, 1, 256>}, {pipeline_mode = #tpu.pipeline_mode<synchronous>, transform_indices = @transform_11, window_bounds = array<i64: 2, 256, 64>}, {pipeline_mode = #tpu.pipeline_mode<synchronous>, transform_indices = @transform_12, window_bounds = array<i64: 2, 1, 64>}, {pipeline_mode = #tpu.pipeline_mode<synchronous>, transform_indices = @transform_13, window_bounds = array<i64: 2, 1, 64>}, {pipeline_mode = #tpu.pipeline_mode<synchronous>, transform_indices = @transform_14, window_bounds = array<i64: 2, 1, 64>}, {pipeline_mode = #tpu.pipeline_mode<synchronous>, transform_indices = @transform_15, window_bounds = array<i64: 1, 64>}, {pipeline_mode = #tpu.pipeline_mode<synchronous>, transform_indices = @transform_16, window_bounds = array<i64: 1, 64>}, {pipeline_mode = #tpu.pipeline_mode<synchronous>, transform_indices = @transform_17, window_bounds = array<i64: 64, 64>}, {pipeline_mode = #tpu.pipeline_mode<synchronous>, transform_indices = @transform_18, window_bounds = array<i64: 1, 64>}, {transform_indices = @transform_19, window_bounds = array<i64: 2, 16, 64>}]} {
    %c0 = arith.constant 0 : index
    %c0_0 = arith.constant 0 : index
    %c0_1 = arith.constant 0 : index
    %0 = vector.load %arg1[%c0, %c0_0, %c0_1] : memref<2x16x64xf32, #tpu.memory_space<vmem>>, vector<2x16x64xf32>
    %c0_2 = arith.constant 0 : index
    %c0_3 = arith.constant 0 : index
    %1 = vector.load %arg3[%c0_2, %c0_3] : memref<16x64xf32, #tpu.memory_space<vmem>>, vector<16x64xf32>
    %2 = vector.shape_cast %1 : vector<16x64xf32> to vector<1x16x64xf32>
    %3 = vector.broadcast %2 : vector<1x16x64xf32> to vector<2x16x64xf32>
    %4 = arith.addf %0, %3 : vector<2x16x64xf32>
    %5 = vector.shape_cast %4 : vector<2x16x64xf32> to vector<32x64xf32>
    %c0_4 = arith.constant 0 : index
    %c0_5 = arith.constant 0 : index
    %c0_6 = arith.constant 0 : index
    %6 = vector.load %arg2[%c0_4, %c0_5, %c0_6] : memref<2x1x16xf32, #tpu.memory_space<vmem>>, vector<2x1x16xf32>
    %cst = arith.constant 0.000000e+00 : f32
    %7 = vector.broadcast %cst : f32 to vector<2x1x16xf32>
    %8 = arith.cmpf ogt, %6, %7 : vector<2x1x16xf32>
    %cst_7 = arith.constant 0.000000e+00 : f32
    %cst_8 = arith.constant -1.000000e+30 : f32
    %9 = vector.broadcast %cst_7 : f32 to vector<2x1x16xf32>
    %10 = vector.broadcast %cst_8 : f32 to vector<2x1x16xf32>
    %11 = arith.select %8, %9, %10 : vector<2x1x16xi1>, vector<2x1x16xf32>
    %c0_9 = arith.constant 0 : index
    %c0_10 = arith.constant 0 : index
    %c0_11 = arith.constant 0 : index
    %12 = vector.load %arg4[%c0_9, %c0_10, %c0_11] : memref<2x64x192xf32, #tpu.memory_space<vmem>>, vector<1x64x192xf32>
    %13 = vector.shape_cast %12 : vector<1x64x192xf32> to vector<64x192xf32>
    %cst_12 = arith.constant dense<0.000000e+00> : vector<32x192xf32>
    %14 = tpu.matmul %5, %13, %cst_12 {dimension_numbers = #tpu.dot_dimension_numbers<[1], [0], [0], [1], [0, 0, 1, 1], [], []>} : vector<32x64xf32>, vector<64x192xf32>, vector<32x192xf32> -> vector<32x192xf32>
    %c0_13 = arith.constant 0 : index
    %c0_14 = arith.constant 0 : index
    %c0_15 = arith.constant 0 : index
    %15 = vector.load %arg5[%c0_13, %c0_14, %c0_15] : memref<2x1x192xf32, #tpu.memory_space<vmem>>, vector<1x1x192xf32>
    %16 = vector.shape_cast %15 : vector<1x1x192xf32> to vector<1x192xf32>
    %17 = vector.broadcast %16 : vector<1x192xf32> to vector<32x192xf32>
    %18 = arith.addf %14, %17 : vector<32x192xf32>
    %19 = vector.extract_strided_slice %11 {offsets = [0, 0, 0], sizes = [1, 1, 16], strides = [1, 1, 1]} : vector<2x1x16xf32> to vector<1x1x16xf32>
    %20 = vector.shape_cast %19 : vector<1x1x16xf32> to vector<1x16xf32>
    %21 = vector.extract_strided_slice %18 {offsets = [0, 0], sizes = [16, 16], strides = [1, 1]} : vector<32x192xf32> to vector<16x16xf32>
    %22 = vector.extract_strided_slice %18 {offsets = [0, 64], sizes = [16, 16], strides = [1, 1]} : vector<32x192xf32> to vector<16x16xf32>
    %23 = vector.extract_strided_slice %18 {offsets = [0, 128], sizes = [16, 16], strides = [1, 1]} : vector<32x192xf32> to vector<16x16xf32>
    %24 = tpu.transpose %22, [1, 0] : vector<16x16xf32> -> vector<16x16xf32>
    %cst_16 = arith.constant dense<0.000000e+00> : vector<16x16xf32>
    %25 = tpu.matmul %21, %24, %cst_16 {dimension_numbers = #tpu.dot_dimension_numbers<[1], [0], [0], [1], [0, 0, 1, 1], [], []>} : vector<16x16xf32>, vector<16x16xf32>, vector<16x16xf32> -> vector<16x16xf32>
    %26 = vector.broadcast %20 : vector<1x16xf32> to vector<16x16xf32>
    %27 = arith.addf %25, %26 : vector<16x16xf32>
    %cst_17 = arith.constant dense<0xFF800000> : vector<16xf32>
    %28 = vector.multi_reduction <maximumf>, %27, %cst_17 [1] : vector<16x16xf32> to vector<16xf32>
    %29 = vector.shape_cast %28 : vector<16xf32> to vector<16x1xf32>
    %30 = vector.broadcast %29 : vector<16x1xf32> to vector<16x16xf32>
    %31 = arith.subf %27, %30 : vector<16x16xf32>
    %32 = math.exp %31 : vector<16x16xf32>
    %cst_18 = arith.constant dense<0.000000e+00> : vector<16xf32>
    %33 = vector.multi_reduction <add>, %32, %cst_18 [1] : vector<16x16xf32> to vector<16xf32>
    %34 = vector.shape_cast %33 : vector<16xf32> to vector<16x1xf32>
    %35 = tpu.reciprocal %34 {approx = true} : vector<16x1xf32> -> vector<16x1xf32>
    %36 = vector.broadcast %35 : vector<16x1xf32> to vector<16x16xf32>
    %37 = arith.mulf %32, %36 : vector<16x16xf32>
    %cst_19 = arith.constant dense<0.000000e+00> : vector<16x16xf32>
    %38 = tpu.matmul %37, %23, %cst_19 {dimension_numbers = #tpu.dot_dimension_numbers<[1], [0], [0], [1], [0, 0, 1, 1], [], []>} : vector<16x16xf32>, vector<16x16xf32>, vector<16x16xf32> -> vector<16x16xf32>
    %39 = vector.extract_strided_slice %18 {offsets = [0, 16], sizes = [16, 16], strides = [1, 1]} : vector<32x192xf32> to vector<16x16xf32>
    %40 = vector.extract_strided_slice %18 {offsets = [0, 80], sizes = [16, 16], strides = [1, 1]} : vector<32x192xf32> to vector<16x16xf32>
    %41 = vector.extract_strided_slice %18 {offsets = [0, 144], sizes = [16, 16], strides = [1, 1]} : vector<32x192xf32> to vector<16x16xf32>
    %42 = tpu.transpose %40, [1, 0] : vector<16x16xf32> -> vector<16x16xf32>
    %cst_20 = arith.constant dense<0.000000e+00> : vector<16x16xf32>
    %43 = tpu.matmul %39, %42, %cst_20 {dimension_numbers = #tpu.dot_dimension_numbers<[1], [0], [0], [1], [0, 0, 1, 1], [], []>} : vector<16x16xf32>, vector<16x16xf32>, vector<16x16xf32> -> vector<16x16xf32>
    %44 = vector.broadcast %20 : vector<1x16xf32> to vector<16x16xf32>
    %45 = arith.addf %43, %44 : vector<16x16xf32>
    %cst_21 = arith.constant dense<0xFF800000> : vector<16xf32>
    %46 = vector.multi_reduction <maximumf>, %45, %cst_21 [1] : vector<16x16xf32> to vector<16xf32>
    %47 = vector.shape_cast %46 : vector<16xf32> to vector<16x1xf32>
    %48 = vector.broadcast %47 : vector<16x1xf32> to vector<16x16xf32>
    %49 = arith.subf %45, %48 : vector<16x16xf32>
    %50 = math.exp %49 : vector<16x16xf32>
    %cst_22 = arith.constant dense<0.000000e+00> : vector<16xf32>
    %51 = vector.multi_reduction <add>, %50, %cst_22 [1] : vector<16x16xf32> to vector<16xf32>
    %52 = vector.shape_cast %51 : vector<16xf32> to vector<16x1xf32>
    %53 = tpu.reciprocal %52 {approx = true} : vector<16x1xf32> -> vector<16x1xf32>
    %54 = vector.broadcast %53 : vector<16x1xf32> to vector<16x16xf32>
    %55 = arith.mulf %50, %54 : vector<16x16xf32>
    %cst_23 = arith.constant dense<0.000000e+00> : vector<16x16xf32>
    %56 = tpu.matmul %55, %41, %cst_23 {dimension_numbers = #tpu.dot_dimension_numbers<[1], [0], [0], [1], [0, 0, 1, 1], [], []>} : vector<16x16xf32>, vector<16x16xf32>, vector<16x16xf32> -> vector<16x16xf32>
    %57 = vector.extract_strided_slice %18 {offsets = [0, 32], sizes = [16, 16], strides = [1, 1]} : vector<32x192xf32> to vector<16x16xf32>
    %58 = vector.extract_strided_slice %18 {offsets = [0, 96], sizes = [16, 16], strides = [1, 1]} : vector<32x192xf32> to vector<16x16xf32>
    %59 = vector.extract_strided_slice %18 {offsets = [0, 160], sizes = [16, 16], strides = [1, 1]} : vector<32x192xf32> to vector<16x16xf32>
    %60 = tpu.transpose %58, [1, 0] : vector<16x16xf32> -> vector<16x16xf32>
    %cst_24 = arith.constant dense<0.000000e+00> : vector<16x16xf32>
    %61 = tpu.matmul %57, %60, %cst_24 {dimension_numbers = #tpu.dot_dimension_numbers<[1], [0], [0], [1], [0, 0, 1, 1], [], []>} : vector<16x16xf32>, vector<16x16xf32>, vector<16x16xf32> -> vector<16x16xf32>
    %62 = vector.broadcast %20 : vector<1x16xf32> to vector<16x16xf32>
    %63 = arith.addf %61, %62 : vector<16x16xf32>
    %cst_25 = arith.constant dense<0xFF800000> : vector<16xf32>
    %64 = vector.multi_reduction <maximumf>, %63, %cst_25 [1] : vector<16x16xf32> to vector<16xf32>
    %65 = vector.shape_cast %64 : vector<16xf32> to vector<16x1xf32>
    %66 = vector.broadcast %65 : vector<16x1xf32> to vector<16x16xf32>
    %67 = arith.subf %63, %66 : vector<16x16xf32>
    %68 = math.exp %67 : vector<16x16xf32>
    %cst_26 = arith.constant dense<0.000000e+00> : vector<16xf32>
    %69 = vector.multi_reduction <add>, %68, %cst_26 [1] : vector<16x16xf32> to vector<16xf32>
    %70 = vector.shape_cast %69 : vector<16xf32> to vector<16x1xf32>
    %71 = tpu.reciprocal %70 {approx = true} : vector<16x1xf32> -> vector<16x1xf32>
    %72 = vector.broadcast %71 : vector<16x1xf32> to vector<16x16xf32>
    %73 = arith.mulf %68, %72 : vector<16x16xf32>
    %cst_27 = arith.constant dense<0.000000e+00> : vector<16x16xf32>
    %74 = tpu.matmul %73, %59, %cst_27 {dimension_numbers = #tpu.dot_dimension_numbers<[1], [0], [0], [1], [0, 0, 1, 1], [], []>} : vector<16x16xf32>, vector<16x16xf32>, vector<16x16xf32> -> vector<16x16xf32>
    %75 = vector.extract_strided_slice %18 {offsets = [0, 48], sizes = [16, 16], strides = [1, 1]} : vector<32x192xf32> to vector<16x16xf32>
    %76 = vector.extract_strided_slice %18 {offsets = [0, 112], sizes = [16, 16], strides = [1, 1]} : vector<32x192xf32> to vector<16x16xf32>
    %77 = vector.extract_strided_slice %18 {offsets = [0, 176], sizes = [16, 16], strides = [1, 1]} : vector<32x192xf32> to vector<16x16xf32>
    %78 = tpu.transpose %76, [1, 0] : vector<16x16xf32> -> vector<16x16xf32>
    %cst_28 = arith.constant dense<0.000000e+00> : vector<16x16xf32>
    %79 = tpu.matmul %75, %78, %cst_28 {dimension_numbers = #tpu.dot_dimension_numbers<[1], [0], [0], [1], [0, 0, 1, 1], [], []>} : vector<16x16xf32>, vector<16x16xf32>, vector<16x16xf32> -> vector<16x16xf32>
    %80 = vector.broadcast %20 : vector<1x16xf32> to vector<16x16xf32>
    %81 = arith.addf %79, %80 : vector<16x16xf32>
    %cst_29 = arith.constant dense<0xFF800000> : vector<16xf32>
    %82 = vector.multi_reduction <maximumf>, %81, %cst_29 [1] : vector<16x16xf32> to vector<16xf32>
    %83 = vector.shape_cast %82 : vector<16xf32> to vector<16x1xf32>
    %84 = vector.broadcast %83 : vector<16x1xf32> to vector<16x16xf32>
    %85 = arith.subf %81, %84 : vector<16x16xf32>
    %86 = math.exp %85 : vector<16x16xf32>
    %cst_30 = arith.constant dense<0.000000e+00> : vector<16xf32>
    %87 = vector.multi_reduction <add>, %86, %cst_30 [1] : vector<16x16xf32> to vector<16xf32>
    %88 = vector.shape_cast %87 : vector<16xf32> to vector<16x1xf32>
    %89 = tpu.reciprocal %88 {approx = true} : vector<16x1xf32> -> vector<16x1xf32>
    %90 = vector.broadcast %89 : vector<16x1xf32> to vector<16x16xf32>
    %91 = arith.mulf %86, %90 : vector<16x16xf32>
    %cst_31 = arith.constant dense<0.000000e+00> : vector<16x16xf32>
    %92 = tpu.matmul %91, %77, %cst_31 {dimension_numbers = #tpu.dot_dimension_numbers<[1], [0], [0], [1], [0, 0, 1, 1], [], []>} : vector<16x16xf32>, vector<16x16xf32>, vector<16x16xf32> -> vector<16x16xf32>
    %93 = tpu.concatenate %38, %56, %74, %92 in 1 : vector<16x16xf32>, vector<16x16xf32>, vector<16x16xf32>, vector<16x16xf32> -> vector<16x64xf32>
    %94 = vector.extract_strided_slice %11 {offsets = [1, 0, 0], sizes = [1, 1, 16], strides = [1, 1, 1]} : vector<2x1x16xf32> to vector<1x1x16xf32>
    %95 = vector.shape_cast %94 : vector<1x1x16xf32> to vector<1x16xf32>
    %96 = vector.extract_strided_slice %18 {offsets = [16, 0], sizes = [16, 16], strides = [1, 1]} : vector<32x192xf32> to vector<16x16xf32>
    %97 = vector.extract_strided_slice %18 {offsets = [16, 64], sizes = [16, 16], strides = [1, 1]} : vector<32x192xf32> to vector<16x16xf32>
    %98 = vector.extract_strided_slice %18 {offsets = [16, 128], sizes = [16, 16], strides = [1, 1]} : vector<32x192xf32> to vector<16x16xf32>
    %99 = tpu.transpose %97, [1, 0] : vector<16x16xf32> -> vector<16x16xf32>
    %cst_32 = arith.constant dense<0.000000e+00> : vector<16x16xf32>
    %100 = tpu.matmul %96, %99, %cst_32 {dimension_numbers = #tpu.dot_dimension_numbers<[1], [0], [0], [1], [0, 0, 1, 1], [], []>} : vector<16x16xf32>, vector<16x16xf32>, vector<16x16xf32> -> vector<16x16xf32>
    %101 = vector.broadcast %95 : vector<1x16xf32> to vector<16x16xf32>
    %102 = arith.addf %100, %101 : vector<16x16xf32>
    %cst_33 = arith.constant dense<0xFF800000> : vector<16xf32>
    %103 = vector.multi_reduction <maximumf>, %102, %cst_33 [1] : vector<16x16xf32> to vector<16xf32>
    %104 = vector.shape_cast %103 : vector<16xf32> to vector<16x1xf32>
    %105 = vector.broadcast %104 : vector<16x1xf32> to vector<16x16xf32>
    %106 = arith.subf %102, %105 : vector<16x16xf32>
    %107 = math.exp %106 : vector<16x16xf32>
    %cst_34 = arith.constant dense<0.000000e+00> : vector<16xf32>
    %108 = vector.multi_reduction <add>, %107, %cst_34 [1] : vector<16x16xf32> to vector<16xf32>
    %109 = vector.shape_cast %108 : vector<16xf32> to vector<16x1xf32>
    %110 = tpu.reciprocal %109 {approx = true} : vector<16x1xf32> -> vector<16x1xf32>
    %111 = vector.broadcast %110 : vector<16x1xf32> to vector<16x16xf32>
    %112 = arith.mulf %107, %111 : vector<16x16xf32>
    %cst_35 = arith.constant dense<0.000000e+00> : vector<16x16xf32>
    %113 = tpu.matmul %112, %98, %cst_35 {dimension_numbers = #tpu.dot_dimension_numbers<[1], [0], [0], [1], [0, 0, 1, 1], [], []>} : vector<16x16xf32>, vector<16x16xf32>, vector<16x16xf32> -> vector<16x16xf32>
    %114 = vector.extract_strided_slice %18 {offsets = [16, 16], sizes = [16, 16], strides = [1, 1]} : vector<32x192xf32> to vector<16x16xf32>
    %115 = vector.extract_strided_slice %18 {offsets = [16, 80], sizes = [16, 16], strides = [1, 1]} : vector<32x192xf32> to vector<16x16xf32>
    %116 = vector.extract_strided_slice %18 {offsets = [16, 144], sizes = [16, 16], strides = [1, 1]} : vector<32x192xf32> to vector<16x16xf32>
    %117 = tpu.transpose %115, [1, 0] : vector<16x16xf32> -> vector<16x16xf32>
    %cst_36 = arith.constant dense<0.000000e+00> : vector<16x16xf32>
    %118 = tpu.matmul %114, %117, %cst_36 {dimension_numbers = #tpu.dot_dimension_numbers<[1], [0], [0], [1], [0, 0, 1, 1], [], []>} : vector<16x16xf32>, vector<16x16xf32>, vector<16x16xf32> -> vector<16x16xf32>
    %119 = vector.broadcast %95 : vector<1x16xf32> to vector<16x16xf32>
    %120 = arith.addf %118, %119 : vector<16x16xf32>
    %cst_37 = arith.constant dense<0xFF800000> : vector<16xf32>
    %121 = vector.multi_reduction <maximumf>, %120, %cst_37 [1] : vector<16x16xf32> to vector<16xf32>
    %122 = vector.shape_cast %121 : vector<16xf32> to vector<16x1xf32>
    %123 = vector.broadcast %122 : vector<16x1xf32> to vector<16x16xf32>
    %124 = arith.subf %120, %123 : vector<16x16xf32>
    %125 = math.exp %124 : vector<16x16xf32>
    %cst_38 = arith.constant dense<0.000000e+00> : vector<16xf32>
    %126 = vector.multi_reduction <add>, %125, %cst_38 [1] : vector<16x16xf32> to vector<16xf32>
    %127 = vector.shape_cast %126 : vector<16xf32> to vector<16x1xf32>
    %128 = tpu.reciprocal %127 {approx = true} : vector<16x1xf32> -> vector<16x1xf32>
    %129 = vector.broadcast %128 : vector<16x1xf32> to vector<16x16xf32>
    %130 = arith.mulf %125, %129 : vector<16x16xf32>
    %cst_39 = arith.constant dense<0.000000e+00> : vector<16x16xf32>
    %131 = tpu.matmul %130, %116, %cst_39 {dimension_numbers = #tpu.dot_dimension_numbers<[1], [0], [0], [1], [0, 0, 1, 1], [], []>} : vector<16x16xf32>, vector<16x16xf32>, vector<16x16xf32> -> vector<16x16xf32>
    %132 = vector.extract_strided_slice %18 {offsets = [16, 32], sizes = [16, 16], strides = [1, 1]} : vector<32x192xf32> to vector<16x16xf32>
    %133 = vector.extract_strided_slice %18 {offsets = [16, 96], sizes = [16, 16], strides = [1, 1]} : vector<32x192xf32> to vector<16x16xf32>
    %134 = vector.extract_strided_slice %18 {offsets = [16, 160], sizes = [16, 16], strides = [1, 1]} : vector<32x192xf32> to vector<16x16xf32>
    %135 = tpu.transpose %133, [1, 0] : vector<16x16xf32> -> vector<16x16xf32>
    %cst_40 = arith.constant dense<0.000000e+00> : vector<16x16xf32>
    %136 = tpu.matmul %132, %135, %cst_40 {dimension_numbers = #tpu.dot_dimension_numbers<[1], [0], [0], [1], [0, 0, 1, 1], [], []>} : vector<16x16xf32>, vector<16x16xf32>, vector<16x16xf32> -> vector<16x16xf32>
    %137 = vector.broadcast %95 : vector<1x16xf32> to vector<16x16xf32>
    %138 = arith.addf %136, %137 : vector<16x16xf32>
    %cst_41 = arith.constant dense<0xFF800000> : vector<16xf32>
    %139 = vector.multi_reduction <maximumf>, %138, %cst_41 [1] : vector<16x16xf32> to vector<16xf32>
    %140 = vector.shape_cast %139 : vector<16xf32> to vector<16x1xf32>
    %141 = vector.broadcast %140 : vector<16x1xf32> to vector<16x16xf32>
    %142 = arith.subf %138, %141 : vector<16x16xf32>
    %143 = math.exp %142 : vector<16x16xf32>
    %cst_42 = arith.constant dense<0.000000e+00> : vector<16xf32>
    %144 = vector.multi_reduction <add>, %143, %cst_42 [1] : vector<16x16xf32> to vector<16xf32>
    %145 = vector.shape_cast %144 : vector<16xf32> to vector<16x1xf32>
    %146 = tpu.reciprocal %145 {approx = true} : vector<16x1xf32> -> vector<16x1xf32>
    %147 = vector.broadcast %146 : vector<16x1xf32> to vector<16x16xf32>
    %148 = arith.mulf %143, %147 : vector<16x16xf32>
    %cst_43 = arith.constant dense<0.000000e+00> : vector<16x16xf32>
    %149 = tpu.matmul %148, %134, %cst_43 {dimension_numbers = #tpu.dot_dimension_numbers<[1], [0], [0], [1], [0, 0, 1, 1], [], []>} : vector<16x16xf32>, vector<16x16xf32>, vector<16x16xf32> -> vector<16x16xf32>
    %150 = vector.extract_strided_slice %18 {offsets = [16, 48], sizes = [16, 16], strides = [1, 1]} : vector<32x192xf32> to vector<16x16xf32>
    %151 = vector.extract_strided_slice %18 {offsets = [16, 112], sizes = [16, 16], strides = [1, 1]} : vector<32x192xf32> to vector<16x16xf32>
    %152 = vector.extract_strided_slice %18 {offsets = [16, 176], sizes = [16, 16], strides = [1, 1]} : vector<32x192xf32> to vector<16x16xf32>
    %153 = tpu.transpose %151, [1, 0] : vector<16x16xf32> -> vector<16x16xf32>
    %cst_44 = arith.constant dense<0.000000e+00> : vector<16x16xf32>
    %154 = tpu.matmul %150, %153, %cst_44 {dimension_numbers = #tpu.dot_dimension_numbers<[1], [0], [0], [1], [0, 0, 1, 1], [], []>} : vector<16x16xf32>, vector<16x16xf32>, vector<16x16xf32> -> vector<16x16xf32>
    %155 = vector.broadcast %95 : vector<1x16xf32> to vector<16x16xf32>
    %156 = arith.addf %154, %155 : vector<16x16xf32>
    %cst_45 = arith.constant dense<0xFF800000> : vector<16xf32>
    %157 = vector.multi_reduction <maximumf>, %156, %cst_45 [1] : vector<16x16xf32> to vector<16xf32>
    %158 = vector.shape_cast %157 : vector<16xf32> to vector<16x1xf32>
    %159 = vector.broadcast %158 : vector<16x1xf32> to vector<16x16xf32>
    %160 = arith.subf %156, %159 : vector<16x16xf32>
    %161 = math.exp %160 : vector<16x16xf32>
    %cst_46 = arith.constant dense<0.000000e+00> : vector<16xf32>
    %162 = vector.multi_reduction <add>, %161, %cst_46 [1] : vector<16x16xf32> to vector<16xf32>
    %163 = vector.shape_cast %162 : vector<16xf32> to vector<16x1xf32>
    %164 = tpu.reciprocal %163 {approx = true} : vector<16x1xf32> -> vector<16x1xf32>
    %165 = vector.broadcast %164 : vector<16x1xf32> to vector<16x16xf32>
    %166 = arith.mulf %161, %165 : vector<16x16xf32>
    %cst_47 = arith.constant dense<0.000000e+00> : vector<16x16xf32>
    %167 = tpu.matmul %166, %152, %cst_47 {dimension_numbers = #tpu.dot_dimension_numbers<[1], [0], [0], [1], [0, 0, 1, 1], [], []>} : vector<16x16xf32>, vector<16x16xf32>, vector<16x16xf32> -> vector<16x16xf32>
    %168 = tpu.concatenate %113, %131, %149, %167 in 1 : vector<16x16xf32>, vector<16x16xf32>, vector<16x16xf32>, vector<16x16xf32> -> vector<16x64xf32>
    %169 = tpu.concatenate %93, %168 in 0 : vector<16x64xf32>, vector<16x64xf32> -> vector<32x64xf32>
    %c0_48 = arith.constant 0 : index
    %c0_49 = arith.constant 0 : index
    %c0_50 = arith.constant 0 : index
    %170 = vector.load %arg6[%c0_48, %c0_49, %c0_50] : memref<2x64x64xf32, #tpu.memory_space<vmem>>, vector<1x64x64xf32>
    %171 = vector.shape_cast %170 : vector<1x64x64xf32> to vector<64x64xf32>
    %cst_51 = arith.constant dense<0.000000e+00> : vector<32x64xf32>
    %172 = tpu.matmul %169, %171, %cst_51 {dimension_numbers = #tpu.dot_dimension_numbers<[1], [0], [0], [1], [0, 0, 1, 1], [], []>} : vector<32x64xf32>, vector<64x64xf32>, vector<32x64xf32> -> vector<32x64xf32>
    %c0_52 = arith.constant 0 : index
    %c0_53 = arith.constant 0 : index
    %c0_54 = arith.constant 0 : index
    %173 = vector.load %arg7[%c0_52, %c0_53, %c0_54] : memref<2x1x64xf32, #tpu.memory_space<vmem>>, vector<1x1x64xf32>
    %174 = vector.shape_cast %173 : vector<1x1x64xf32> to vector<1x64xf32>
    %175 = vector.broadcast %174 : vector<1x64xf32> to vector<32x64xf32>
    %176 = arith.addf %172, %175 : vector<32x64xf32>
    %177 = arith.addf %5, %176 : vector<32x64xf32>
    %c0_55 = arith.constant 0 : index
    %c0_56 = arith.constant 0 : index
    %c0_57 = arith.constant 0 : index
    %178 = vector.load %arg8[%c0_55, %c0_56, %c0_57] : memref<2x1x64xf32, #tpu.memory_space<vmem>>, vector<1x1x64xf32>
    %179 = vector.shape_cast %178 : vector<1x1x64xf32> to vector<1x64xf32>
    %c0_58 = arith.constant 0 : index
    %c0_59 = arith.constant 0 : index
    %c0_60 = arith.constant 0 : index
    %180 = vector.load %arg9[%c0_58, %c0_59, %c0_60] : memref<2x1x64xf32, #tpu.memory_space<vmem>>, vector<1x1x64xf32>
    %181 = vector.shape_cast %180 : vector<1x1x64xf32> to vector<1x64xf32>
    %cst_61 = arith.constant dense<0.000000e+00> : vector<32xf32>
    %182 = vector.multi_reduction <add>, %177, %cst_61 [1] : vector<32x64xf32> to vector<32xf32>
    %183 = vector.shape_cast %182 : vector<32xf32> to vector<32x1xf32>
    %cst_62 = arith.constant 6.400000e+01 : f32
    %184 = vector.broadcast %cst_62 : f32 to vector<32x1xf32>
    %185 = arith.divf %183, %184 : vector<32x1xf32>
    %186 = vector.broadcast %185 : vector<32x1xf32> to vector<32x64xf32>
    %187 = arith.subf %177, %186 : vector<32x64xf32>
    %188 = arith.mulf %187, %187 : vector<32x64xf32>
    %cst_63 = arith.constant dense<0.000000e+00> : vector<32xf32>
    %189 = vector.multi_reduction <add>, %188, %cst_63 [1] : vector<32x64xf32> to vector<32xf32>
    %190 = vector.shape_cast %189 : vector<32xf32> to vector<32x1xf32>
    %cst_64 = arith.constant 6.400000e+01 : f32
    %191 = vector.broadcast %cst_64 : f32 to vector<32x1xf32>
    %192 = arith.divf %190, %191 : vector<32x1xf32>
    %cst_65 = arith.constant 9.99999974E-6 : f32
    %193 = vector.broadcast %cst_65 : f32 to vector<32x1xf32>
    %194 = arith.addf %192, %193 : vector<32x1xf32>
    %195 = math.rsqrt %194 : vector<32x1xf32>
    %196 = vector.broadcast %195 : vector<32x1xf32> to vector<32x64xf32>
    %197 = arith.mulf %187, %196 : vector<32x64xf32>
    %198 = vector.broadcast %179 : vector<1x64xf32> to vector<32x64xf32>
    %199 = arith.mulf %197, %198 : vector<32x64xf32>
    %200 = vector.broadcast %181 : vector<1x64xf32> to vector<32x64xf32>
    %201 = arith.addf %199, %200 : vector<32x64xf32>
    %c0_66 = arith.constant 0 : index
    %c0_67 = arith.constant 0 : index
    %c0_68 = arith.constant 0 : index
    %202 = vector.load %arg10[%c0_66, %c0_67, %c0_68] : memref<2x64x256xf32, #tpu.memory_space<vmem>>, vector<1x64x256xf32>
    %203 = vector.shape_cast %202 : vector<1x64x256xf32> to vector<64x256xf32>
    %cst_69 = arith.constant dense<0.000000e+00> : vector<32x256xf32>
    %204 = tpu.matmul %201, %203, %cst_69 {dimension_numbers = #tpu.dot_dimension_numbers<[1], [0], [0], [1], [0, 0, 1, 1], [], []>} : vector<32x64xf32>, vector<64x256xf32>, vector<32x256xf32> -> vector<32x256xf32>
    %c0_70 = arith.constant 0 : index
    %c0_71 = arith.constant 0 : index
    %c0_72 = arith.constant 0 : index
    %205 = vector.load %arg11[%c0_70, %c0_71, %c0_72] : memref<2x1x256xf32, #tpu.memory_space<vmem>>, vector<1x1x256xf32>
    %206 = vector.shape_cast %205 : vector<1x1x256xf32> to vector<1x256xf32>
    %207 = vector.broadcast %206 : vector<1x256xf32> to vector<32x256xf32>
    %208 = arith.addf %204, %207 : vector<32x256xf32>
    %cst_73 = arith.constant 0.000000e+00 : f32
    %209 = vector.broadcast %cst_73 : f32 to vector<32x256xf32>
    %210 = arith.maximumf %208, %209 : vector<32x256xf32>
    %c0_74 = arith.constant 0 : index
    %c0_75 = arith.constant 0 : index
    %c0_76 = arith.constant 0 : index
    %211 = vector.load %arg12[%c0_74, %c0_75, %c0_76] : memref<2x256x64xf32, #tpu.memory_space<vmem>>, vector<1x256x64xf32>
    %212 = vector.shape_cast %211 : vector<1x256x64xf32> to vector<256x64xf32>
    %cst_77 = arith.constant dense<0.000000e+00> : vector<32x64xf32>
    %213 = tpu.matmul %210, %212, %cst_77 {dimension_numbers = #tpu.dot_dimension_numbers<[1], [0], [0], [1], [0, 0, 1, 1], [], []>} : vector<32x256xf32>, vector<256x64xf32>, vector<32x64xf32> -> vector<32x64xf32>
    %c0_78 = arith.constant 0 : index
    %c0_79 = arith.constant 0 : index
    %c0_80 = arith.constant 0 : index
    %214 = vector.load %arg13[%c0_78, %c0_79, %c0_80] : memref<2x1x64xf32, #tpu.memory_space<vmem>>, vector<1x1x64xf32>
    %215 = vector.shape_cast %214 : vector<1x1x64xf32> to vector<1x64xf32>
    %216 = vector.broadcast %215 : vector<1x64xf32> to vector<32x64xf32>
    %217 = arith.addf %213, %216 : vector<32x64xf32>
    %218 = arith.addf %201, %217 : vector<32x64xf32>
    %c0_81 = arith.constant 0 : index
    %c0_82 = arith.constant 0 : index
    %c0_83 = arith.constant 0 : index
    %219 = vector.load %arg14[%c0_81, %c0_82, %c0_83] : memref<2x1x64xf32, #tpu.memory_space<vmem>>, vector<1x1x64xf32>
    %220 = vector.shape_cast %219 : vector<1x1x64xf32> to vector<1x64xf32>
    %c0_84 = arith.constant 0 : index
    %c0_85 = arith.constant 0 : index
    %c0_86 = arith.constant 0 : index
    %221 = vector.load %arg15[%c0_84, %c0_85, %c0_86] : memref<2x1x64xf32, #tpu.memory_space<vmem>>, vector<1x1x64xf32>
    %222 = vector.shape_cast %221 : vector<1x1x64xf32> to vector<1x64xf32>
    %cst_87 = arith.constant dense<0.000000e+00> : vector<32xf32>
    %223 = vector.multi_reduction <add>, %218, %cst_87 [1] : vector<32x64xf32> to vector<32xf32>
    %224 = vector.shape_cast %223 : vector<32xf32> to vector<32x1xf32>
    %cst_88 = arith.constant 6.400000e+01 : f32
    %225 = vector.broadcast %cst_88 : f32 to vector<32x1xf32>
    %226 = arith.divf %224, %225 : vector<32x1xf32>
    %227 = vector.broadcast %226 : vector<32x1xf32> to vector<32x64xf32>
    %228 = arith.subf %218, %227 : vector<32x64xf32>
    %229 = arith.mulf %228, %228 : vector<32x64xf32>
    %cst_89 = arith.constant dense<0.000000e+00> : vector<32xf32>
    %230 = vector.multi_reduction <add>, %229, %cst_89 [1] : vector<32x64xf32> to vector<32xf32>
    %231 = vector.shape_cast %230 : vector<32xf32> to vector<32x1xf32>
    %cst_90 = arith.constant 6.400000e+01 : f32
    %232 = vector.broadcast %cst_90 : f32 to vector<32x1xf32>
    %233 = arith.divf %231, %232 : vector<32x1xf32>
    %cst_91 = arith.constant 9.99999974E-6 : f32
    %234 = vector.broadcast %cst_91 : f32 to vector<32x1xf32>
    %235 = arith.addf %233, %234 : vector<32x1xf32>
    %236 = math.rsqrt %235 : vector<32x1xf32>
    %237 = vector.broadcast %236 : vector<32x1xf32> to vector<32x64xf32>
    %238 = arith.mulf %228, %237 : vector<32x64xf32>
    %239 = vector.broadcast %220 : vector<1x64xf32> to vector<32x64xf32>
    %240 = arith.mulf %238, %239 : vector<32x64xf32>
    %241 = vector.broadcast %222 : vector<1x64xf32> to vector<32x64xf32>
    %242 = arith.addf %240, %241 : vector<32x64xf32>
    %c1 = arith.constant 1 : index
    %c0_92 = arith.constant 0 : index
    %c0_93 = arith.constant 0 : index
    %243 = vector.load %arg4[%c1, %c0_92, %c0_93] : memref<2x64x192xf32, #tpu.memory_space<vmem>>, vector<1x64x192xf32>
    %244 = vector.shape_cast %243 : vector<1x64x192xf32> to vector<64x192xf32>
    %cst_94 = arith.constant dense<0.000000e+00> : vector<32x192xf32>
    %245 = tpu.matmul %242, %244, %cst_94 {dimension_numbers = #tpu.dot_dimension_numbers<[1], [0], [0], [1], [0, 0, 1, 1], [], []>} : vector<32x64xf32>, vector<64x192xf32>, vector<32x192xf32> -> vector<32x192xf32>
    %c1_95 = arith.constant 1 : index
    %c0_96 = arith.constant 0 : index
    %c0_97 = arith.constant 0 : index
    %246 = vector.load %arg5[%c1_95, %c0_96, %c0_97] : memref<2x1x192xf32, #tpu.memory_space<vmem>>, vector<1x1x192xf32>
    %247 = vector.shape_cast %246 : vector<1x1x192xf32> to vector<1x192xf32>
    %248 = vector.broadcast %247 : vector<1x192xf32> to vector<32x192xf32>
    %249 = arith.addf %245, %248 : vector<32x192xf32>
    %250 = vector.extract_strided_slice %11 {offsets = [0, 0, 0], sizes = [1, 1, 16], strides = [1, 1, 1]} : vector<2x1x16xf32> to vector<1x1x16xf32>
    %251 = vector.shape_cast %250 : vector<1x1x16xf32> to vector<1x16xf32>
    %252 = vector.extract_strided_slice %249 {offsets = [0, 0], sizes = [16, 16], strides = [1, 1]} : vector<32x192xf32> to vector<16x16xf32>
    %253 = vector.extract_strided_slice %249 {offsets = [0, 64], sizes = [16, 16], strides = [1, 1]} : vector<32x192xf32> to vector<16x16xf32>
    %254 = vector.extract_strided_slice %249 {offsets = [0, 128], sizes = [16, 16], strides = [1, 1]} : vector<32x192xf32> to vector<16x16xf32>
    %255 = tpu.transpose %253, [1, 0] : vector<16x16xf32> -> vector<16x16xf32>
    %cst_98 = arith.constant dense<0.000000e+00> : vector<16x16xf32>
    %256 = tpu.matmul %252, %255, %cst_98 {dimension_numbers = #tpu.dot_dimension_numbers<[1], [0], [0], [1], [0, 0, 1, 1], [], []>} : vector<16x16xf32>, vector<16x16xf32>, vector<16x16xf32> -> vector<16x16xf32>
    %257 = vector.broadcast %251 : vector<1x16xf32> to vector<16x16xf32>
    %258 = arith.addf %256, %257 : vector<16x16xf32>
    %cst_99 = arith.constant dense<0xFF800000> : vector<16xf32>
    %259 = vector.multi_reduction <maximumf>, %258, %cst_99 [1] : vector<16x16xf32> to vector<16xf32>
    %260 = vector.shape_cast %259 : vector<16xf32> to vector<16x1xf32>
    %261 = vector.broadcast %260 : vector<16x1xf32> to vector<16x16xf32>
    %262 = arith.subf %258, %261 : vector<16x16xf32>
    %263 = math.exp %262 : vector<16x16xf32>
    %cst_100 = arith.constant dense<0.000000e+00> : vector<16xf32>
    %264 = vector.multi_reduction <add>, %263, %cst_100 [1] : vector<16x16xf32> to vector<16xf32>
    %265 = vector.shape_cast %264 : vector<16xf32> to vector<16x1xf32>
    %266 = tpu.reciprocal %265 {approx = true} : vector<16x1xf32> -> vector<16x1xf32>
    %267 = vector.broadcast %266 : vector<16x1xf32> to vector<16x16xf32>
    %268 = arith.mulf %263, %267 : vector<16x16xf32>
    %cst_101 = arith.constant dense<0.000000e+00> : vector<16x16xf32>
    %269 = tpu.matmul %268, %254, %cst_101 {dimension_numbers = #tpu.dot_dimension_numbers<[1], [0], [0], [1], [0, 0, 1, 1], [], []>} : vector<16x16xf32>, vector<16x16xf32>, vector<16x16xf32> -> vector<16x16xf32>
    %270 = vector.extract_strided_slice %249 {offsets = [0, 16], sizes = [16, 16], strides = [1, 1]} : vector<32x192xf32> to vector<16x16xf32>
    %271 = vector.extract_strided_slice %249 {offsets = [0, 80], sizes = [16, 16], strides = [1, 1]} : vector<32x192xf32> to vector<16x16xf32>
    %272 = vector.extract_strided_slice %249 {offsets = [0, 144], sizes = [16, 16], strides = [1, 1]} : vector<32x192xf32> to vector<16x16xf32>
    %273 = tpu.transpose %271, [1, 0] : vector<16x16xf32> -> vector<16x16xf32>
    %cst_102 = arith.constant dense<0.000000e+00> : vector<16x16xf32>
    %274 = tpu.matmul %270, %273, %cst_102 {dimension_numbers = #tpu.dot_dimension_numbers<[1], [0], [0], [1], [0, 0, 1, 1], [], []>} : vector<16x16xf32>, vector<16x16xf32>, vector<16x16xf32> -> vector<16x16xf32>
    %275 = vector.broadcast %251 : vector<1x16xf32> to vector<16x16xf32>
    %276 = arith.addf %274, %275 : vector<16x16xf32>
    %cst_103 = arith.constant dense<0xFF800000> : vector<16xf32>
    %277 = vector.multi_reduction <maximumf>, %276, %cst_103 [1] : vector<16x16xf32> to vector<16xf32>
    %278 = vector.shape_cast %277 : vector<16xf32> to vector<16x1xf32>
    %279 = vector.broadcast %278 : vector<16x1xf32> to vector<16x16xf32>
    %280 = arith.subf %276, %279 : vector<16x16xf32>
    %281 = math.exp %280 : vector<16x16xf32>
    %cst_104 = arith.constant dense<0.000000e+00> : vector<16xf32>
    %282 = vector.multi_reduction <add>, %281, %cst_104 [1] : vector<16x16xf32> to vector<16xf32>
    %283 = vector.shape_cast %282 : vector<16xf32> to vector<16x1xf32>
    %284 = tpu.reciprocal %283 {approx = true} : vector<16x1xf32> -> vector<16x1xf32>
    %285 = vector.broadcast %284 : vector<16x1xf32> to vector<16x16xf32>
    %286 = arith.mulf %281, %285 : vector<16x16xf32>
    %cst_105 = arith.constant dense<0.000000e+00> : vector<16x16xf32>
    %287 = tpu.matmul %286, %272, %cst_105 {dimension_numbers = #tpu.dot_dimension_numbers<[1], [0], [0], [1], [0, 0, 1, 1], [], []>} : vector<16x16xf32>, vector<16x16xf32>, vector<16x16xf32> -> vector<16x16xf32>
    %288 = vector.extract_strided_slice %249 {offsets = [0, 32], sizes = [16, 16], strides = [1, 1]} : vector<32x192xf32> to vector<16x16xf32>
    %289 = vector.extract_strided_slice %249 {offsets = [0, 96], sizes = [16, 16], strides = [1, 1]} : vector<32x192xf32> to vector<16x16xf32>
    %290 = vector.extract_strided_slice %249 {offsets = [0, 160], sizes = [16, 16], strides = [1, 1]} : vector<32x192xf32> to vector<16x16xf32>
    %291 = tpu.transpose %289, [1, 0] : vector<16x16xf32> -> vector<16x16xf32>
    %cst_106 = arith.constant dense<0.000000e+00> : vector<16x16xf32>
    %292 = tpu.matmul %288, %291, %cst_106 {dimension_numbers = #tpu.dot_dimension_numbers<[1], [0], [0], [1], [0, 0, 1, 1], [], []>} : vector<16x16xf32>, vector<16x16xf32>, vector<16x16xf32> -> vector<16x16xf32>
    %293 = vector.broadcast %251 : vector<1x16xf32> to vector<16x16xf32>
    %294 = arith.addf %292, %293 : vector<16x16xf32>
    %cst_107 = arith.constant dense<0xFF800000> : vector<16xf32>
    %295 = vector.multi_reduction <maximumf>, %294, %cst_107 [1] : vector<16x16xf32> to vector<16xf32>
    %296 = vector.shape_cast %295 : vector<16xf32> to vector<16x1xf32>
    %297 = vector.broadcast %296 : vector<16x1xf32> to vector<16x16xf32>
    %298 = arith.subf %294, %297 : vector<16x16xf32>
    %299 = math.exp %298 : vector<16x16xf32>
    %cst_108 = arith.constant dense<0.000000e+00> : vector<16xf32>
    %300 = vector.multi_reduction <add>, %299, %cst_108 [1] : vector<16x16xf32> to vector<16xf32>
    %301 = vector.shape_cast %300 : vector<16xf32> to vector<16x1xf32>
    %302 = tpu.reciprocal %301 {approx = true} : vector<16x1xf32> -> vector<16x1xf32>
    %303 = vector.broadcast %302 : vector<16x1xf32> to vector<16x16xf32>
    %304 = arith.mulf %299, %303 : vector<16x16xf32>
    %cst_109 = arith.constant dense<0.000000e+00> : vector<16x16xf32>
    %305 = tpu.matmul %304, %290, %cst_109 {dimension_numbers = #tpu.dot_dimension_numbers<[1], [0], [0], [1], [0, 0, 1, 1], [], []>} : vector<16x16xf32>, vector<16x16xf32>, vector<16x16xf32> -> vector<16x16xf32>
    %306 = vector.extract_strided_slice %249 {offsets = [0, 48], sizes = [16, 16], strides = [1, 1]} : vector<32x192xf32> to vector<16x16xf32>
    %307 = vector.extract_strided_slice %249 {offsets = [0, 112], sizes = [16, 16], strides = [1, 1]} : vector<32x192xf32> to vector<16x16xf32>
    %308 = vector.extract_strided_slice %249 {offsets = [0, 176], sizes = [16, 16], strides = [1, 1]} : vector<32x192xf32> to vector<16x16xf32>
    %309 = tpu.transpose %307, [1, 0] : vector<16x16xf32> -> vector<16x16xf32>
    %cst_110 = arith.constant dense<0.000000e+00> : vector<16x16xf32>
    %310 = tpu.matmul %306, %309, %cst_110 {dimension_numbers = #tpu.dot_dimension_numbers<[1], [0], [0], [1], [0, 0, 1, 1], [], []>} : vector<16x16xf32>, vector<16x16xf32>, vector<16x16xf32> -> vector<16x16xf32>
    %311 = vector.broadcast %251 : vector<1x16xf32> to vector<16x16xf32>
    %312 = arith.addf %310, %311 : vector<16x16xf32>
    %cst_111 = arith.constant dense<0xFF800000> : vector<16xf32>
    %313 = vector.multi_reduction <maximumf>, %312, %cst_111 [1] : vector<16x16xf32> to vector<16xf32>
    %314 = vector.shape_cast %313 : vector<16xf32> to vector<16x1xf32>
    %315 = vector.broadcast %314 : vector<16x1xf32> to vector<16x16xf32>
    %316 = arith.subf %312, %315 : vector<16x16xf32>
    %317 = math.exp %316 : vector<16x16xf32>
    %cst_112 = arith.constant dense<0.000000e+00> : vector<16xf32>
    %318 = vector.multi_reduction <add>, %317, %cst_112 [1] : vector<16x16xf32> to vector<16xf32>
    %319 = vector.shape_cast %318 : vector<16xf32> to vector<16x1xf32>
    %320 = tpu.reciprocal %319 {approx = true} : vector<16x1xf32> -> vector<16x1xf32>
    %321 = vector.broadcast %320 : vector<16x1xf32> to vector<16x16xf32>
    %322 = arith.mulf %317, %321 : vector<16x16xf32>
    %cst_113 = arith.constant dense<0.000000e+00> : vector<16x16xf32>
    %323 = tpu.matmul %322, %308, %cst_113 {dimension_numbers = #tpu.dot_dimension_numbers<[1], [0], [0], [1], [0, 0, 1, 1], [], []>} : vector<16x16xf32>, vector<16x16xf32>, vector<16x16xf32> -> vector<16x16xf32>
    %324 = tpu.concatenate %269, %287, %305, %323 in 1 : vector<16x16xf32>, vector<16x16xf32>, vector<16x16xf32>, vector<16x16xf32> -> vector<16x64xf32>
    %325 = vector.extract_strided_slice %11 {offsets = [1, 0, 0], sizes = [1, 1, 16], strides = [1, 1, 1]} : vector<2x1x16xf32> to vector<1x1x16xf32>
    %326 = vector.shape_cast %325 : vector<1x1x16xf32> to vector<1x16xf32>
    %327 = vector.extract_strided_slice %249 {offsets = [16, 0], sizes = [16, 16], strides = [1, 1]} : vector<32x192xf32> to vector<16x16xf32>
    %328 = vector.extract_strided_slice %249 {offsets = [16, 64], sizes = [16, 16], strides = [1, 1]} : vector<32x192xf32> to vector<16x16xf32>
    %329 = vector.extract_strided_slice %249 {offsets = [16, 128], sizes = [16, 16], strides = [1, 1]} : vector<32x192xf32> to vector<16x16xf32>
    %330 = tpu.transpose %328, [1, 0] : vector<16x16xf32> -> vector<16x16xf32>
    %cst_114 = arith.constant dense<0.000000e+00> : vector<16x16xf32>
    %331 = tpu.matmul %327, %330, %cst_114 {dimension_numbers = #tpu.dot_dimension_numbers<[1], [0], [0], [1], [0, 0, 1, 1], [], []>} : vector<16x16xf32>, vector<16x16xf32>, vector<16x16xf32> -> vector<16x16xf32>
    %332 = vector.broadcast %326 : vector<1x16xf32> to vector<16x16xf32>
    %333 = arith.addf %331, %332 : vector<16x16xf32>
    %cst_115 = arith.constant dense<0xFF800000> : vector<16xf32>
    %334 = vector.multi_reduction <maximumf>, %333, %cst_115 [1] : vector<16x16xf32> to vector<16xf32>
    %335 = vector.shape_cast %334 : vector<16xf32> to vector<16x1xf32>
    %336 = vector.broadcast %335 : vector<16x1xf32> to vector<16x16xf32>
    %337 = arith.subf %333, %336 : vector<16x16xf32>
    %338 = math.exp %337 : vector<16x16xf32>
    %cst_116 = arith.constant dense<0.000000e+00> : vector<16xf32>
    %339 = vector.multi_reduction <add>, %338, %cst_116 [1] : vector<16x16xf32> to vector<16xf32>
    %340 = vector.shape_cast %339 : vector<16xf32> to vector<16x1xf32>
    %341 = tpu.reciprocal %340 {approx = true} : vector<16x1xf32> -> vector<16x1xf32>
    %342 = vector.broadcast %341 : vector<16x1xf32> to vector<16x16xf32>
    %343 = arith.mulf %338, %342 : vector<16x16xf32>
    %cst_117 = arith.constant dense<0.000000e+00> : vector<16x16xf32>
    %344 = tpu.matmul %343, %329, %cst_117 {dimension_numbers = #tpu.dot_dimension_numbers<[1], [0], [0], [1], [0, 0, 1, 1], [], []>} : vector<16x16xf32>, vector<16x16xf32>, vector<16x16xf32> -> vector<16x16xf32>
    %345 = vector.extract_strided_slice %249 {offsets = [16, 16], sizes = [16, 16], strides = [1, 1]} : vector<32x192xf32> to vector<16x16xf32>
    %346 = vector.extract_strided_slice %249 {offsets = [16, 80], sizes = [16, 16], strides = [1, 1]} : vector<32x192xf32> to vector<16x16xf32>
    %347 = vector.extract_strided_slice %249 {offsets = [16, 144], sizes = [16, 16], strides = [1, 1]} : vector<32x192xf32> to vector<16x16xf32>
    %348 = tpu.transpose %346, [1, 0] : vector<16x16xf32> -> vector<16x16xf32>
    %cst_118 = arith.constant dense<0.000000e+00> : vector<16x16xf32>
    %349 = tpu.matmul %345, %348, %cst_118 {dimension_numbers = #tpu.dot_dimension_numbers<[1], [0], [0], [1], [0, 0, 1, 1], [], []>} : vector<16x16xf32>, vector<16x16xf32>, vector<16x16xf32> -> vector<16x16xf32>
    %350 = vector.broadcast %326 : vector<1x16xf32> to vector<16x16xf32>
    %351 = arith.addf %349, %350 : vector<16x16xf32>
    %cst_119 = arith.constant dense<0xFF800000> : vector<16xf32>
    %352 = vector.multi_reduction <maximumf>, %351, %cst_119 [1] : vector<16x16xf32> to vector<16xf32>
    %353 = vector.shape_cast %352 : vector<16xf32> to vector<16x1xf32>
    %354 = vector.broadcast %353 : vector<16x1xf32> to vector<16x16xf32>
    %355 = arith.subf %351, %354 : vector<16x16xf32>
    %356 = math.exp %355 : vector<16x16xf32>
    %cst_120 = arith.constant dense<0.000000e+00> : vector<16xf32>
    %357 = vector.multi_reduction <add>, %356, %cst_120 [1] : vector<16x16xf32> to vector<16xf32>
    %358 = vector.shape_cast %357 : vector<16xf32> to vector<16x1xf32>
    %359 = tpu.reciprocal %358 {approx = true} : vector<16x1xf32> -> vector<16x1xf32>
    %360 = vector.broadcast %359 : vector<16x1xf32> to vector<16x16xf32>
    %361 = arith.mulf %356, %360 : vector<16x16xf32>
    %cst_121 = arith.constant dense<0.000000e+00> : vector<16x16xf32>
    %362 = tpu.matmul %361, %347, %cst_121 {dimension_numbers = #tpu.dot_dimension_numbers<[1], [0], [0], [1], [0, 0, 1, 1], [], []>} : vector<16x16xf32>, vector<16x16xf32>, vector<16x16xf32> -> vector<16x16xf32>
    %363 = vector.extract_strided_slice %249 {offsets = [16, 32], sizes = [16, 16], strides = [1, 1]} : vector<32x192xf32> to vector<16x16xf32>
    %364 = vector.extract_strided_slice %249 {offsets = [16, 96], sizes = [16, 16], strides = [1, 1]} : vector<32x192xf32> to vector<16x16xf32>
    %365 = vector.extract_strided_slice %249 {offsets = [16, 160], sizes = [16, 16], strides = [1, 1]} : vector<32x192xf32> to vector<16x16xf32>
    %366 = tpu.transpose %364, [1, 0] : vector<16x16xf32> -> vector<16x16xf32>
    %cst_122 = arith.constant dense<0.000000e+00> : vector<16x16xf32>
    %367 = tpu.matmul %363, %366, %cst_122 {dimension_numbers = #tpu.dot_dimension_numbers<[1], [0], [0], [1], [0, 0, 1, 1], [], []>} : vector<16x16xf32>, vector<16x16xf32>, vector<16x16xf32> -> vector<16x16xf32>
    %368 = vector.broadcast %326 : vector<1x16xf32> to vector<16x16xf32>
    %369 = arith.addf %367, %368 : vector<16x16xf32>
    %cst_123 = arith.constant dense<0xFF800000> : vector<16xf32>
    %370 = vector.multi_reduction <maximumf>, %369, %cst_123 [1] : vector<16x16xf32> to vector<16xf32>
    %371 = vector.shape_cast %370 : vector<16xf32> to vector<16x1xf32>
    %372 = vector.broadcast %371 : vector<16x1xf32> to vector<16x16xf32>
    %373 = arith.subf %369, %372 : vector<16x16xf32>
    %374 = math.exp %373 : vector<16x16xf32>
    %cst_124 = arith.constant dense<0.000000e+00> : vector<16xf32>
    %375 = vector.multi_reduction <add>, %374, %cst_124 [1] : vector<16x16xf32> to vector<16xf32>
    %376 = vector.shape_cast %375 : vector<16xf32> to vector<16x1xf32>
    %377 = tpu.reciprocal %376 {approx = true} : vector<16x1xf32> -> vector<16x1xf32>
    %378 = vector.broadcast %377 : vector<16x1xf32> to vector<16x16xf32>
    %379 = arith.mulf %374, %378 : vector<16x16xf32>
    %cst_125 = arith.constant dense<0.000000e+00> : vector<16x16xf32>
    %380 = tpu.matmul %379, %365, %cst_125 {dimension_numbers = #tpu.dot_dimension_numbers<[1], [0], [0], [1], [0, 0, 1, 1], [], []>} : vector<16x16xf32>, vector<16x16xf32>, vector<16x16xf32> -> vector<16x16xf32>
    %381 = vector.extract_strided_slice %249 {offsets = [16, 48], sizes = [16, 16], strides = [1, 1]} : vector<32x192xf32> to vector<16x16xf32>
    %382 = vector.extract_strided_slice %249 {offsets = [16, 112], sizes = [16, 16], strides = [1, 1]} : vector<32x192xf32> to vector<16x16xf32>
    %383 = vector.extract_strided_slice %249 {offsets = [16, 176], sizes = [16, 16], strides = [1, 1]} : vector<32x192xf32> to vector<16x16xf32>
    %384 = tpu.transpose %382, [1, 0] : vector<16x16xf32> -> vector<16x16xf32>
    %cst_126 = arith.constant dense<0.000000e+00> : vector<16x16xf32>
    %385 = tpu.matmul %381, %384, %cst_126 {dimension_numbers = #tpu.dot_dimension_numbers<[1], [0], [0], [1], [0, 0, 1, 1], [], []>} : vector<16x16xf32>, vector<16x16xf32>, vector<16x16xf32> -> vector<16x16xf32>
    %386 = vector.broadcast %326 : vector<1x16xf32> to vector<16x16xf32>
    %387 = arith.addf %385, %386 : vector<16x16xf32>
    %cst_127 = arith.constant dense<0xFF800000> : vector<16xf32>
    %388 = vector.multi_reduction <maximumf>, %387, %cst_127 [1] : vector<16x16xf32> to vector<16xf32>
    %389 = vector.shape_cast %388 : vector<16xf32> to vector<16x1xf32>
    %390 = vector.broadcast %389 : vector<16x1xf32> to vector<16x16xf32>
    %391 = arith.subf %387, %390 : vector<16x16xf32>
    %392 = math.exp %391 : vector<16x16xf32>
    %cst_128 = arith.constant dense<0.000000e+00> : vector<16xf32>
    %393 = vector.multi_reduction <add>, %392, %cst_128 [1] : vector<16x16xf32> to vector<16xf32>
    %394 = vector.shape_cast %393 : vector<16xf32> to vector<16x1xf32>
    %395 = tpu.reciprocal %394 {approx = true} : vector<16x1xf32> -> vector<16x1xf32>
    %396 = vector.broadcast %395 : vector<16x1xf32> to vector<16x16xf32>
    %397 = arith.mulf %392, %396 : vector<16x16xf32>
    %cst_129 = arith.constant dense<0.000000e+00> : vector<16x16xf32>
    %398 = tpu.matmul %397, %383, %cst_129 {dimension_numbers = #tpu.dot_dimension_numbers<[1], [0], [0], [1], [0, 0, 1, 1], [], []>} : vector<16x16xf32>, vector<16x16xf32>, vector<16x16xf32> -> vector<16x16xf32>
    %399 = tpu.concatenate %344, %362, %380, %398 in 1 : vector<16x16xf32>, vector<16x16xf32>, vector<16x16xf32>, vector<16x16xf32> -> vector<16x64xf32>
    %400 = tpu.concatenate %324, %399 in 0 : vector<16x64xf32>, vector<16x64xf32> -> vector<32x64xf32>
    %c1_130 = arith.constant 1 : index
    %c0_131 = arith.constant 0 : index
    %c0_132 = arith.constant 0 : index
    %401 = vector.load %arg6[%c1_130, %c0_131, %c0_132] : memref<2x64x64xf32, #tpu.memory_space<vmem>>, vector<1x64x64xf32>
    %402 = vector.shape_cast %401 : vector<1x64x64xf32> to vector<64x64xf32>
    %cst_133 = arith.constant dense<0.000000e+00> : vector<32x64xf32>
    %403 = tpu.matmul %400, %402, %cst_133 {dimension_numbers = #tpu.dot_dimension_numbers<[1], [0], [0], [1], [0, 0, 1, 1], [], []>} : vector<32x64xf32>, vector<64x64xf32>, vector<32x64xf32> -> vector<32x64xf32>
    %c1_134 = arith.constant 1 : index
    %c0_135 = arith.constant 0 : index
    %c0_136 = arith.constant 0 : index
    %404 = vector.load %arg7[%c1_134, %c0_135, %c0_136] : memref<2x1x64xf32, #tpu.memory_space<vmem>>, vector<1x1x64xf32>
    %405 = vector.shape_cast %404 : vector<1x1x64xf32> to vector<1x64xf32>
    %406 = vector.broadcast %405 : vector<1x64xf32> to vector<32x64xf32>
    %407 = arith.addf %403, %406 : vector<32x64xf32>
    %408 = arith.addf %242, %407 : vector<32x64xf32>
    %c1_137 = arith.constant 1 : index
    %c0_138 = arith.constant 0 : index
    %c0_139 = arith.constant 0 : index
    %409 = vector.load %arg8[%c1_137, %c0_138, %c0_139] : memref<2x1x64xf32, #tpu.memory_space<vmem>>, vector<1x1x64xf32>
    %410 = vector.shape_cast %409 : vector<1x1x64xf32> to vector<1x64xf32>
    %c1_140 = arith.constant 1 : index
    %c0_141 = arith.constant 0 : index
    %c0_142 = arith.constant 0 : index
    %411 = vector.load %arg9[%c1_140, %c0_141, %c0_142] : memref<2x1x64xf32, #tpu.memory_space<vmem>>, vector<1x1x64xf32>
    %412 = vector.shape_cast %411 : vector<1x1x64xf32> to vector<1x64xf32>
    %cst_143 = arith.constant dense<0.000000e+00> : vector<32xf32>
    %413 = vector.multi_reduction <add>, %408, %cst_143 [1] : vector<32x64xf32> to vector<32xf32>
    %414 = vector.shape_cast %413 : vector<32xf32> to vector<32x1xf32>
    %cst_144 = arith.constant 6.400000e+01 : f32
    %415 = vector.broadcast %cst_144 : f32 to vector<32x1xf32>
    %416 = arith.divf %414, %415 : vector<32x1xf32>
    %417 = vector.broadcast %416 : vector<32x1xf32> to vector<32x64xf32>
    %418 = arith.subf %408, %417 : vector<32x64xf32>
    %419 = arith.mulf %418, %418 : vector<32x64xf32>
    %cst_145 = arith.constant dense<0.000000e+00> : vector<32xf32>
    %420 = vector.multi_reduction <add>, %419, %cst_145 [1] : vector<32x64xf32> to vector<32xf32>
    %421 = vector.shape_cast %420 : vector<32xf32> to vector<32x1xf32>
    %cst_146 = arith.constant 6.400000e+01 : f32
    %422 = vector.broadcast %cst_146 : f32 to vector<32x1xf32>
    %423 = arith.divf %421, %422 : vector<32x1xf32>
    %cst_147 = arith.constant 9.99999974E-6 : f32
    %424 = vector.broadcast %cst_147 : f32 to vector<32x1xf32>
    %425 = arith.addf %423, %424 : vector<32x1xf32>
    %426 = math.rsqrt %425 : vector<32x1xf32>
    %427 = vector.broadcast %426 : vector<32x1xf32> to vector<32x64xf32>
    %428 = arith.mulf %418, %427 : vector<32x64xf32>
    %429 = vector.broadcast %410 : vector<1x64xf32> to vector<32x64xf32>
    %430 = arith.mulf %428, %429 : vector<32x64xf32>
    %431 = vector.broadcast %412 : vector<1x64xf32> to vector<32x64xf32>
    %432 = arith.addf %430, %431 : vector<32x64xf32>
    %c1_148 = arith.constant 1 : index
    %c0_149 = arith.constant 0 : index
    %c0_150 = arith.constant 0 : index
    %433 = vector.load %arg10[%c1_148, %c0_149, %c0_150] : memref<2x64x256xf32, #tpu.memory_space<vmem>>, vector<1x64x256xf32>
    %434 = vector.shape_cast %433 : vector<1x64x256xf32> to vector<64x256xf32>
    %cst_151 = arith.constant dense<0.000000e+00> : vector<32x256xf32>
    %435 = tpu.matmul %432, %434, %cst_151 {dimension_numbers = #tpu.dot_dimension_numbers<[1], [0], [0], [1], [0, 0, 1, 1], [], []>} : vector<32x64xf32>, vector<64x256xf32>, vector<32x256xf32> -> vector<32x256xf32>
    %c1_152 = arith.constant 1 : index
    %c0_153 = arith.constant 0 : index
    %c0_154 = arith.constant 0 : index
    %436 = vector.load %arg11[%c1_152, %c0_153, %c0_154] : memref<2x1x256xf32, #tpu.memory_space<vmem>>, vector<1x1x256xf32>
    %437 = vector.shape_cast %436 : vector<1x1x256xf32> to vector<1x256xf32>
    %438 = vector.broadcast %437 : vector<1x256xf32> to vector<32x256xf32>
    %439 = arith.addf %435, %438 : vector<32x256xf32>
    %cst_155 = arith.constant 0.000000e+00 : f32
    %440 = vector.broadcast %cst_155 : f32 to vector<32x256xf32>
    %441 = arith.maximumf %439, %440 : vector<32x256xf32>
    %c1_156 = arith.constant 1 : index
    %c0_157 = arith.constant 0 : index
    %c0_158 = arith.constant 0 : index
    %442 = vector.load %arg12[%c1_156, %c0_157, %c0_158] : memref<2x256x64xf32, #tpu.memory_space<vmem>>, vector<1x256x64xf32>
    %443 = vector.shape_cast %442 : vector<1x256x64xf32> to vector<256x64xf32>
    %cst_159 = arith.constant dense<0.000000e+00> : vector<32x64xf32>
    %444 = tpu.matmul %441, %443, %cst_159 {dimension_numbers = #tpu.dot_dimension_numbers<[1], [0], [0], [1], [0, 0, 1, 1], [], []>} : vector<32x256xf32>, vector<256x64xf32>, vector<32x64xf32> -> vector<32x64xf32>
    %c1_160 = arith.constant 1 : index
    %c0_161 = arith.constant 0 : index
    %c0_162 = arith.constant 0 : index
    %445 = vector.load %arg13[%c1_160, %c0_161, %c0_162] : memref<2x1x64xf32, #tpu.memory_space<vmem>>, vector<1x1x64xf32>
    %446 = vector.shape_cast %445 : vector<1x1x64xf32> to vector<1x64xf32>
    %447 = vector.broadcast %446 : vector<1x64xf32> to vector<32x64xf32>
    %448 = arith.addf %444, %447 : vector<32x64xf32>
    %449 = arith.addf %432, %448 : vector<32x64xf32>
    %c1_163 = arith.constant 1 : index
    %c0_164 = arith.constant 0 : index
    %c0_165 = arith.constant 0 : index
    %450 = vector.load %arg14[%c1_163, %c0_164, %c0_165] : memref<2x1x64xf32, #tpu.memory_space<vmem>>, vector<1x1x64xf32>
    %451 = vector.shape_cast %450 : vector<1x1x64xf32> to vector<1x64xf32>
    %c1_166 = arith.constant 1 : index
    %c0_167 = arith.constant 0 : index
    %c0_168 = arith.constant 0 : index
    %452 = vector.load %arg15[%c1_166, %c0_167, %c0_168] : memref<2x1x64xf32, #tpu.memory_space<vmem>>, vector<1x1x64xf32>
    %453 = vector.shape_cast %452 : vector<1x1x64xf32> to vector<1x64xf32>
    %cst_169 = arith.constant dense<0.000000e+00> : vector<32xf32>
    %454 = vector.multi_reduction <add>, %449, %cst_169 [1] : vector<32x64xf32> to vector<32xf32>
    %455 = vector.shape_cast %454 : vector<32xf32> to vector<32x1xf32>
    %cst_170 = arith.constant 6.400000e+01 : f32
    %456 = vector.broadcast %cst_170 : f32 to vector<32x1xf32>
    %457 = arith.divf %455, %456 : vector<32x1xf32>
    %458 = vector.broadcast %457 : vector<32x1xf32> to vector<32x64xf32>
    %459 = arith.subf %449, %458 : vector<32x64xf32>
    %460 = arith.mulf %459, %459 : vector<32x64xf32>
    %cst_171 = arith.constant dense<0.000000e+00> : vector<32xf32>
    %461 = vector.multi_reduction <add>, %460, %cst_171 [1] : vector<32x64xf32> to vector<32xf32>
    %462 = vector.shape_cast %461 : vector<32xf32> to vector<32x1xf32>
    %cst_172 = arith.constant 6.400000e+01 : f32
    %463 = vector.broadcast %cst_172 : f32 to vector<32x1xf32>
    %464 = arith.divf %462, %463 : vector<32x1xf32>
    %cst_173 = arith.constant 9.99999974E-6 : f32
    %465 = vector.broadcast %cst_173 : f32 to vector<32x1xf32>
    %466 = arith.addf %464, %465 : vector<32x1xf32>
    %467 = math.rsqrt %466 : vector<32x1xf32>
    %468 = vector.broadcast %467 : vector<32x1xf32> to vector<32x64xf32>
    %469 = arith.mulf %459, %468 : vector<32x64xf32>
    %470 = vector.broadcast %451 : vector<1x64xf32> to vector<32x64xf32>
    %471 = arith.mulf %469, %470 : vector<32x64xf32>
    %472 = vector.broadcast %453 : vector<1x64xf32> to vector<32x64xf32>
    %473 = arith.addf %471, %472 : vector<32x64xf32>
    %c0_174 = arith.constant 0 : index
    %c0_175 = arith.constant 0 : index
    %474 = vector.load %arg16[%c0_174, %c0_175] : memref<1x64xf32, #tpu.memory_space<vmem>>, vector<1x64xf32>
    %c0_176 = arith.constant 0 : index
    %c0_177 = arith.constant 0 : index
    %475 = vector.load %arg17[%c0_176, %c0_177] : memref<1x64xf32, #tpu.memory_space<vmem>>, vector<1x64xf32>
    %cst_178 = arith.constant dense<0.000000e+00> : vector<32xf32>
    %476 = vector.multi_reduction <add>, %473, %cst_178 [1] : vector<32x64xf32> to vector<32xf32>
    %477 = vector.shape_cast %476 : vector<32xf32> to vector<32x1xf32>
    %cst_179 = arith.constant 6.400000e+01 : f32
    %478 = vector.broadcast %cst_179 : f32 to vector<32x1xf32>
    %479 = arith.divf %477, %478 : vector<32x1xf32>
    %480 = vector.broadcast %479 : vector<32x1xf32> to vector<32x64xf32>
    %481 = arith.subf %473, %480 : vector<32x64xf32>
    %482 = arith.mulf %481, %481 : vector<32x64xf32>
    %cst_180 = arith.constant dense<0.000000e+00> : vector<32xf32>
    %483 = vector.multi_reduction <add>, %482, %cst_180 [1] : vector<32x64xf32> to vector<32xf32>
    %484 = vector.shape_cast %483 : vector<32xf32> to vector<32x1xf32>
    %cst_181 = arith.constant 6.400000e+01 : f32
    %485 = vector.broadcast %cst_181 : f32 to vector<32x1xf32>
    %486 = arith.divf %484, %485 : vector<32x1xf32>
    %cst_182 = arith.constant 9.99999974E-6 : f32
    %487 = vector.broadcast %cst_182 : f32 to vector<32x1xf32>
    %488 = arith.addf %486, %487 : vector<32x1xf32>
    %489 = math.rsqrt %488 : vector<32x1xf32>
    %490 = vector.broadcast %489 : vector<32x1xf32> to vector<32x64xf32>
    %491 = arith.mulf %481, %490 : vector<32x64xf32>
    %492 = vector.broadcast %474 : vector<1x64xf32> to vector<32x64xf32>
    %493 = arith.mulf %491, %492 : vector<32x64xf32>
    %494 = vector.broadcast %475 : vector<1x64xf32> to vector<32x64xf32>
    %495 = arith.addf %493, %494 : vector<32x64xf32>
    %c0_183 = arith.constant 0 : index
    %c0_184 = arith.constant 0 : index
    %496 = vector.load %arg18[%c0_183, %c0_184] : memref<64x64xf32, #tpu.memory_space<vmem>>, vector<64x64xf32>
    %cst_185 = arith.constant dense<0.000000e+00> : vector<32x64xf32>
    %497 = tpu.matmul %495, %496, %cst_185 {dimension_numbers = #tpu.dot_dimension_numbers<[1], [0], [0], [1], [0, 0, 1, 1], [], []>} : vector<32x64xf32>, vector<64x64xf32>, vector<32x64xf32> -> vector<32x64xf32>
    %c0_186 = arith.constant 0 : index
    %c0_187 = arith.constant 0 : index
    %498 = vector.load %arg19[%c0_186, %c0_187] : memref<1x64xf32, #tpu.memory_space<vmem>>, vector<1x64xf32>
    %499 = vector.broadcast %498 : vector<1x64xf32> to vector<32x64xf32>
    %500 = arith.addf %497, %499 : vector<32x64xf32>
    %501 = vector.shape_cast %500 : vector<32x64xf32> to vector<2x16x64xf32>
    %c0_188 = arith.constant 0 : index
    %c0_189 = arith.constant 0 : index
    %c0_190 = arith.constant 0 : index
    %502 = vector.load %arg20[%c0_188, %c0_189, %c0_190] : memref<2x16x64xf32, #tpu.memory_space<vmem>>, vector<2x16x64xf32>
    tpu.vector_store %arg20[%c0_188, %c0_189, %c0_190], %501 {strides = array<i32>} : memref<2x16x64xf32, #tpu.memory_space<vmem>>, vector<2x16x64xf32>,
    return
  }
  func.func @transform_0(%arg0: i32) -> (i32, i32, i32) {
    %c0_i32 = arith.constant 0 : i32
    %c0_i32_0 = arith.constant 0 : i32
    %c0_i32_1 = arith.constant 0 : i32
    return %arg0, %c0_i32, %c0_i32_0 : i32, i32, i32
  }
  func.func @transform_1(%arg0: i32) -> (i32, i32, i32) {
    %c0_i32 = arith.constant 0 : i32
    %c0_i32_0 = arith.constant 0 : i32
    %c0_i32_1 = arith.constant 0 : i32
    return %arg0, %c0_i32, %c0_i32_0 : i32, i32, i32
  }
  func.func @transform_2(%arg0: i32) -> (i32, i32) {
    %c0_i32 = arith.constant 0 : i32
    %c0_i32_0 = arith.constant 0 : i32
    %c0_i32_1 = arith.constant 0 : i32
    return %c0_i32, %c0_i32_0 : i32, i32
  }
  func.func @transform_3(%arg0: i32) -> (i32, i32, i32) {
    %c0_i32 = arith.constant 0 : i32
    %c0_i32_0 = arith.constant 0 : i32
    %c0_i32_1 = arith.constant 0 : i32
    %c0_i32_2 = arith.constant 0 : i32
    return %c0_i32, %c0_i32_0, %c0_i32_1 : i32, i32, i32
  }
  func.func @transform_4(%arg0: i32) -> (i32, i32, i32) {
    %c0_i32 = arith.constant 0 : i32
    %c0_i32_0 = arith.constant 0 : i32
    %c0_i32_1 = arith.constant 0 : i32
    %c0_i32_2 = arith.constant 0 : i32
    return %c0_i32, %c0_i32_0, %c0_i32_1 : i32, i32, i32
  }
  func.func @transform_5(%arg0: i32) -> (i32, i32, i32) {
    %c0_i32 = arith.constant 0 : i32
    %c0_i32_0 = arith.constant 0 : i32
    %c0_i32_1 = arith.constant 0 : i32
    %c0_i32_2 = arith.constant 0 : i32
    return %c0_i32, %c0_i32_0, %c0_i32_1 : i32, i32, i32
  }
  func.func @transform_6(%arg0: i32) -> (i32, i32, i32) {
    %c0_i32 = arith.constant 0 : i32
    %c0_i32_0 = arith.constant 0 : i32
    %c0_i32_1 = arith.constant 0 : i32
    %c0_i32_2 = arith.constant 0 : i32
    return %c0_i32, %c0_i32_0, %c0_i32_1 : i32, i32, i32
  }
  func.func @transform_7(%arg0: i32) -> (i32, i32, i32) {
    %c0_i32 = arith.constant 0 : i32
    %c0_i32_0 = arith.constant 0 : i32
    %c0_i32_1 = arith.constant 0 : i32
    %c0_i32_2 = arith.constant 0 : i32
    return %c0_i32, %c0_i32_0, %c0_i32_1 : i32, i32, i32
  }
  func.func @transform_8(%arg0: i32) -> (i32, i32, i32) {
    %c0_i32 = arith.constant 0 : i32
    %c0_i32_0 = arith.constant 0 : i32
    %c0_i32_1 = arith.constant 0 : i32
    %c0_i32_2 = arith.constant 0 : i32
    return %c0_i32, %c0_i32_0, %c0_i32_1 : i32, i32, i32
  }
  func.func @transform_9(%arg0: i32) -> (i32, i32, i32) {
    %c0_i32 = arith.constant 0 : i32
    %c0_i32_0 = arith.constant 0 : i32
    %c0_i32_1 = arith.constant 0 : i32
    %c0_i32_2 = arith.constant 0 : i32
    return %c0_i32, %c0_i32_0, %c0_i32_1 : i32, i32, i32
  }
  func.func @transform_10(%arg0: i32) -> (i32, i32, i32) {
    %c0_i32 = arith.constant 0 : i32
    %c0_i32_0 = arith.constant 0 : i32
    %c0_i32_1 = arith.constant 0 : i32
    %c0_i32_2 = arith.constant 0 : i32
    return %c0_i32, %c0_i32_0, %c0_i32_1 : i32, i32, i32
  }
  func.func @transform_11(%arg0: i32) -> (i32, i32, i32) {
    %c0_i32 = arith.constant 0 : i32
    %c0_i32_0 = arith.constant 0 : i32
    %c0_i32_1 = arith.constant 0 : i32
    %c0_i32_2 = arith.constant 0 : i32
    return %c0_i32, %c0_i32_0, %c0_i32_1 : i32, i32, i32
  }
  func.func @transform_12(%arg0: i32) -> (i32, i32, i32) {
    %c0_i32 = arith.constant 0 : i32
    %c0_i32_0 = arith.constant 0 : i32
    %c0_i32_1 = arith.constant 0 : i32
    %c0_i32_2 = arith.constant 0 : i32
    return %c0_i32, %c0_i32_0, %c0_i32_1 : i32, i32, i32
  }
  func.func @transform_13(%arg0: i32) -> (i32, i32, i32) {
    %c0_i32 = arith.constant 0 : i32
    %c0_i32_0 = arith.constant 0 : i32
    %c0_i32_1 = arith.constant 0 : i32
    %c0_i32_2 = arith.constant 0 : i32
    return %c0_i32, %c0_i32_0, %c0_i32_1 : i32, i32, i32
  }
  func.func @transform_14(%arg0: i32) -> (i32, i32, i32) {
    %c0_i32 = arith.constant 0 : i32
    %c0_i32_0 = arith.constant 0 : i32
    %c0_i32_1 = arith.constant 0 : i32
    %c0_i32_2 = arith.constant 0 : i32
    return %c0_i32, %c0_i32_0, %c0_i32_1 : i32, i32, i32
  }
  func.func @transform_15(%arg0: i32) -> (i32, i32) {
    %c0_i32 = arith.constant 0 : i32
    %c0_i32_0 = arith.constant 0 : i32
    %c0_i32_1 = arith.constant 0 : i32
    return %c0_i32, %c0_i32_0 : i32, i32
  }
  func.func @transform_16(%arg0: i32) -> (i32, i32) {
    %c0_i32 = arith.constant 0 : i32
    %c0_i32_0 = arith.constant 0 : i32
    %c0_i32_1 = arith.constant 0 : i32
    return %c0_i32, %c0_i32_0 : i32, i32
  }
  func.func @transform_17(%arg0: i32) -> (i32, i32) {
    %c0_i32 = arith.constant 0 : i32
    %c0_i32_0 = arith.constant 0 : i32
    %c0_i32_1 = arith.constant 0 : i32
    return %c0_i32, %c0_i32_0 : i32, i32
  }
  func.func @transform_18(%arg0: i32) -> (i32, i32) {
    %c0_i32 = arith.constant 0 : i32
    %c0_i32_0 = arith.constant 0 : i32
    %c0_i32_1 = arith.constant 0 : i32
    return %c0_i32, %c0_i32_0 : i32, i32
  }
  func.func @transform_19(%arg0: i32) -> (i32, i32, i32) {
    %c0_i32 = arith.constant 0 : i32
    %c0_i32_0 = arith.constant 0 : i32
    %c0_i32_1 = arith.constant 0 : i32
    return %arg0, %c0_i32, %c0_i32_0 : i32, i32, i32
  }
}

</mosaic_0001>

<llo_original>
// kernel: tpu_custom_call.1
$region0: #{tpu_custom_call.1}
  #allocation0 [shape = 'u32[]', space=smem, size = 0x4, offset = 0x4, fixed_abs, tag = 'smem constant byte address 0x4 - core index']
  #allocation1 [shape = 'u32[144,128]{1,0:T(1,128)}', space=vmem, size = 0x12000, scoped, tag = 'internal scratch']
  %s0 = inlined_call_operand.vmem [shape: f32[2,16,64], index: 0, kind: input, shape index: {}]
  %s1 = inlined_call_operand.vmem [shape: f32[2,1,16], index: 1, kind: input, shape index: {}]
  %s2 = inlined_call_operand.vmem [shape: f32[16,64], index: 2, kind: input, shape index: {}]
  %s3 = inlined_call_operand.vmem [shape: f32[2,64,192], index: 3, kind: input, shape index: {}]
  %s4 = inlined_call_operand.vmem [shape: f32[2,1,192], index: 4, kind: input, shape index: {}]
  %s5 = inlined_call_operand.vmem [shape: f32[2,64,64], index: 5, kind: input, shape index: {}]
  %s6 = inlined_call_operand.vmem [shape: f32[2,1,64], index: 6, kind: input, shape index: {}]
  %s7 = inlined_call_operand.vmem [shape: f32[2,1,64], index: 7, kind: input, shape index: {}]
  %s8 = inlined_call_operand.vmem [shape: f32[2,1,64], index: 8, kind: input, shape index: {}]
  %s9 = inlined_call_operand.vmem [shape: f32[2,64,256], index: 9, kind: input, shape index: {}]
  %s10 = inlined_call_operand.vmem [shape: f32[2,1,256], index: 10, kind: input, shape index: {}]
  %s11 = inlined_call_operand.vmem [shape: f32[2,256,64], index: 11, kind: input, shape index: {}]
  %s12 = inlined_call_operand.vmem [shape: f32[2,1,64], index: 12, kind: input, shape index: {}]
  %s13 = inlined_call_operand.vmem [shape: f32[2,1,64], index: 13, kind: input, shape index: {}]
  %s14 = inlined_call_operand.vmem [shape: f32[2,1,64], index: 14, kind: input, shape index: {}]
  %s15 = inlined_call_operand.vmem [shape: f32[1,64], index: 15, kind: input, shape index: {}]
  %s16 = inlined_call_operand.vmem [shape: f32[1,64], index: 16, kind: input, shape index: {}]
  %s17 = inlined_call_operand.vmem [shape: f32[64,64], index: 17, kind: input, shape index: {}]
  %s18 = inlined_call_operand.vmem [shape: f32[1,64], index: 18, kind: input, shape index: {}]
  %s19 = inlined_call_operand.hbm [shape: f32[2,16,64], index: 19, kind: output, shape index: {}]
  %s20 = sld [smem:[#allocation0]]
  $region86: #{tpu_custom_call.1} parent=0
    _
  %s22 = ssub.s32 1, %s20
  %s23 = scalar_select 0, %s22, %s20
  $region1: #{tpu_custom_call.1} parent=0
    #allocation2 [shape = 'u8[16384]{0}', space=vmem, size = 0x4000, scoped, tag = 'output window, operand 0, single buffered']
    #allocation3 [shape = 's32[1]{0}', space=sflag, size = 0x4, scoped, tag = 'scoped memory for tpu_custom_call.1']
    %24 = vsyncpa [#allocation3], 0
    // Predicated region
    $region2: #{tpu_custom_call.1} parent=1 // pred_check
      _
    $region3: #{tpu_custom_call.1} parent=1 // pred_check_branch
      %26 = sbr.rel (0) target = $region5
    $region4: #{tpu_custom_call.1} parent=1 // pred_region
      _
    $region5: #{tpu_custom_call.1} parent=1 // pred_fallthru
      _
    // Predicated region
    $region6: #{tpu_custom_call.1} parent=1 // pred_check
      _
    $region7: #{tpu_custom_call.1} parent=1 // pred_check_branch
      %28 = sbr.rel (0) target = $region9
    $region8: #{tpu_custom_call.1} parent=1 // pred_region
      _
    $region9: #{tpu_custom_call.1} parent=1 // pred_fallthru
      _
    // Predicated region
    $region10: #{tpu_custom_call.1} parent=1 // pred_check
      _
    $region11: #{tpu_custom_call.1} parent=1 // pred_check_branch
      %30 = sbr.rel (0) target = $region13
    $region12: #{tpu_custom_call.1} parent=1 // pred_region
      _
    $region13: #{tpu_custom_call.1} parent=1 // pred_fallthru
      _
    // Predicated region
    $region14: #{tpu_custom_call.1} parent=1 // pred_check
      _
    $region15: #{tpu_custom_call.1} parent=1 // pred_check_branch
      %32 = sbr.rel (0) target = $region17
    $region16: #{tpu_custom_call.1} parent=1 // pred_region
      _
    $region17: #{tpu_custom_call.1} parent=1 // pred_fallthru
      _
    // Predicated region
    $region18: #{tpu_custom_call.1} parent=1 // pred_check
      _
    $region19: #{tpu_custom_call.1} parent=1 // pred_check_branch
      %34 = sbr.rel (0) target = $region21
    $region20: #{tpu_custom_call.1} parent=1 // pred_region
      _
    $region21: #{tpu_custom_call.1} parent=1 // pred_fallthru
      _
    // Predicated region
    $region22: #{tpu_custom_call.1} parent=1 // pred_check
      _
    $region23: #{tpu_custom_call.1} parent=1 // pred_check_branch
      %36 = sbr.rel (0) target = $region25
    $region24: #{tpu_custom_call.1} parent=1 // pred_region
      _
    $region25: #{tpu_custom_call.1} parent=1 // pred_fallthru
      _
    // Predicated region
    $region26: #{tpu_custom_call.1} parent=1 // pred_check
      _
    $region27: #{tpu_custom_call.1} parent=1 // pred_check_branch
      %38 = sbr.rel (0) target = $region29
    $region28: #{tpu_custom_call.1} parent=1 // pred_region
      _
    $region29: #{tpu_custom_call.1} parent=1 // pred_fallthru
      _
    // Predicated region
    $region30: #{tpu_custom_call.1} parent=1 // pred_check
      _
    $region31: #{tpu_custom_call.1} parent=1 // pred_check_branch
      %40 = sbr.rel (0) target = $region33
    $region32: #{tpu_custom_call.1} parent=1 // pred_region
      _
    $region33: #{tpu_custom_call.1} parent=1 // pred_fallthru
      _
    // Predicated region
    $region34: #{tpu_custom_call.1} parent=1 // pred_check
      _
    $region35: #{tpu_custom_call.1} parent=1 // pred_check_branch
      %42 = sbr.rel (0) target = $region37
    $region36: #{tpu_custom_call.1} parent=1 // pred_region
      _
    $region37: #{tpu_custom_call.1} parent=1 // pred_fallthru
      _
    // Predicated region
    $region38: #{tpu_custom_call.1} parent=1 // pred_check
      _
    $region39: #{tpu_custom_call.1} parent=1 // pred_check_branch
      %44 = sbr.rel (0) target = $region41
    $region40: #{tpu_custom_call.1} parent=1 // pred_region
      _
    $region41: #{tpu_custom_call.1} parent=1 // pred_fallthru
      _
    // Predicated region
    $region42: #{tpu_custom_call.1} parent=1 // pred_check
      _
    $region43: #{tpu_custom_call.1} parent=1 // pred_check_branch
      %46 = sbr.rel (0) target = $region45
    $region44: #{tpu_custom_call.1} parent=1 // pred_region
      _
    $region45: #{tpu_custom_call.1} parent=1 // pred_fallthru
      _
    // Predicated region
    $region46: #{tpu_custom_call.1} parent=1 // pred_check
      _
    $region47: #{tpu_custom_call.1} parent=1 // pred_check_branch
      %48 = sbr.rel (0) target = $region49
    $region48: #{tpu_custom_call.1} parent=1 // pred_region
      _
    $region49: #{tpu_custom_call.1} parent=1 // pred_fallthru
      _
    // Predicated region
    $region50: #{tpu_custom_call.1} parent=1 // pred_check
      _
    $region51: #{tpu_custom_call.1} parent=1 // pred_check_branch
      %50 = sbr.rel (0) target = $region53
    $region52: #{tpu_custom_call.1} parent=1 // pred_region
      _
    $region53: #{tpu_custom_call.1} parent=1 // pred_fallthru
      _
    // Predicated region
    $region54: #{tpu_custom_call.1} parent=1 // pred_check
      _
    $region55: #{tpu_custom_call.1} parent=1 // pred_check_branch
      %52 = sbr.rel (0) target = $region57
    $region56: #{tpu_custom_call.1} parent=1 // pred_region
      _
    $region57: #{tpu_custom_call.1} parent=1 // pred_fallthru
      _
    // Predicated region
    $region58: #{tpu_custom_call.1} parent=1 // pred_check
      _
    $region59: #{tpu_custom_call.1} parent=1 // pred_check_branch
      %54 = sbr.rel (0) target = $region61
    $region60: #{tpu_custom_call.1} parent=1 // pred_region
      _
    $region61: #{tpu_custom_call.1} parent=1 // pred_fallthru
      _
    // Predicated region
    $region62: #{tpu_custom_call.1} parent=1 // pred_check
      _
    $region63: #{tpu_custom_call.1} parent=1 // pred_check_branch
      %56 = sbr.rel (0) target = $region65
    $region64: #{tpu_custom_call.1} parent=1 // pred_region
      _
    $region65: #{tpu_custom_call.1} parent=1 // pred_fallthru
      _
    // Predicated region
    $region66: #{tpu_custom_call.1} parent=1 // pred_check
      _
    $region67: #{tpu_custom_call.1} parent=1 // pred_check_branch
      %58 = sbr.rel (0) target = $region69
    $region68: #{tpu_custom_call.1} parent=1 // pred_region
      _
    $region69: #{tpu_custom_call.1} parent=1 // pred_fallthru
      _
    // Predicated region
    $region70: #{tpu_custom_call.1} parent=1 // pred_check
      _
    $region71: #{tpu_custom_call.1} parent=1 // pred_check_branch
      %60 = sbr.rel (0) target = $region73
    $region72: #{tpu_custom_call.1} parent=1 // pred_region
      _
    $region73: #{tpu_custom_call.1} parent=1 // pred_fallthru
      _
    // Predicated region
    $region74: #{tpu_custom_call.1} parent=1 // pred_check
      _
    $region75: #{tpu_custom_call.1} parent=1 // pred_check_branch
      %62 = sbr.rel (0) target = $region77
    $region76: #{tpu_custom_call.1} parent=1 // pred_region
      _
    $region77: #{tpu_custom_call.1} parent=1 // pred_fallthru
      _
    %v63 = vld [vmem:[%s0] sm:$0xff]
    %v64 = vld [vmem:[%s0 + $0x8] sm:$0xff]
    %v65 = vld [vmem:[%s0 + $0x10] sm:$0xff]
    %v66 = vld [vmem:[%s0 + $0x18] sm:$0xff]
    %v67 = vld [vmem:[%s2] sm:$0xff]
    %v68 = vld [vmem:[%s2 + $0x8] sm:$0xff]
    %v69 = vadd.f32 %v63, %v67
    %v70 = vadd.f32 %v64, %v68
    %v71 = vadd.f32 %v65, %v67
    %v72 = vadd.f32 %v66, %v68
    %v73 = vld [vmem:[%s1] sm:$0x1]
    %v74 = vld [vmem:[%s1 + $0x1] sm:$0x1]
    %vm75 = vcmp.gt.f32.partialorder %v73, 0.0
    %vm76 = vcmp.gt.f32.partialorder %v74, 0.0
    %v77 = vsel %vm75, 0.0, -1e+30
    %v78 = vsel %vm76, 0.0, -1e+30
    %v79 = vld [vmem:[%s3] sm:$0xff]
    %v80 = vld [vmem:[%s3 + $0x8] sm:$0xff]
    %v81 = vld [vmem:[%s3 + $0x10] sm:$0xff]
    %v82 = vld [vmem:[%s3 + $0x18] sm:$0xff]
    %v83 = vld [vmem:[%s3 + $0x20] sm:$0xff]
    %v84 = vld [vmem:[%s3 + $0x28] sm:$0xff]
    %v85 = vld [vmem:[%s3 + $0x30] sm:$0xff]
    %v86 = vld [vmem:[%s3 + $0x38] sm:$0xff]
    %v87 = vld [vmem:[%s3 + $0x40] sm:$0xff]
    %v88 = vld [vmem:[%s3 + $0x48] sm:$0xff]
    %v89 = vld [vmem:[%s3 + $0x50] sm:$0xff]
    %v90 = vld [vmem:[%s3 + $0x58] sm:$0xff]
    %v91 = vld [vmem:[%s3 + $0x60] sm:$0xff]
    %v92 = vld [vmem:[%s3 + $0x68] sm:$0xff]
    %v93 = vld [vmem:[%s3 + $0x70] sm:$0xff]
    %v94 = vld [vmem:[%s3 + $0x78] sm:$0xff]
    %v95 = vld [vmem:[%s4] sm:$0x3]
    %v97 = vlaneseq
    %v98 = vshrl.u32 %v97, 7
    %v99 = vsub.s32 0, %v98
    %v100 = vrot.slane %v95, %v99
    %v101 = vlaneseq
    %v102 = vshrl.u32 %v101, 7
    %v103 = vsub.s32 1, %v102
    %v104 = vrot.slane %v95, %v103
    %vm107 = vcmask 523264
    %v109 = vsel %vm107, %v69, 0
    %v112 = vsel %vm107, %v70, 0
    %v115 = vsel %vm107, %v71, 0
    %v118 = vsel %vm107, %v72, 0
    %120 = vmatprep.subr.mxu0 %v80
    %121 = vmatpush1.msra.mxu0 %v79
    %122 = vmatprep.subr.mxu0 %v82
    %123 = vmatpush1.msra.mxu0 %v81
    %124 = vmatprep.subr.mxu0 %v84
    %125 = vmatpush1.msra.mxu0 %v83
    %126 = vmatprep.subr.mxu0 %v86
    %127 = vmatpush1.msra.mxu0 %v85
    %128 = vmatprep.subr.mxu0 %v88
    %129 = vmatpush1.msra.mxu0 %v87
    %130 = vmatprep.subr.mxu0 %v90
    %131 = vmatpush1.msra.mxu0 %v89
    %132 = vmatprep.subr.mxu0 %v92
    %133 = vmatpush1.msra.mxu0 %v91
    %134 = vmatprep.subr.mxu0 %v94
    %135 = vmatpush1.msra.mxu0 %v93
    %136 = vmatprep.subr.mxu0 0.0
    %137 = vmatpush1.msra.mxu0 0.0
    %138 = vmatprep.subr.mxu0 0.0
    %139 = vmatpush1.msra.mxu0 0.0
    %140 = vmatprep.subr.mxu0 0.0
    %141 = vmatpush1.msra.mxu0 0.0
    %142 = vmatprep.subr.mxu0 0.0
    %143 = vmatpush1.msra.mxu0 0.0
    %144 = vmatprep.subr.mxu0 0.0
    %145 = vmatpush1.msra.mxu0 0.0
    %146 = vmatprep.subr.mxu0 0.0
    %147 = vmatpush1.msra.mxu0 0.0
    %148 = vmatprep.subr.mxu0 0.0
    %149 = vmatpush1.msra.mxu0 0.0
    %150 = vmatprep.subr.mxu0 0.0
    %151 = vmatpush1.msra.mxu0 0.0
    %152 = vmatprep.subr.mxu0 0.0
    %153 = vmatpush1.msra.mxu0 0.0
    %154 = vmatprep.subr.mxu0 0.0
    %155 = vmatpush1.msra.mxu0 0.0
    %156 = vmatprep.subr.mxu0 0.0
    %157 = vmatpush1.msra.mxu0 0.0
    %158 = vmatprep.subr.mxu0 0.0
    %159 = vmatpush1.msra.mxu0 0.0
    %160 = vmatprep.subr.mxu0 0.0
    %161 = vmatpush1.msra.mxu0 0.0
    %162 = vmatprep.subr.mxu0 0.0
    %163 = vmatpush1.msra.mxu0 0.0
    %164 = vmatprep.subr.mxu0 0.0
    %165 = vmatpush1.msra.mxu0 0.0
    %166 = vmatprep.subr.mxu0 0.0
    %167 = vmatpush1.msra.mxu0 0.0
    %168 = vmatprep.subr.mxu0 0.0
    %169 = vmatpush1.msra.mxu0 0.0
    %170 = vmatprep.subr.mxu0 0.0
    %171 = vmatpush1.msra.mxu0 0.0
    %172 = vmatprep.subr.mxu0 0.0
    %173 = vmatpush1.msra.mxu0 0.0
    %174 = vmatprep.subr.mxu0 0.0
    %175 = vmatpush1.msra.mxu0 0.0
    %176 = vmatprep.subr.mxu0 0.0
    %177 = vmatpush1.msra.mxu0 0.0
    %178 = vmatprep.subr.mxu0 0.0
    %179 = vmatpush1.msra.mxu0 0.0
    %180 = vmatprep.subr.mxu0 0.0
    %181 = vmatpush1.msra.mxu0 0.0
    %182 = vmatprep.subr.mxu0 0.0
    %183 = vmatpush1.msra.mxu0 0.0
    %184 = vmatprep.mubr.f32.mxu0 0.0
    %185 = vmatmul.mubr.f32.gmra.mrb[0].mxu0 %v109
    %v186 = vpop.f32.mrb[0].mxu0
    %v187 = vadd.f32 %v100, %v186
    %v188 = vpop.f32.mrb[0].mxu0
    %v189 = vadd.f32 %v104, %v188
    %190 = vmatprep.mubr.f32.mxu0 0.0
    %191 = vmatmul.mubr.f32.gmra.mrb[0].mxu0 %v112
    %v192 = vpop.f32.mrb[0].mxu0
    %v193 = vadd.f32 %v100, %v192
    %v194 = vpop.f32.mrb[0].mxu0
    %v195 = vadd.f32 %v104, %v194
    %196 = vmatprep.mubr.f32.mxu0 0.0
    %197 = vmatmul.mubr.f32.gmra.mrb[0].mxu0 %v115
    %v198 = vpop.f32.mrb[0].mxu0
    %v199 = vadd.f32 %v100, %v198
    %v200 = vpop.f32.mrb[0].mxu0
    %v201 = vadd.f32 %v104, %v200
    %202 = vmatprep.mubr.f32.mxu0 0.0
    %203 = vmatmul.mubr.f32.gmra.mrb[0].mxu0 %v118
    %v204 = vpop.f32.mrb[0].mxu0
    %v205 = vadd.f32 %v100, %v204
    %v206 = vpop.f32.mrb[0].mxu0
    %v207 = vadd.f32 %v104, %v206
    %208 = vdwg.mxu0
    %v210 = vlaneseq
    %v211 = vshrl.u32 %v210, 7
    %v212 = vsub.s32 0, %v211
    %v213 = vrot.slane %v77, %v212
    %217 = vrot.lane.b32.xlu0 %v187, 64
    %v218 = vpop.permute.xlu0 %217
    %219 = vrot.lane.b32.xlu0 %v193, 64
    %v220 = vpop.permute.xlu0 %219
    %vm221 = vcmask 130048
    %v222 = vsel %vm221, %v187, 0
    %v224 = vsel %vm221, %v193, 0
    %v226 = vsel %vm221, %v218, 0
    %v228 = vsel %vm221, %v220, 0
    %230 = vmatprep.subr.mxu0 0.0
    %231 = vmatpush1.xpose.msra.mxu0 %v226
    %232 = vmatprep.subr.mxu0 0.0
    %233 = vmatpush1.xpose.msra.mxu0 %v228
    %234 = vmatprep.subr.mxu0 0.0
    %235 = vmatpush1.xpose.msra.mxu0 0.0
    %236 = vmatprep.subr.mxu0 0.0
    %237 = vmatpush1.xpose.msra.mxu0 0.0
    %238 = vmatprep.subr.mxu0 0.0
    %239 = vmatpush1.xpose.msra.mxu0 0.0
    %240 = vmatprep.subr.mxu0 0.0
    %241 = vmatpush1.xpose.msra.mxu0 0.0
    %242 = vmatprep.subr.mxu0 0.0
    %243 = vmatpush1.xpose.msra.mxu0 0.0
    %244 = vmatprep.subr.mxu0 0.0
    %245 = vmatpush1.xpose.msra.mxu0 0.0
    %246 = vmatprep.subr.mxu0 0.0
    %247 = vmatpush1.xpose.msra.mxu0 0.0
    %248 = vmatprep.subr.mxu0 0.0
    %249 = vmatpush1.xpose.msra.mxu0 0.0
    %250 = vmatprep.subr.mxu0 0.0
    %251 = vmatpush1.xpose.msra.mxu0 0.0
    %252 = vmatprep.subr.mxu0 0.0
    %253 = vmatpush1.xpose.msra.mxu0 0.0
    %254 = vmatprep.subr.mxu0 0.0
    %255 = vmatpush1.xpose.msra.mxu0 0.0
    %256 = vmatprep.subr.mxu0 0.0
    %257 = vmatpush1.xpose.msra.mxu0 0.0
    %258 = vmatprep.subr.mxu0 0.0
    %259 = vmatpush1.xpose.msra.mxu0 0.0
    %260 = vmatprep.subr.mxu0 0.0
    %261 = vmatpush1.xpose.msra.mxu0 0.0
    %262 = vmatprep.subr.mxu0 0.0
    %263 = vmatpush1.xpose.msra.mxu0 0.0
    %264 = vmatprep.subr.mxu0 0.0
    %265 = vmatpush1.xpose.msra.mxu0 0.0
    %266 = vmatprep.subr.mxu0 0.0
    %267 = vmatpush1.xpose.msra.mxu0 0.0
    %268 = vmatprep.subr.mxu0 0.0
    %269 = vmatpush1.xpose.msra.mxu0 0.0
    %270 = vmatprep.subr.mxu0 0.0
    %271 = vmatpush1.xpose.msra.mxu0 0.0
    %272 = vmatprep.subr.mxu0 0.0
    %273 = vmatpush1.xpose.msra.mxu0 0.0
    %274 = vmatprep.subr.mxu0 0.0
    %275 = vmatpush1.xpose.msra.mxu0 0.0
    %276 = vmatprep.subr.mxu0 0.0
    %277 = vmatpush1.xpose.msra.mxu0 0.0
    %278 = vmatprep.subr.mxu0 0.0
    %279 = vmatpush1.xpose.msra.mxu0 0.0
    %280 = vmatprep.subr.mxu0 0.0
    %281 = vmatpush1.xpose.msra.mxu0 0.0
    %282 = vmatprep.subr.mxu0 0.0
    %283 = vmatpush1.xpose.msra.mxu0 0.0
    %284 = vmatprep.subr.mxu0 0.0
    %285 = vmatpush1.xpose.msra.mxu0 0.0
    %286 = vmatprep.subr.mxu0 0.0
    %287 = vmatpush1.xpose.msra.mxu0 0.0
    %288 = vmatprep.subr.mxu0 0.0
    %289 = vmatpush1.xpose.msra.mxu0 0.0
    %290 = vmatprep.subr.mxu0 0.0
    %291 = vmatpush1.xpose.msra.mxu0 0.0
    %292 = vmatprep.subr.mxu0 0.0
    %293 = vmatpush1.xpose.msra.mxu0 0.0
    %294 = vmatprep.mubr.f32.mxu0 0.0
    %295 = vmatmul.mubr.f32.gmra.mrb[0].mxu0 %v222
    %v296 = vpop.f32.mrb[0].mxu0
    %v297 = vadd.f32 %v213, %v296
    %v298 = vpop.f32.mrb[0].mxu0
    %299 = vmatprep.mubr.f32.mxu0 0.0
    %300 = vmatmul.mubr.f32.gmra.mrb[0].mxu0 %v224
    %v301 = vpop.f32.mrb[0].mxu0
    %v302 = vadd.f32 %v213, %v301
    %v303 = vpop.f32.mrb[0].mxu0
    %304 = vdwg.mxu0
    %v305 = vsel %vm221, %v297, -inf
    %306 = vmax.xlane.f32.xlu0 %v305
    %v307 = vpop.xlane.xlu0 %306
    %v308 = vsel %vm221, %v302, -inf
    %309 = vmax.xlane.f32.xlu0 %v308
    %v310 = vpop.xlane.xlu0 %309
    %v311 = vsub.f32 %v297, %v307
    %v312 = vsub.f32 %v302, %v310
    %v313 = vmul.f32 %v311, 1.442695
    %v314 = vpow.pop %v313
    %v315 = vmul.f32 %v312, 1.442695
    %v316 = vpow.pop %v315
    %v317 = vsel %vm221, %v314, 0.0
    %318 = vadd.xlane.f32.xlu0 %v317
    %v319 = vpop.xlane.xlu0 %318
    %v320 = vsel %vm221, %v316, 0.0
    %321 = vadd.xlane.f32.xlu0 %v320
    %v322 = vpop.xlane.xlu0 %321
    %v323 = vrcp.pop %v319
    %v324 = vrcp.pop %v322
    %v325 = vmul.f32 %v314, %v323
    %v326 = vmul.f32 %v316, %v324
    %v328 = vsel %vm221, %v325, 0
    %v331 = vsel %vm221, %v326, 0
    %333 = vmatprep.subr.mxu0 0.0
    %334 = vmatpush1.msra.mxu0 %v189
    %335 = vmatprep.subr.mxu0 0.0
    %336 = vmatpush1.msra.mxu0 %v195
    %337 = vmatprep.subr.mxu0 0.0
    %338 = vmatpush1.msra.mxu0 0.0
    %339 = vmatprep.subr.mxu0 0.0
    %340 = vmatpush1.msra.mxu0 0.0
    %341 = vmatprep.subr.mxu0 0.0
    %342 = vmatpush1.msra.mxu0 0.0
    %343 = vmatprep.subr.mxu0 0.0
    %344 = vmatpush1.msra.mxu0 0.0
    %345 = vmatprep.subr.mxu0 0.0
    %346 = vmatpush1.msra.mxu0 0.0
    %347 = vmatprep.subr.mxu0 0.0
    %348 = vmatpush1.msra.mxu0 0.0
    %349 = vmatprep.subr.mxu0 0.0
    %350 = vmatpush1.msra.mxu0 0.0
    %351 = vmatprep.subr.mxu0 0.0
    %352 = vmatpush1.msra.mxu0 0.0
    %353 = vmatprep.subr.mxu0 0.0
    %354 = vmatpush1.msra.mxu0 0.0
    %355 = vmatprep.subr.mxu0 0.0
    %356 = vmatpush1.msra.mxu0 0.0
    %357 = vmatprep.subr.mxu0 0.0
    %358 = vmatpush1.msra.mxu0 0.0
    %359 = vmatprep.subr.mxu0 0.0
    %360 = vmatpush1.msra.mxu0 0.0
    %361 = vmatprep.subr.mxu0 0.0
    %362 = vmatpush1.msra.mxu0 0.0
    %363 = vmatprep.subr.mxu0 0.0
    %364 = vmatpush1.msra.mxu0 0.0
    %365 = vmatprep.subr.mxu0 0.0
    %366 = vmatpush1.msra.mxu0 0.0
    %367 = vmatprep.subr.mxu0 0.0
    %368 = vmatpush1.msra.mxu0 0.0
    %369 = vmatprep.subr.mxu0 0.0
    %370 = vmatpush1.msra.mxu0 0.0
    %371 = vmatprep.subr.mxu0 0.0
    %372 = vmatpush1.msra.mxu0 0.0
    %373 = vmatprep.subr.mxu0 0.0
    %374 = vmatpush1.msra.mxu0 0.0
    %375 = vmatprep.subr.mxu0 0.0
    %376 = vmatpush1.msra.mxu0 0.0
    %377 = vmatprep.subr.mxu0 0.0
    %378 = vmatpush1.msra.mxu0 0.0
    %379 = vmatprep.subr.mxu0 0.0
    %380 = vmatpush1.msra.mxu0 0.0
    %381 = vmatprep.subr.mxu0 0.0
    %382 = vmatpush1.msra.mxu0 0.0
    %383 = vmatprep.subr.mxu0 0.0
    %384 = vmatpush1.msra.mxu0 0.0
    %385 = vmatprep.subr.mxu0 0.0
    %386 = vmatpush1.msra.mxu0 0.0
    %387 = vmatprep.subr.mxu0 0.0
    %388 = vmatpush1.msra.mxu0 0.0
    %389 = vmatprep.subr.mxu0 0.0
    %390 = vmatpush1.msra.mxu0 0.0
    %391 = vmatprep.subr.mxu0 0.0
    %392 = vmatpush1.msra.mxu0 0.0
    %393 = vmatprep.subr.mxu0 0.0
    %394 = vmatpush1.msra.mxu0 0.0
    %395 = vmatprep.subr.mxu0 0.0
    %396 = vmatpush1.msra.mxu0 0.0
    %397 = vmatprep.mubr.f32.mxu0 0.0
    %398 = vmatmul.mubr.f32.gmra.mrb[0].mxu0 %v328
    %v399 = vpop.f32.mrb[0].mxu0
    %v400 = vadd.f32 0.0, %v399
    %v401 = vpop.f32.mrb[0].mxu0
    %402 = vmatprep.mubr.f32.mxu0 0.0
    %403 = vmatmul.mubr.f32.gmra.mrb[0].mxu0 %v331
    %v404 = vpop.f32.mrb[0].mxu0
    %v405 = vadd.f32 0.0, %v404
    %v406 = vpop.f32.mrb[0].mxu0
    %407 = vdwg.mxu0
    %408 = vrot.lane.b32.xlu0 %v187, 112
    %v409 = vpop.permute.xlu0 %408
    %410 = vrot.lane.b32.xlu0 %v193, 112
    %v411 = vpop.permute.xlu0 %410
    %412 = vrot.lane.b32.xlu0 %v187, 48
    %v413 = vpop.permute.xlu0 %412
    %414 = vrot.lane.b32.xlu0 %v193, 48
    %v415 = vpop.permute.xlu0 %414
    %v416 = vsel %vm221, %v409, 0
    %v418 = vsel %vm221, %v411, 0
    %v420 = vsel %vm221, %v413, 0
    %v422 = vsel %vm221, %v415, 0
    %424 = vmatprep.subr.mxu0 0.0
    %425 = vmatpush1.xpose.msra.mxu0 %v420
    %426 = vmatprep.subr.mxu0 0.0
    %427 = vmatpush1.xpose.msra.mxu0 %v422
    %428 = vmatprep.subr.mxu0 0.0
    %429 = vmatpush1.xpose.msra.mxu0 0.0
    %430 = vmatprep.subr.mxu0 0.0
    %431 = vmatpush1.xpose.msra.mxu0 0.0
    %432 = vmatprep.subr.mxu0 0.0
    %433 = vmatpush1.xpose.msra.mxu0 0.0
    %434 = vmatprep.subr.mxu0 0.0
    %435 = vmatpush1.xpose.msra.mxu0 0.0
    %436 = vmatprep.subr.mxu0 0.0
    %437 = vmatpush1.xpose.msra.mxu0 0.0
    %438 = vmatprep.subr.mxu0 0.0
    %439 = vmatpush1.xpose.msra.mxu0 0.0
    %440 = vmatprep.subr.mxu0 0.0
    %441 = vmatpush1.xpose.msra.mxu0 0.0
    %442 = vmatprep.subr.mxu0 0.0
    %443 = vmatpush1.xpose.msra.mxu0 0.0
    %444 = vmatprep.subr.mxu0 0.0
    %445 = vmatpush1.xpose.msra.mxu0 0.0
    %446 = vmatprep.subr.mxu0 0.0
    %447 = vmatpush1.xpose.msra.mxu0 0.0
    %448 = vmatprep.subr.mxu0 0.0
    %449 = vmatpush1.xpose.msra.mxu0 0.0
    %450 = vmatprep.subr.mxu0 0.0
    %451 = vmatpush1.xpose.msra.mxu0 0.0
    %452 = vmatprep.subr.mxu0 0.0
    %453 = vmatpush1.xpose.msra.mxu0 0.0
    %454 = vmatprep.subr.mxu0 0.0
    %455 = vmatpush1.xpose.msra.mxu0 0.0
    %456 = vmatprep.subr.mxu0 0.0
    %457 = vmatpush1.xpose.msra.mxu0 0.0
    %458 = vmatprep.subr.mxu0 0.0
    %459 = vmatpush1.xpose.msra.mxu0 0.0
    %460 = vmatprep.subr.mxu0 0.0
    %461 = vmatpush1.xpose.msra.mxu0 0.0
    %462 = vmatprep.subr.mxu0 0.0
    %463 = vmatpush1.xpose.msra.mxu0 0.0
    %464 = vmatprep.subr.mxu0 0.0
    %465 = vmatpush1.xpose.msra.mxu0 0.0
    %466 = vmatprep.subr.mxu0 0.0
    %467 = vmatpush1.xpose.msra.mxu0 0.0
    %468 = vmatprep.subr.mxu0 0.0
    %469 = vmatpush1.xpose.msra.mxu0 0.0
    %470 = vmatprep.subr.mxu0 0.0
    %471 = vmatpush1.xpose.msra.mxu0 0.0
    %472 = vmatprep.subr.mxu0 0.0
    %473 = vmatpush1.xpose.msra.mxu0 0.0
    %474 = vmatprep.subr.mxu0 0.0
    %475 = vmatpush1.xpose.msra.mxu0 0.0
    %476 = vmatprep.subr.mxu0 0.0
    %477 = vmatpush1.xpose.msra.mxu0 0.0
    %478 = vmatprep.subr.mxu0 0.0
    %479 = vmatpush1.xpose.msra.mxu0 0.0
    %480 = vmatprep.subr.mxu0 0.0
    %481 = vmatpush1.xpose.msra.mxu0 0.0
    %482 = vmatprep.subr.mxu0 0.0
    %483 = vmatpush1.xpose.msra.mxu0 0.0
    %484 = vmatprep.subr.mxu0 0.0
    %485 = vmatpush1.xpose.msra.mxu0 0.0
    %486 = vmatprep.subr.mxu0 0.0
    %487 = vmatpush1.xpose.msra.mxu0 0.0
    %488 = vmatprep.mubr.f32.mxu0 0.0
    %489 = vmatmul.mubr.f32.gmra.mrb[0].mxu0 %v416
    %v490 = vpop.f32.mrb[0].mxu0
    %v491 = vadd.f32 %v213, %v490
    %v492 = vpop.f32.mrb[0].mxu0
    %493 = vmatprep.mubr.f32.mxu0 0.0
    %494 = vmatmul.mubr.f32.gmra.mrb[0].mxu0 %v418
    %v495 = vpop.f32.mrb[0].mxu0
    %v496 = vadd.f32 %v213, %v495
    %v497 = vpop.f32.mrb[0].mxu0
    %498 = vdwg.mxu0
    %v499 = vsel %vm221, %v491, -inf
    %500 = vmax.xlane.f32.xlu0 %v499
    %v501 = vpop.xlane.xlu0 %500
    %v502 = vsel %vm221, %v496, -inf
    %503 = vmax.xlane.f32.xlu0 %v502
    %v504 = vpop.xlane.xlu0 %503
    %v505 = vsub.f32 %v491, %v501
    %v506 = vsub.f32 %v496, %v504
    %v507 = vmul.f32 %v505, 1.442695
    %v508 = vpow.pop %v507
    %v509 = vmul.f32 %v506, 1.442695
    %v510 = vpow.pop %v509
    %v511 = vsel %vm221, %v508, 0.0
    %512 = vadd.xlane.f32.xlu0 %v511
    %v513 = vpop.xlane.xlu0 %512
    %v514 = vsel %vm221, %v510, 0.0
    %515 = vadd.xlane.f32.xlu0 %v514
    %v516 = vpop.xlane.xlu0 %515
    %v517 = vrcp.pop %v513
    %v518 = vrcp.pop %v516
    %v519 = vmul.f32 %v508, %v517
    %v520 = vmul.f32 %v510, %v518
    %523 = vrot.lane.b32.xlu0 %v189, 112
    %v524 = vpop.permute.xlu0 %523
    %525 = vrot.lane.b32.xlu0 %v195, 112
    %v526 = vpop.permute.xlu0 %525
    %v530 = vsel %vm221, %v519, 0
    %v533 = vsel %vm221, %v520, 0
    %535 = vmatprep.subr.mxu0 0.0
    %536 = vmatpush1.msra.mxu0 %v524
    %537 = vmatprep.subr.mxu0 0.0
    %538 = vmatpush1.msra.mxu0 %v526
    %539 = vmatprep.subr.mxu0 0.0
    %540 = vmatpush1.msra.mxu0 0.0
    %541 = vmatprep.subr.mxu0 0.0
    %542 = vmatpush1.msra.mxu0 0.0
    %543 = vmatprep.subr.mxu0 0.0
    %544 = vmatpush1.msra.mxu0 0.0
    %545 = vmatprep.subr.mxu0 0.0
    %546 = vmatpush1.msra.mxu0 0.0
    %547 = vmatprep.subr.mxu0 0.0
    %548 = vmatpush1.msra.mxu0 0.0
    %549 = vmatprep.subr.mxu0 0.0
    %550 = vmatpush1.msra.mxu0 0.0
    %551 = vmatprep.subr.mxu0 0.0
    %552 = vmatpush1.msra.mxu0 0.0
    %553 = vmatprep.subr.mxu0 0.0
    %554 = vmatpush1.msra.mxu0 0.0
    %555 = vmatprep.subr.mxu0 0.0
    %556 = vmatpush1.msra.mxu0 0.0
    %557 = vmatprep.subr.mxu0 0.0
    %558 = vmatpush1.msra.mxu0 0.0
    %559 = vmatprep.subr.mxu0 0.0
    %560 = vmatpush1.msra.mxu0 0.0
    %561 = vmatprep.subr.mxu0 0.0
    %562 = vmatpush1.msra.mxu0 0.0
    %563 = vmatprep.subr.mxu0 0.0
    %564 = vmatpush1.msra.mxu0 0.0
    %565 = vmatprep.subr.mxu0 0.0
    %566 = vmatpush1.msra.mxu0 0.0
    %567 = vmatprep.subr.mxu0 0.0
    %568 = vmatpush1.msra.mxu0 0.0
    %569 = vmatprep.subr.mxu0 0.0
    %570 = vmatpush1.msra.mxu0 0.0
    %571 = vmatprep.subr.mxu0 0.0
    %572 = vmatpush1.msra.mxu0 0.0
    %573 = vmatprep.subr.mxu0 0.0
    %574 = vmatpush1.msra.mxu0 0.0
    %575 = vmatprep.subr.mxu0 0.0
    %576 = vmatpush1.msra.mxu0 0.0
    %577 = vmatprep.subr.mxu0 0.0
    %578 = vmatpush1.msra.mxu0 0.0
    %579 = vmatprep.subr.mxu0 0.0
    %580 = vmatpush1.msra.mxu0 0.0
    %581 = vmatprep.subr.mxu0 0.0
    %582 = vmatpush1.msra.mxu0 0.0
    %583 = vmatprep.subr.mxu0 0.0
    %584 = vmatpush1.msra.mxu0 0.0
    %585 = vmatprep.subr.mxu0 0.0
    %586 = vmatpush1.msra.mxu0 0.0
    %587 = vmatprep.subr.mxu0 0.0
    %588 = vmatpush1.msra.mxu0 0.0
    %589 = vmatprep.subr.mxu0 0.0
    %590 = vmatpush1.msra.mxu0 0.0
    %591 = vmatprep.subr.mxu0 0.0
    %592 = vmatpush1.msra.mxu0 0.0
    %593 = vmatprep.subr.mxu0 0.0
    %594 = vmatpush1.msra.mxu0 0.0
    %595 = vmatprep.subr.mxu0 0.0
    %596 = vmatpush1.msra.mxu0 0.0
    %597 = vmatprep.subr.mxu0 0.0
    %598 = vmatpush1.msra.mxu0 0.0
    %599 = vmatprep.mubr.f32.mxu0 0.0
    %600 = vmatmul.mubr.f32.gmra.mrb[0].mxu0 %v530
    %v601 = vpop.f32.mrb[0].mxu0
    %v602 = vadd.f32 0.0, %v601
    %v603 = vpop.f32.mrb[0].mxu0
    %604 = vmatprep.mubr.f32.mxu0 0.0
    %605 = vmatmul.mubr.f32.gmra.mrb[0].mxu0 %v533
    %v606 = vpop.f32.mrb[0].mxu0
    %v607 = vadd.f32 0.0, %v606
    %v608 = vpop.f32.mrb[0].mxu0
    %609 = vdwg.mxu0
    %610 = vrot.lane.b32.xlu0 %v187, 96
    %v611 = vpop.permute.xlu0 %610
    %612 = vrot.lane.b32.xlu0 %v193, 96
    %v613 = vpop.permute.xlu0 %612
    %614 = vrot.lane.b32.xlu0 %v187, 32
    %v615 = vpop.permute.xlu0 %614
    %616 = vrot.lane.b32.xlu0 %v193, 32
    %v617 = vpop.permute.xlu0 %616
    %v618 = vsel %vm221, %v611, 0
    %v620 = vsel %vm221, %v613, 0
    %v622 = vsel %vm221, %v615, 0
    %v624 = vsel %vm221, %v617, 0
    %626 = vmatprep.subr.mxu0 0.0
    %627 = vmatpush1.xpose.msra.mxu0 %v622
    %628 = vmatprep.subr.mxu0 0.0
    %629 = vmatpush1.xpose.msra.mxu0 %v624
    %630 = vmatprep.subr.mxu0 0.0
    %631 = vmatpush1.xpose.msra.mxu0 0.0
    %632 = vmatprep.subr.mxu0 0.0
    %633 = vmatpush1.xpose.msra.mxu0 0.0
    %634 = vmatprep.subr.mxu0 0.0
    %635 = vmatpush1.xpose.msra.mxu0 0.0
    %636 = vmatprep.subr.mxu0 0.0
    %637 = vmatpush1.xpose.msra.mxu0 0.0
    %638 = vmatprep.subr.mxu0 0.0
    %639 = vmatpush1.xpose.msra.mxu0 0.0
    %640 = vmatprep.subr.mxu0 0.0
    %641 = vmatpush1.xpose.msra.mxu0 0.0
    %642 = vmatprep.subr.mxu0 0.0
    %643 = vmatpush1.xpose.msra.mxu0 0.0
    %644 = vmatprep.subr.mxu0 0.0
    %645 = vmatpush1.xpose.msra.mxu0 0.0
    %646 = vmatprep.subr.mxu0 0.0
    %647 = vmatpush1.xpose.msra.mxu0 0.0
    %648 = vmatprep.subr.mxu0 0.0
    %649 = vmatpush1.xpose.msra.mxu0 0.0
    %650 = vmatprep.subr.mxu0 0.0
    %651 = vmatpush1.xpose.msra.mxu0 0.0
    %652 = vmatprep.subr.mxu0 0.0
    %653 = vmatpush1.xpose.msra.mxu0 0.0
    %654 = vmatprep.subr.mxu0 0.0
    %655 = vmatpush1.xpose.msra.mxu0 0.0
    %656 = vmatprep.subr.mxu0 0.0
    %657 = vmatpush1.xpose.msra.mxu0 0.0
    %658 = vmatprep.subr.mxu0 0.0
    %659 = vmatpush1.xpose.msra.mxu0 0.0
    %660 = vmatprep.subr.mxu0 0.0
    %661 = vmatpush1.xpose.msra.mxu0 0.0
    %662 = vmatprep.subr.mxu0 0.0
    %663 = vmatpush1.xpose.msra.mxu0 0.0
    %664 = vmatprep.subr.mxu0 0.0
    %665 = vmatpush1.xpose.msra.mxu0 0.0
    %666 = vmatprep.subr.mxu0 0.0
    %667 = vmatpush1.xpose.msra.mxu0 0.0
    %668 = vmatprep.subr.mxu0 0.0
    %669 = vmatpush1.xpose.msra.mxu0 0.0
    %670 = vmatprep.subr.mxu0 0.0
    %671 = vmatpush1.xpose.msra.mxu0 0.0
    %672 = vmatprep.subr.mxu0 0.0
    %673 = vmatpush1.xpose.msra.mxu0 0.0
    %674 = vmatprep.subr.mxu0 0.0
    %675 = vmatpush1.xpose.msra.mxu0 0.0
    %676 = vmatprep.subr.mxu0 0.0
    %677 = vmatpush1.xpose.msra.mxu0 0.0
    %678 = vmatprep.subr.mxu0 0.0
    %679 = vmatpush1.xpose.msra.mxu0 0.0
    %680 = vmatprep.subr.mxu0 0.0
    %681 = vmatpush1.xpose.msra.mxu0 0.0
    %682 = vmatprep.subr.mxu0 0.0
    %683 = vmatpush1.xpose.msra.mxu0 0.0
    %684 = vmatprep.subr.mxu0 0.0
    %685 = vmatpush1.xpose.msra.mxu0 0.0
    %686 = vmatprep.subr.mxu0 0.0
    %687 = vmatpush1.xpose.msra.mxu0 0.0
    %688 = vmatprep.subr.mxu0 0.0
    %689 = vmatpush1.xpose.msra.mxu0 0.0
    %690 = vmatprep.mubr.f32.mxu0 0.0
    %691 = vmatmul.mubr.f32.gmra.mrb[0].mxu0 %v618
    %v692 = vpop.f32.mrb[0].mxu0
    %v693 = vadd.f32 %v213, %v692
    %v694 = vpop.f32.mrb[0].mxu0
    %695 = vmatprep.mubr.f32.mxu0 0.0
    %696 = vmatmul.mubr.f32.gmra.mrb[0].mxu0 %v620
    %v697 = vpop.f32.mrb[0].mxu0
    %v698 = vadd.f32 %v213, %v697
    %v699 = vpop.f32.mrb[0].mxu0
    %700 = vdwg.mxu0
    %v701 = vsel %vm221, %v693, -inf
    %702 = vmax.xlane.f32.xlu0 %v701
    %v703 = vpop.xlane.xlu0 %702
    %v704 = vsel %vm221, %v698, -inf
    %705 = vmax.xlane.f32.xlu0 %v704
    %v706 = vpop.xlane.xlu0 %705
    %v707 = vsub.f32 %v693, %v703
    %v708 = vsub.f32 %v698, %v706
    %v709 = vmul.f32 %v707, 1.442695
    %v710 = vpow.pop %v709
    %v711 = vmul.f32 %v708, 1.442695
    %v712 = vpow.pop %v711
    %v713 = vsel %vm221, %v710, 0.0
    %714 = vadd.xlane.f32.xlu0 %v713
    %v715 = vpop.xlane.xlu0 %714
    %v716 = vsel %vm221, %v712, 0.0
    %717 = vadd.xlane.f32.xlu0 %v716
    %v718 = vpop.xlane.xlu0 %717
    %v719 = vrcp.pop %v715
    %v720 = vrcp.pop %v718
    %v721 = vmul.f32 %v710, %v719
    %v722 = vmul.f32 %v712, %v720
    %723 = vrot.lane.b32.xlu0 %v189, 96
    %v724 = vpop.permute.xlu0 %723
    %725 = vrot.lane.b32.xlu0 %v195, 96
    %v726 = vpop.permute.xlu0 %725
    %v730 = vsel %vm221, %v721, 0
    %v733 = vsel %vm221, %v722, 0
    %735 = vmatprep.subr.mxu0 0.0
    %736 = vmatpush1.msra.mxu0 %v724
    %737 = vmatprep.subr.mxu0 0.0
    %738 = vmatpush1.msra.mxu0 %v726
    %739 = vmatprep.subr.mxu0 0.0
    %740 = vmatpush1.msra.mxu0 0.0
    %741 = vmatprep.subr.mxu0 0.0
    %742 = vmatpush1.msra.mxu0 0.0
    %743 = vmatprep.subr.mxu0 0.0
    %744 = vmatpush1.msra.mxu0 0.0
    %745 = vmatprep.subr.mxu0 0.0
    %746 = vmatpush1.msra.mxu0 0.0
    %747 = vmatprep.subr.mxu0 0.0
    %748 = vmatpush1.msra.mxu0 0.0
    %749 = vmatprep.subr.mxu0 0.0
    %750 = vmatpush1.msra.mxu0 0.0
    %751 = vmatprep.subr.mxu0 0.0
    %752 = vmatpush1.msra.mxu0 0.0
    %753 = vmatprep.subr.mxu0 0.0
    %754 = vmatpush1.msra.mxu0 0.0
    %755 = vmatprep.subr.mxu0 0.0
    %756 = vmatpush1.msra.mxu0 0.0
    %757 = vmatprep.subr.mxu0 0.0
    %758 = vmatpush1.msra.mxu0 0.0
    %759 = vmatprep.subr.mxu0 0.0
    %760 = vmatpush1.msra.mxu0 0.0
    %761 = vmatprep.subr.mxu0 0.0
    %762 = vmatpush1.msra.mxu0 0.0
    %763 = vmatprep.subr.mxu0 0.0
    %764 = vmatpush1.msra.mxu0 0.0
    %765 = vmatprep.subr.mxu0 0.0
    %766 = vmatpush1.msra.mxu0 0.0
    %767 = vmatprep.subr.mxu0 0.0
    %768 = vmatpush1.msra.mxu0 0.0
    %769 = vmatprep.subr.mxu0 0.0
    %770 = vmatpush1.msra.mxu0 0.0
    %771 = vmatprep.subr.mxu0 0.0
    %772 = vmatpush1.msra.mxu0 0.0
    %773 = vmatprep.subr.mxu0 0.0
    %774 = vmatpush1.msra.mxu0 0.0
    %775 = vmatprep.subr.mxu0 0.0
    %776 = vmatpush1.msra.mxu0 0.0
    %777 = vmatprep.subr.mxu0 0.0
    %778 = vmatpush1.msra.mxu0 0.0
    %779 = vmatprep.subr.mxu0 0.0
    %780 = vmatpush1.msra.mxu0 0.0
    %781 = vmatprep.subr.mxu0 0.0
    %782 = vmatpush1.msra.mxu0 0.0
    %783 = vmatprep.subr.mxu0 0.0
    %784 = vmatpush1.msra.mxu0 0.0
    %785 = vmatprep.subr.mxu0 0.0
    %786 = vmatpush1.msra.mxu0 0.0
    %787 = vmatprep.subr.mxu0 0.0
    %788 = vmatpush1.msra.mxu0 0.0
    %789 = vmatprep.subr.mxu0 0.0
    %790 = vmatpush1.msra.mxu0 0.0
    %791 = vmatprep.subr.mxu0 0.0
    %792 = vmatpush1.msra.mxu0 0.0
    %793 = vmatprep.subr.mxu0 0.0
    %794 = vmatpush1.msra.mxu0 0.0
    %795 = vmatprep.subr.mxu0 0.0
    %796 = vmatpush1.msra.mxu0 0.0
    %797 = vmatprep.subr.mxu0 0.0
    %798 = vmatpush1.msra.mxu0 0.0
    %799 = vmatprep.mubr.f32.mxu0 0.0
    %800 = vmatmul.mubr.f32.gmra.mrb[0].mxu0 %v730
    %v801 = vpop.f32.mrb[0].mxu0
    %v802 = vadd.f32 0.0, %v801
    %v803 = vpop.f32.mrb[0].mxu0
    %804 = vmatprep.mubr.f32.mxu0 0.0
    %805 = vmatmul.mubr.f32.gmra.mrb[0].mxu0 %v733
    %v806 = vpop.f32.mrb[0].mxu0
    %v807 = vadd.f32 0.0, %v806
    %v808 = vpop.f32.mrb[0].mxu0
    %809 = vdwg.mxu0
    %810 = vrot.lane.b32.xlu0 %v187, 80
    %v811 = vpop.permute.xlu0 %810
    %812 = vrot.lane.b32.xlu0 %v193, 80
    %v813 = vpop.permute.xlu0 %812
    %814 = vrot.lane.b32.xlu0 %v187, 16
    %v815 = vpop.permute.xlu0 %814
    %816 = vrot.lane.b32.xlu0 %v193, 16
    %v817 = vpop.permute.xlu0 %816
    %v818 = vsel %vm221, %v811, 0
    %v820 = vsel %vm221, %v813, 0
    %v822 = vsel %vm221, %v815, 0
    %v824 = vsel %vm221, %v817, 0
    %826 = vmatprep.subr.mxu0 0.0
    %827 = vmatpush1.xpose.msra.mxu0 %v822
    %828 = vmatprep.subr.mxu0 0.0
    %829 = vmatpush1.xpose.msra.mxu0 %v824
    %830 = vmatprep.subr.mxu0 0.0
    %831 = vmatpush1.xpose.msra.mxu0 0.0
    %832 = vmatprep.subr.mxu0 0.0
    %833 = vmatpush1.xpose.msra.mxu0 0.0
    %834 = vmatprep.subr.mxu0 0.0
    %835 = vmatpush1.xpose.msra.mxu0 0.0
    %836 = vmatprep.subr.mxu0 0.0
    %837 = vmatpush1.xpose.msra.mxu0 0.0
    %838 = vmatprep.subr.mxu0 0.0
    %839 = vmatpush1.xpose.msra.mxu0 0.0
    %840 = vmatprep.subr.mxu0 0.0
    %841 = vmatpush1.xpose.msra.mxu0 0.0
    %842 = vmatprep.subr.mxu0 0.0
    %843 = vmatpush1.xpose.msra.mxu0 0.0
    %844 = vmatprep.subr.mxu0 0.0
    %845 = vmatpush1.xpose.msra.mxu0 0.0
    %846 = vmatprep.subr.mxu0 0.0
    %847 = vmatpush1.xpose.msra.mxu0 0.0
    %848 = vmatprep.subr.mxu0 0.0
    %849 = vmatpush1.xpose.msra.mxu0 0.0
    %850 = vmatprep.subr.mxu0 0.0
    %851 = vmatpush1.xpose.msra.mxu0 0.0
    %852 = vmatprep.subr.mxu0 0.0
    %853 = vmatpush1.xpose.msra.mxu0 0.0
    %854 = vmatprep.subr.mxu0 0.0
    %855 = vmatpush1.xpose.msra.mxu0 0.0
    %856 = vmatprep.subr.mxu0 0.0
    %857 = vmatpush1.xpose.msra.mxu0 0.0
    %858 = vmatprep.subr.mxu0 0.0
    %859 = vmatpush1.xpose.msra.mxu0 0.0
    %860 = vmatprep.subr.mxu0 0.0
    %861 = vmatpush1.xpose.msra.mxu0 0.0
    %862 = vmatprep.subr.mxu0 0.0
    %863 = vmatpush1.xpose.msra.mxu0 0.0
    %864 = vmatprep.subr.mxu0 0.0
    %865 = vmatpush1.xpose.msra.mxu0 0.0
    %866 = vmatprep.subr.mxu0 0.0
    %867 = vmatpush1.xpose.msra.mxu0 0.0
    %868 = vmatprep.subr.mxu0 0.0
    %869 = vmatpush1.xpose.msra.mxu0 0.0
    %870 = vmatprep.subr.mxu0 0.0
    %871 = vmatpush1.xpose.msra.mxu0 0.0
    %872 = vmatprep.subr.mxu0 0.0
    %873 = vmatpush1.xpose.msra.mxu0 0.0
    %874 = vmatprep.subr.mxu0 0.0
    %875 = vmatpush1.xpose.msra.mxu0 0.0
    %876 = vmatprep.subr.mxu0 0.0
    %877 = vmatpush1.xpose.msra.mxu0 0.0
    %878 = vmatprep.subr.mxu0 0.0
    %879 = vmatpush1.xpose.msra.mxu0 0.0
    %880 = vmatprep.subr.mxu0 0.0
    %881 = vmatpush1.xpose.msra.mxu0 0.0
    %882 = vmatprep.subr.mxu0 0.0
    %883 = vmatpush1.xpose.msra.mxu0 0.0
    %884 = vmatprep.subr.mxu0 0.0
    %885 = vmatpush1.xpose.msra.mxu0 0.0
    %886 = vmatprep.subr.mxu0 0.0
    %887 = vmatpush1.xpose.msra.mxu0 0.0
    %888 = vmatprep.subr.mxu0 0.0
    %889 = vmatpush1.xpose.msra.mxu0 0.0
    %890 = vmatprep.mubr.f32.mxu0 0.0
    %891 = vmatmul.mubr.f32.gmra.mrb[0].mxu0 %v818
    %v892 = vpop.f32.mrb[0].mxu0
    %v893 = vadd.f32 %v213, %v892
    %v894 = vpop.f32.mrb[0].mxu0
    %895 = vmatprep.mubr.f32.mxu0 0.0
    %896 = vmatmul.mubr.f32.gmra.mrb[0].mxu0 %v820
    %v897 = vpop.f32.mrb[0].mxu0
    %v898 = vadd.f32 %v213, %v897
    %v899 = vpop.f32.mrb[0].mxu0
    %900 = vdwg.mxu0
    %v901 = vsel %vm221, %v893, -inf
    %902 = vmax.xlane.f32.xlu0 %v901
    %v903 = vpop.xlane.xlu0 %902
    %v904 = vsel %vm221, %v898, -inf
    %905 = vmax.xlane.f32.xlu0 %v904
    %v906 = vpop.xlane.xlu0 %905
    %v907 = vsub.f32 %v893, %v903
    %v908 = vsub.f32 %v898, %v906
    %v909 = vmul.f32 %v907, 1.442695
    %v910 = vpow.pop %v909
    %v911 = vmul.f32 %v908, 1.442695
    %v912 = vpow.pop %v911
    %v913 = vsel %vm221, %v910, 0.0
    %914 = vadd.xlane.f32.xlu0 %v913
    %v915 = vpop.xlane.xlu0 %914
    %v916 = vsel %vm221, %v912, 0.0
    %917 = vadd.xlane.f32.xlu0 %v916
    %v918 = vpop.xlane.xlu0 %917
    %v919 = vrcp.pop %v915
    %v920 = vrcp.pop %v918
    %v921 = vmul.f32 %v910, %v919
    %v922 = vmul.f32 %v912, %v920
    %923 = vrot.lane.b32.xlu0 %v189, 80
    %v924 = vpop.permute.xlu0 %923
    %925 = vrot.lane.b32.xlu0 %v195, 80
    %v926 = vpop.permute.xlu0 %925
    %v930 = vsel %vm221, %v921, 0
    %v933 = vsel %vm221, %v922, 0
    %935 = vmatprep.subr.mxu0 0.0
    %936 = vmatpush1.msra.mxu0 %v924
    %937 = vmatprep.subr.mxu0 0.0
    %938 = vmatpush1.msra.mxu0 %v926
    %939 = vmatprep.subr.mxu0 0.0
    %940 = vmatpush1.msra.mxu0 0.0
    %941 = vmatprep.subr.mxu0 0.0
    %942 = vmatpush1.msra.mxu0 0.0
    %943 = vmatprep.subr.mxu0 0.0
    %944 = vmatpush1.msra.mxu0 0.0
    %945 = vmatprep.subr.mxu0 0.0
    %946 = vmatpush1.msra.mxu0 0.0
    %947 = vmatprep.subr.mxu0 0.0
    %948 = vmatpush1.msra.mxu0 0.0
    %949 = vmatprep.subr.mxu0 0.0
    %950 = vmatpush1.msra.mxu0 0.0
    %951 = vmatprep.subr.mxu0 0.0
    %952 = vmatpush1.msra.mxu0 0.0
    %953 = vmatprep.subr.mxu0 0.0
    %954 = vmatpush1.msra.mxu0 0.0
    %955 = vmatprep.subr.mxu0 0.0
    %956 = vmatpush1.msra.mxu0 0.0
    %957 = vmatprep.subr.mxu0 0.0
    %958 = vmatpush1.msra.mxu0 0.0
    %959 = vmatprep.subr.mxu0 0.0
    %960 = vmatpush1.msra.mxu0 0.0
    %961 = vmatprep.subr.mxu0 0.0
    %962 = vmatpush1.msra.mxu0 0.0
    %963 = vmatprep.subr.mxu0 0.0
    %964 = vmatpush1.msra.mxu0 0.0
    %965 = vmatprep.subr.mxu0 0.0
    %966 = vmatpush1.msra.mxu0 0.0
    %967 = vmatprep.subr.mxu0 0.0
    %968 = vmatpush1.msra.mxu0 0.0
    %969 = vmatprep.subr.mxu0 0.0
    %970 = vmatpush1.msra.mxu0 0.0
    %971 = vmatprep.subr.mxu0 0.0
    %972 = vmatpush1.msra.mxu0 0.0
    %973 = vmatprep.subr.mxu0 0.0
    %974 = vmatpush1.msra.mxu0 0.0
    %975 = vmatprep.subr.mxu0 0.0
    %976 = vmatpush1.msra.mxu0 0.0
    %977 = vmatprep.subr.mxu0 0.0
    %978 = vmatpush1.msra.mxu0 0.0
    %979 = vmatprep.subr.mxu0 0.0
    %980 = vmatpush1.msra.mxu0 0.0
    %981 = vmatprep.subr.mxu0 0.0
    %982 = vmatpush1.msra.mxu0 0.0
    %983 = vmatprep.subr.mxu0 0.0
    %984 = vmatpush1.msra.mxu0 0.0
    %985 = vmatprep.subr.mxu0 0.0
    %986 = vmatpush1.msra.mxu0 0.0
    %987 = vmatprep.subr.mxu0 0.0
    %988 = vmatpush1.msra.mxu0 0.0
    %989 = vmatprep.subr.mxu0 0.0
    %990 = vmatpush1.msra.mxu0 0.0
    %991 = vmatprep.subr.mxu0 0.0
    %992 = vmatpush1.msra.mxu0 0.0
    %993 = vmatprep.subr.mxu0 0.0
    %994 = vmatpush1.msra.mxu0 0.0
    %995 = vmatprep.subr.mxu0 0.0
    %996 = vmatpush1.msra.mxu0 0.0
    %997 = vmatprep.subr.mxu0 0.0
    %998 = vmatpush1.msra.mxu0 0.0
    %999 = vmatprep.mubr.f32.mxu0 0.0
    %1000 = vmatmul.mubr.f32.gmra.mrb[0].mxu0 %v930
    %v1001 = vpop.f32.mrb[0].mxu0
    %v1002 = vadd.f32 0.0, %v1001
    %v1003 = vpop.f32.mrb[0].mxu0
    %1004 = vmatprep.mubr.f32.mxu0 0.0
    %1005 = vmatmul.mubr.f32.gmra.mrb[0].mxu0 %v933
    %v1006 = vpop.f32.mrb[0].mxu0
    %v1007 = vadd.f32 0.0, %v1006
    %v1008 = vpop.f32.mrb[0].mxu0
    %1009 = vdwg.mxu0
    %1012 = vrot.lane.b32.xlu0 %v602, 16
    %v1013 = vpop.permute.xlu0 %1012
    %1014 = vrot.lane.b32.xlu0 %v607, 16
    %v1015 = vpop.permute.xlu0 %1014
    %1020 = vrot.lane.b32.xlu0 %v802, 32
    %v1021 = vpop.permute.xlu0 %1020
    %1022 = vrot.lane.b32.xlu0 %v807, 32
    %v1023 = vpop.permute.xlu0 %1022
    %1028 = vrot.lane.b32.xlu0 %v1002, 48
    %v1029 = vpop.permute.xlu0 %1028
    %1030 = vrot.lane.b32.xlu0 %v1007, 48
    %v1031 = vpop.permute.xlu0 %1030
    %v1034 = vsel %vm221, %v400, %v1013
    %v1035 = vsel %vm221, %v405, %v1015
    %vm1036 = vcmask 261120
    %v1037 = vsel %vm1036, %v1034, %v1021
    %v1038 = vsel %vm1036, %v1035, %v1023
    %vm1039 = vcmask 392192
    %v1040 = vsel %vm1039, %v1037, %v1029
    %v1041 = vsel %vm1039, %v1038, %v1031
    %v1043 = vlaneseq
    %v1044 = vshrl.u32 %v1043, 7
    %v1045 = vsub.s32 0, %v1044
    %v1046 = vrot.slane %v78, %v1045
    %1050 = vrot.lane.b32.xlu0 %v199, 64
    %v1051 = vpop.permute.xlu0 %1050
    %1052 = vrot.lane.b32.xlu0 %v205, 64
    %v1053 = vpop.permute.xlu0 %1052
    %v1054 = vsel %vm221, %v199, 0
    %v1056 = vsel %vm221, %v205, 0
    %v1058 = vsel %vm221, %v1051, 0
    %v1060 = vsel %vm221, %v1053, 0
    %1062 = vmatprep.subr.mxu0 0.0
    %1063 = vmatpush1.xpose.msra.mxu0 %v1058
    %1064 = vmatprep.subr.mxu0 0.0
    %1065 = vmatpush1.xpose.msra.mxu0 %v1060
    %1066 = vmatprep.subr.mxu0 0.0
    %1067 = vmatpush1.xpose.msra.mxu0 0.0
    %1068 = vmatprep.subr.mxu0 0.0
    %1069 = vmatpush1.xpose.msra.mxu0 0.0
    %1070 = vmatprep.subr.mxu0 0.0
    %1071 = vmatpush1.xpose.msra.mxu0 0.0
    %1072 = vmatprep.subr.mxu0 0.0
    %1073 = vmatpush1.xpose.msra.mxu0 0.0
    %1074 = vmatprep.subr.mxu0 0.0
    %1075 = vmatpush1.xpose.msra.mxu0 0.0
    %1076 = vmatprep.subr.mxu0 0.0
    %1077 = vmatpush1.xpose.msra.mxu0 0.0
    %1078 = vmatprep.subr.mxu0 0.0
    %1079 = vmatpush1.xpose.msra.mxu0 0.0
    %1080 = vmatprep.subr.mxu0 0.0
    %1081 = vmatpush1.xpose.msra.mxu0 0.0
    %1082 = vmatprep.subr.mxu0 0.0
    %1083 = vmatpush1.xpose.msra.mxu0 0.0
    %1084 = vmatprep.subr.mxu0 0.0
    %1085 = vmatpush1.xpose.msra.mxu0 0.0
    %1086 = vmatprep.subr.mxu0 0.0
    %1087 = vmatpush1.xpose.msra.mxu0 0.0
    %1088 = vmatprep.subr.mxu0 0.0
    %1089 = vmatpush1.xpose.msra.mxu0 0.0
    %1090 = vmatprep.subr.mxu0 0.0
    %1091 = vmatpush1.xpose.msra.mxu0 0.0
    %1092 = vmatprep.subr.mxu0 0.0
    %1093 = vmatpush1.xpose.msra.mxu0 0.0
    %1094 = vmatprep.subr.mxu0 0.0
    %1095 = vmatpush1.xpose.msra.mxu0 0.0
    %1096 = vmatprep.subr.mxu0 0.0
    %1097 = vmatpush1.xpose.msra.mxu0 0.0
    %1098 = vmatprep.subr.mxu0 0.0
    %1099 = vmatpush1.xpose.msra.mxu0 0.0
    %1100 = vmatprep.subr.mxu0 0.0
    %1101 = vmatpush1.xpose.msra.mxu0 0.0
    %1102 = vmatprep.subr.mxu0 0.0
    %1103 = vmatpush1.xpose.msra.mxu0 0.0
    %1104 = vmatprep.subr.mxu0 0.0
    %1105 = vmatpush1.xpose.msra.mxu0 0.0
    %1106 = vmatprep.subr.mxu0 0.0
    %1107 = vmatpush1.xpose.msra.mxu0 0.0
    %1108 = vmatprep.subr.mxu0 0.0
    %1109 = vmatpush1.xpose.msra.mxu0 0.0
    %1110 = vmatprep.subr.mxu0 0.0
    %1111 = vmatpush1.xpose.msra.mxu0 0.0
    %1112 = vmatprep.subr.mxu0 0.0
    %1113 = vmatpush1.xpose.msra.mxu0 0.0
    %1114 = vmatprep.subr.mxu0 0.0
    %1115 = vmatpush1.xpose.msra.mxu0 0.0
    %1116 = vmatprep.subr.mxu0 0.0
    %1117 = vmatpush1.xpose.msra.mxu0 0.0
    %1118 = vmatprep.subr.mxu0 0.0
    %1119 = vmatpush1.xpose.msra.mxu0 0.0
    %1120 = vmatprep.subr.mxu0 0.0
    %1121 = vmatpush1.xpose.msra.mxu0 0.0
    %1122 = vmatprep.subr.mxu0 0.0
    %1123 = vmatpush1.xpose.msra.mxu0 0.0
    %1124 = vmatprep.subr.mxu0 0.0
    %1125 = vmatpush1.xpose.msra.mxu0 0.0
    %1126 = vmatprep.mubr.f32.mxu0 0.0
    %1127 = vmatmul.mubr.f32.gmra.mrb[0].mxu0 %v1054
    %v1128 = vpop.f32.mrb[0].mxu0
    %v1129 = vadd.f32 %v1046, %v1128
    %v1130 = vpop.f32.mrb[0].mxu0
    %1131 = vmatprep.mubr.f32.mxu0 0.0
    %1132 = vmatmul.mubr.f32.gmra.mrb[0].mxu0 %v1056
    %v1133 = vpop.f32.mrb[0].mxu0
    %v1134 = vadd.f32 %v1046, %v1133
    %v1135 = vpop.f32.mrb[0].mxu0
    %1136 = vdwg.mxu0
    %v1137 = vsel %vm221, %v1129, -inf
    %1138 = vmax.xlane.f32.xlu0 %v1137
    %v1139 = vpop.xlane.xlu0 %1138
    %v1140 = vsel %vm221, %v1134, -inf
    %1141 = vmax.xlane.f32.xlu0 %v1140
    %v1142 = vpop.xlane.xlu0 %1141
    %v1143 = vsub.f32 %v1129, %v1139
    %v1144 = vsub.f32 %v1134, %v1142
    %v1145 = vmul.f32 %v1143, 1.442695
    %v1146 = vpow.pop %v1145
    %v1147 = vmul.f32 %v1144, 1.442695
    %v1148 = vpow.pop %v1147
    %v1149 = vsel %vm221, %v1146, 0.0
    %1150 = vadd.xlane.f32.xlu0 %v1149
    %v1151 = vpop.xlane.xlu0 %1150
    %v1152 = vsel %vm221, %v1148, 0.0
    %1153 = vadd.xlane.f32.xlu0 %v1152
    %v1154 = vpop.xlane.xlu0 %1153
    %v1155 = vrcp.pop %v1151
    %v1156 = vrcp.pop %v1154
    %v1157 = vmul.f32 %v1146, %v1155
    %v1158 = vmul.f32 %v1148, %v1156
    %v1160 = vsel %vm221, %v1157, 0
    %v1163 = vsel %vm221, %v1158, 0
    %1165 = vmatprep.subr.mxu0 0.0
    %1166 = vmatpush1.msra.mxu0 %v201
    %1167 = vmatprep.subr.mxu0 0.0
    %1168 = vmatpush1.msra.mxu0 %v207
    %1169 = vmatprep.subr.mxu0 0.0
    %1170 = vmatpush1.msra.mxu0 0.0
    %1171 = vmatprep.subr.mxu0 0.0
    %1172 = vmatpush1.msra.mxu0 0.0
    %1173 = vmatprep.subr.mxu0 0.0
    %1174 = vmatpush1.msra.mxu0 0.0
    %1175 = vmatprep.subr.mxu0 0.0
    %1176 = vmatpush1.msra.mxu0 0.0
    %1177 = vmatprep.subr.mxu0 0.0
    %1178 = vmatpush1.msra.mxu0 0.0
    %1179 = vmatprep.subr.mxu0 0.0
    %1180 = vmatpush1.msra.mxu0 0.0
    %1181 = vmatprep.subr.mxu0 0.0
    %1182 = vmatpush1.msra.mxu0 0.0
    %1183 = vmatprep.subr.mxu0 0.0
    %1184 = vmatpush1.msra.mxu0 0.0
    %1185 = vmatprep.subr.mxu0 0.0
    %1186 = vmatpush1.msra.mxu0 0.0
    %1187 = vmatprep.subr.mxu0 0.0
    %1188 = vmatpush1.msra.mxu0 0.0
    %1189 = vmatprep.subr.mxu0 0.0
    %1190 = vmatpush1.msra.mxu0 0.0
    %1191 = vmatprep.subr.mxu0 0.0
    %1192 = vmatpush1.msra.mxu0 0.0
    %1193 = vmatprep.subr.mxu0 0.0
    %1194 = vmatpush1.msra.mxu0 0.0
    %1195 = vmatprep.subr.mxu0 0.0
    %1196 = vmatpush1.msra.mxu0 0.0
    %1197 = vmatprep.subr.mxu0 0.0
    %1198 = vmatpush1.msra.mxu0 0.0
    %1199 = vmatprep.subr.mxu0 0.0
    %1200 = vmatpush1.msra.mxu0 0.0
    %1201 = vmatprep.subr.mxu0 0.0
    %1202 = vmatpush1.msra.mxu0 0.0
    %1203 = vmatprep.subr.mxu0 0.0
    %1204 = vmatpush1.msra.mxu0 0.0
    %1205 = vmatprep.subr.mxu0 0.0
    %1206 = vmatpush1.msra.mxu0 0.0
    %1207 = vmatprep.subr.mxu0 0.0
    %1208 = vmatpush1.msra.mxu0 0.0
    %1209 = vmatprep.subr.mxu0 0.0
    %1210 = vmatpush1.msra.mxu0 0.0
    %1211 = vmatprep.subr.mxu0 0.0
    %1212 = vmatpush1.msra.mxu0 0.0
    %1213 = vmatprep.subr.mxu0 0.0
    %1214 = vmatpush1.msra.mxu0 0.0
    %1215 = vmatprep.subr.mxu0 0.0
    %1216 = vmatpush1.msra.mxu0 0.0
    %1217 = vmatprep.subr.mxu0 0.0
    %1218 = vmatpush1.msra.mxu0 0.0
    %1219 = vmatprep.subr.mxu0 0.0
    %1220 = vmatpush1.msra.mxu0 0.0
    %1221 = vmatprep.subr.mxu0 0.0
    %1222 = vmatpush1.msra.mxu0 0.0
    %1223 = vmatprep.subr.mxu0 0.0
    %1224 = vmatpush1.msra.mxu0 0.0
    %1225 = vmatprep.subr.mxu0 0.0
    %1226 = vmatpush1.msra.mxu0 0.0
    %1227 = vmatprep.subr.mxu0 0.0
    %1228 = vmatpush1.msra.mxu0 0.0
    %1229 = vmatprep.mubr.f32.mxu0 0.0
    %1230 = vmatmul.mubr.f32.gmra.mrb[0].mxu0 %v1160
    %v1231 = vpop.f32.mrb[0].mxu0
    %v1232 = vadd.f32 0.0, %v1231
    %v1233 = vpop.f32.mrb[0].mxu0
    %1234 = vmatprep.mubr.f32.mxu0 0.0
    %1235 = vmatmul.mubr.f32.gmra.mrb[0].mxu0 %v1163
    %v1236 = vpop.f32.mrb[0].mxu0
    %v1237 = vadd.f32 0.0, %v1236
    %v1238 = vpop.f32.mrb[0].mxu0
    %1239 = vdwg.mxu0
    %1240 = vrot.lane.b32.xlu0 %v199, 112
    %v1241 = vpop.permute.xlu0 %1240
    %1242 = vrot.lane.b32.xlu0 %v205, 112
    %v1243 = vpop.permute.xlu0 %1242
    %1244 = vrot.lane.b32.xlu0 %v199, 48
    %v1245 = vpop.permute.xlu0 %1244
    %1246 = vrot.lane.b32.xlu0 %v205, 48
    %v1247 = vpop.permute.xlu0 %1246
    %v1248 = vsel %vm221, %v1241, 0
    %v1250 = vsel %vm221, %v1243, 0
    %v1252 = vsel %vm221, %v1245, 0
    %v1254 = vsel %vm221, %v1247, 0
    %1256 = vmatprep.subr.mxu0 0.0
    %1257 = vmatpush1.xpose.msra.mxu0 %v1252
    %1258 = vmatprep.subr.mxu0 0.0
    %1259 = vmatpush1.xpose.msra.mxu0 %v1254
    %1260 = vmatprep.subr.mxu0 0.0
    %1261 = vmatpush1.xpose.msra.mxu0 0.0
    %1262 = vmatprep.subr.mxu0 0.0
    %1263 = vmatpush1.xpose.msra.mxu0 0.0
    %1264 = vmatprep.subr.mxu0 0.0
    %1265 = vmatpush1.xpose.msra.mxu0 0.0
    %1266 = vmatprep.subr.mxu0 0.0
    %1267 = vmatpush1.xpose.msra.mxu0 0.0
    %1268 = vmatprep.subr.mxu0 0.0
    %1269 = vmatpush1.xpose.msra.mxu0 0.0
    %1270 = vmatprep.subr.mxu0 0.0
    %1271 = vmatpush1.xpose.msra.mxu0 0.0
    %1272 = vmatprep.subr.mxu0 0.0
    %1273 = vmatpush1.xpose.msra.mxu0 0.0
    %1274 = vmatprep.subr.mxu0 0.0
    %1275 = vmatpush1.xpose.msra.mxu0 0.0
    %1276 = vmatprep.subr.mxu0 0.0
    %1277 = vmatpush1.xpose.msra.mxu0 0.0
    %1278 = vmatprep.subr.mxu0 0.0
    %1279 = vmatpush1.xpose.msra.mxu0 0.0
    %1280 = vmatprep.subr.mxu0 0.0
    %1281 = vmatpush1.xpose.msra.mxu0 0.0
    %1282 = vmatprep.subr.mxu0 0.0
    %1283 = vmatpush1.xpose.msra.mxu0 0.0
    %1284 = vmatprep.subr.mxu0 0.0
    %1285 = vmatpush1.xpose.msra.mxu0 0.0
    %1286 = vmatprep.subr.mxu0 0.0
    %1287 = vmatpush1.xpose.msra.mxu0 0.0
    %1288 = vmatprep.subr.mxu0 0.0
    %1289 = vmatpush1.xpose.msra.mxu0 0.0
    %1290 = vmatprep.subr.mxu0 0.0
    %1291 = vmatpush1.xpose.msra.mxu0 0.0
    %1292 = vmatprep.subr.mxu0 0.0
    %1293 = vmatpush1.xpose.msra.mxu0 0.0
    %1294 = vmatprep.subr.mxu0 0.0
    %1295 = vmatpush1.xpose.msra.mxu0 0.0
    %1296 = vmatprep.subr.mxu0 0.0
    %1297 = vmatpush1.xpose.msra.mxu0 0.0
    %1298 = vmatprep.subr.mxu0 0.0
    %1299 = vmatpush1.xpose.msra.mxu0 0.0
    %1300 = vmatprep.subr.mxu0 0.0
    %1301 = vmatpush1.xpose.msra.mxu0 0.0
    %1302 = vmatprep.subr.mxu0 0.0
    %1303 = vmatpush1.xpose.msra.mxu0 0.0
    %1304 = vmatprep.subr.mxu0 0.0
    %1305 = vmatpush1.xpose.msra.mxu0 0.0
    %1306 = vmatprep.subr.mxu0 0.0
    %1307 = vmatpush1.xpose.msra.mxu0 0.0
    %1308 = vmatprep.subr.mxu0 0.0
    %1309 = vmatpush1.xpose.msra.mxu0 0.0
    %1310 = vmatprep.subr.mxu0 0.0
    %1311 = vmatpush1.xpose.msra.mxu0 0.0
    %1312 = vmatprep.subr.mxu0 0.0
    %1313 = vmatpush1.xpose.msra.mxu0 0.0
    %1314 = vmatprep.subr.mxu0 0.0
    %1315 = vmatpush1.xpose.msra.mxu0 0.0
    %1316 = vmatprep.subr.mxu0 0.0
    %1317 = vmatpush1.xpose.msra.mxu0 0.0
    %1318 = vmatprep.subr.mxu0 0.0
    %1319 = vmatpush1.xpose.msra.mxu0 0.0
    %1320 = vmatprep.mubr.f32.mxu0 0.0
    %1321 = vmatmul.mubr.f32.gmra.mrb[0].mxu0 %v1248
    %v1322 = vpop.f32.mrb[0].mxu0
    %v1323 = vadd.f32 %v1046, %v1322
    %v1324 = vpop.f32.mrb[0].mxu0
    %1325 = vmatprep.mubr.f32.mxu0 0.0
    %1326 = vmatmul.mubr.f32.gmra.mrb[0].mxu0 %v1250
    %v1327 = vpop.f32.mrb[0].mxu0
    %v1328 = vadd.f32 %v1046, %v1327
    %v1329 = vpop.f32.mrb[0].mxu0
    %1330 = vdwg.mxu0
    %v1331 = vsel %vm221, %v1323, -inf
    %1332 = vmax.xlane.f32.xlu0 %v1331
    %v1333 = vpop.xlane.xlu0 %1332
    %v1334 = vsel %vm221, %v1328, -inf
    %1335 = vmax.xlane.f32.xlu0 %v1334
    %v1336 = vpop.xlane.xlu0 %1335
    %v1337 = vsub.f32 %v1323, %v1333
    %v1338 = vsub.f32 %v1328, %v1336
    %v1339 = vmul.f32 %v1337, 1.442695
    %v1340 = vpow.pop %v1339
    %v1341 = vmul.f32 %v1338, 1.442695
    %v1342 = vpow.pop %v1341
    %v1343 = vsel %vm221, %v1340, 0.0
    %1344 = vadd.xlane.f32.xlu0 %v1343
    %v1345 = vpop.xlane.xlu0 %1344
    %v1346 = vsel %vm221, %v1342, 0.0
    %1347 = vadd.xlane.f32.xlu0 %v1346
    %v1348 = vpop.xlane.xlu0 %1347
    %v1349 = vrcp.pop %v1345
    %v1350 = vrcp.pop %v1348
    %v1351 = vmul.f32 %v1340, %v1349
    %v1352 = vmul.f32 %v1342, %v1350
    %1355 = vrot.lane.b32.xlu0 %v201, 112
    %v1356 = vpop.permute.xlu0 %1355
    %1357 = vrot.lane.b32.xlu0 %v207, 112
    %v1358 = vpop.permute.xlu0 %1357
    %v1362 = vsel %vm221, %v1351, 0
    %v1365 = vsel %vm221, %v1352, 0
    %1367 = vmatprep.subr.mxu0 0.0
    %1368 = vmatpush1.msra.mxu0 %v1356
    %1369 = vmatprep.subr.mxu0 0.0
    %1370 = vmatpush1.msra.mxu0 %v1358
    %1371 = vmatprep.subr.mxu0 0.0
    %1372 = vmatpush1.msra.mxu0 0.0
    %1373 = vmatprep.subr.mxu0 0.0
    %1374 = vmatpush1.msra.mxu0 0.0
    %1375 = vmatprep.subr.mxu0 0.0
    %1376 = vmatpush1.msra.mxu0 0.0
    %1377 = vmatprep.subr.mxu0 0.0
    %1378 = vmatpush1.msra.mxu0 0.0
    %1379 = vmatprep.subr.mxu0 0.0
    %1380 = vmatpush1.msra.mxu0 0.0
    %1381 = vmatprep.subr.mxu0 0.0
    %1382 = vmatpush1.msra.mxu0 0.0
    %1383 = vmatprep.subr.mxu0 0.0
    %1384 = vmatpush1.msra.mxu0 0.0
    %1385 = vmatprep.subr.mxu0 0.0
    %1386 = vmatpush1.msra.mxu0 0.0
    %1387 = vmatprep.subr.mxu0 0.0
    %1388 = vmatpush1.msra.mxu0 0.0
    %1389 = vmatprep.subr.mxu0 0.0
    %1390 = vmatpush1.msra.mxu0 0.0
    %1391 = vmatprep.subr.mxu0 0.0
    %1392 = vmatpush1.msra.mxu0 0.0
    %1393 = vmatprep.subr.mxu0 0.0
    %1394 = vmatpush1.msra.mxu0 0.0
    %1395 = vmatprep.subr.mxu0 0.0
    %1396 = vmatpush1.msra.mxu0 0.0
    %1397 = vmatprep.subr.mxu0 0.0
    %1398 = vmatpush1.msra.mxu0 0.0
    %1399 = vmatprep.subr.mxu0 0.0
    %1400 = vmatpush1.msra.mxu0 0.0
    %1401 = vmatprep.subr.mxu0 0.0
    %1402 = vmatpush1.msra.mxu0 0.0
    %1403 = vmatprep.subr.mxu0 0.0
    %1404 = vmatpush1.msra.mxu0 0.0
    %1405 = vmatprep.subr.mxu0 0.0
    %1406 = vmatpush1.msra.mxu0 0.0
    %1407 = vmatprep.subr.mxu0 0.0
    %1408 = vmatpush1.msra.mxu0 0.0
    %1409 = vmatprep.subr.mxu0 0.0
    %1410 = vmatpush1.msra.mxu0 0.0
    %1411 = vmatprep.subr.mxu0 0.0
    %1412 = vmatpush1.msra.mxu0 0.0
    %1413 = vmatprep.subr.mxu0 0.0
    %1414 = vmatpush1.msra.mxu0 0.0
    %1415 = vmatprep.subr.mxu0 0.0
    %1416 = vmatpush1.msra.mxu0 0.0
    %1417 = vmatprep.subr.mxu0 0.0
    %1418 = vmatpush1.msra.mxu0 0.0
    %1419 = vmatprep.subr.mxu0 0.0
    %1420 = vmatpush1.msra.mxu0 0.0
    %1421 = vmatprep.subr.mxu0 0.0
    %1422 = vmatpush1.msra.mxu0 0.0
    %1423 = vmatprep.subr.mxu0 0.0
    %1424 = vmatpush1.msra.mxu0 0.0
    %1425 = vmatprep.subr.mxu0 0.0
    %1426 = vmatpush1.msra.mxu0 0.0
    %1427 = vmatprep.subr.mxu0 0.0
    %1428 = vmatpush1.msra.mxu0 0.0
    %1429 = vmatprep.subr.mxu0 0.0
    %1430 = vmatpush1.msra.mxu0 0.0
    %1431 = vmatprep.mubr.f32.mxu0 0.0
    %1432 = vmatmul.mubr.f32.gmra.mrb[0].mxu0 %v1362
    %v1433 = vpop.f32.mrb[0].mxu0
    %v1434 = vadd.f32 0.0, %v1433
    %v1435 = vpop.f32.mrb[0].mxu0
    %1436 = vmatprep.mubr.f32.mxu0 0.0
    %1437 = vmatmul.mubr.f32.gmra.mrb[0].mxu0 %v1365
    %v1438 = vpop.f32.mrb[0].mxu0
    %v1439 = vadd.f32 0.0, %v1438
    %v1440 = vpop.f32.mrb[0].mxu0
    %1441 = vdwg.mxu0
    %1442 = vrot.lane.b32.xlu0 %v199, 96
    %v1443 = vpop.permute.xlu0 %1442
    %1444 = vrot.lane.b32.xlu0 %v205, 96
    %v1445 = vpop.permute.xlu0 %1444
    %1446 = vrot.lane.b32.xlu0 %v199, 32
    %v1447 = vpop.permute.xlu0 %1446
    %1448 = vrot.lane.b32.xlu0 %v205, 32
    %v1449 = vpop.permute.xlu0 %1448
    %v1450 = vsel %vm221, %v1443, 0
    %v1452 = vsel %vm221, %v1445, 0
    %v1454 = vsel %vm221, %v1447, 0
    %v1456 = vsel %vm221, %v1449, 0
    %1458 = vmatprep.subr.mxu0 0.0
    %1459 = vmatpush1.xpose.msra.mxu0 %v1454
    %1460 = vmatprep.subr.mxu0 0.0
    %1461 = vmatpush1.xpose.msra.mxu0 %v1456
    %1462 = vmatprep.subr.mxu0 0.0
    %1463 = vmatpush1.xpose.msra.mxu0 0.0
    %1464 = vmatprep.subr.mxu0 0.0
    %1465 = vmatpush1.xpose.msra.mxu0 0.0
    %1466 = vmatprep.subr.mxu0 0.0
    %1467 = vmatpush1.xpose.msra.mxu0 0.0
    %1468 = vmatprep.subr.mxu0 0.0
    %1469 = vmatpush1.xpose.msra.mxu0 0.0
    %1470 = vmatprep.subr.mxu0 0.0
    %1471 = vmatpush1.xpose.msra.mxu0 0.0
    %1472 = vmatprep.subr.mxu0 0.0
    %1473 = vmatpush1.xpose.msra.mxu0 0.0
    %1474 = vmatprep.subr.mxu0 0.0
    %1475 = vmatpush1.xpose.msra.mxu0 0.0
    %1476 = vmatprep.subr.mxu0 0.0
    %1477 = vmatpush1.xpose.msra.mxu0 0.0
    %1478 = vmatprep.subr.mxu0 0.0
    %1479 = vmatpush1.xpose.msra.mxu0 0.0
    %1480 = vmatprep.subr.mxu0 0.0
    %1481 = vmatpush1.xpose.msra.mxu0 0.0
    %1482 = vmatprep.subr.mxu0 0.0
    %1483 = vmatpush1.xpose.msra.mxu0 0.0
    %1484 = vmatprep.subr.mxu0 0.0
    %1485 = vmatpush1.xpose.msra.mxu0 0.0
    %1486 = vmatprep.subr.mxu0 0.0
    %1487 = vmatpush1.xpose.msra.mxu0 0.0
    %1488 = vmatprep.subr.mxu0 0.0
    %1489 = vmatpush1.xpose.msra.mxu0 0.0
    %1490 = vmatprep.subr.mxu0 0.0
    %1491 = vmatpush1.xpose.msra.mxu0 0.0
    %1492 = vmatprep.subr.mxu0 0.0
    %1493 = vmatpush1.xpose.msra.mxu0 0.0
    %1494 = vmatprep.subr.mxu0 0.0
    %1495 = vmatpush1.xpose.msra.mxu0 0.0
    %1496 = vmatprep.subr.mxu0 0.0
    %1497 = vmatpush1.xpose.msra.mxu0 0.0
    %1498 = vmatprep.subr.mxu0 0.0
    %1499 = vmatpush1.xpose.msra.mxu0 0.0
    %1500 = vmatprep.subr.mxu0 0.0
    %1501 = vmatpush1.xpose.msra.mxu0 0.0
    %1502 = vmatprep.subr.mxu0 0.0
    %1503 = vmatpush1.xpose.msra.mxu0 0.0
    %1504 = vmatprep.subr.mxu0 0.0
    %1505 = vmatpush1.xpose.msra.mxu0 0.0
    %1506 = vmatprep.subr.mxu0 0.0
    %1507 = vmatpush1.xpose.msra.mxu0 0.0
    %1508 = vmatprep.subr.mxu0 0.0
    %1509 = vmatpush1.xpose.msra.mxu0 0.0
    %1510 = vmatprep.subr.mxu0 0.0
    %1511 = vmatpush1.xpose.msra.mxu0 0.0
    %1512 = vmatprep.subr.mxu0 0.0
    %1513 = vmatpush1.xpose.msra.mxu0 0.0
    %1514 = vmatprep.subr.mxu0 0.0
    %1515 = vmatpush1.xpose.msra.mxu0 0.0
    %1516 = vmatprep.subr.mxu0 0.0
    %1517 = vmatpush1.xpose.msra.mxu0 0.0
    %1518 = vmatprep.subr.mxu0 0.0
    %1519 = vmatpush1.xpose.msra.mxu0 0.0
    %1520 = vmatprep.subr.mxu0 0.0
    %1521 = vmatpush1.xpose.msra.mxu0 0.0
    %1522 = vmatprep.mubr.f32.mxu0 0.0
    %1523 = vmatmul.mubr.f32.gmra.mrb[0].mxu0 %v1450
    %v1524 = vpop.f32.mrb[0].mxu0
    %v1525 = vadd.f32 %v1046, %v1524
    %v1526 = vpop.f32.mrb[0].mxu0
    %1527 = vmatprep.mubr.f32.mxu0 0.0
    %1528 = vmatmul.mubr.f32.gmra.mrb[0].mxu0 %v1452
    %v1529 = vpop.f32.mrb[0].mxu0
    %v1530 = vadd.f32 %v1046, %v1529
    %v1531 = vpop.f32.mrb[0].mxu0
    %1532 = vdwg.mxu0
    %v1533 = vsel %vm221, %v1525, -inf
    %1534 = vmax.xlane.f32.xlu0 %v1533
    %v1535 = vpop.xlane.xlu0 %1534
    %v1536 = vsel %vm221, %v1530, -inf
    %1537 = vmax.xlane.f32.xlu0 %v1536
    %v1538 = vpop.xlane.xlu0 %1537
    %v1539 = vsub.f32 %v1525, %v1535
    %v1540 = vsub.f32 %v1530, %v1538
    %v1541 = vmul.f32 %v1539, 1.442695
    %v1542 = vpow.pop %v1541
    %v1543 = vmul.f32 %v1540, 1.442695
    %v1544 = vpow.pop %v1543
    %v1545 = vsel %vm221, %v1542, 0.0
    %1546 = vadd.xlane.f32.xlu0 %v1545
    %v1547 = vpop.xlane.xlu0 %1546
    %v1548 = vsel %vm221, %v1544, 0.0
    %1549 = vadd.xlane.f32.xlu0 %v1548
    %v1550 = vpop.xlane.xlu0 %1549
    %v1551 = vrcp.pop %v1547
    %v1552 = vrcp.pop %v1550
    %v1553 = vmul.f32 %v1542, %v1551
    %v1554 = vmul.f32 %v1544, %v1552
    %1555 = vrot.lane.b32.xlu0 %v201, 96
    %v1556 = vpop.permute.xlu0 %1555
    %1557 = vrot.lane.b32.xlu0 %v207, 96
    %v1558 = vpop.permute.xlu0 %1557
    %v1562 = vsel %vm221, %v1553, 0
    %v1565 = vsel %vm221, %v1554, 0
    %1567 = vmatprep.subr.mxu0 0.0
    %1568 = vmatpush1.msra.mxu0 %v1556
    %1569 = vmatprep.subr.mxu0 0.0
    %1570 = vmatpush1.msra.mxu0 %v1558
    %1571 = vmatprep.subr.mxu0 0.0
    %1572 = vmatpush1.msra.mxu0 0.0
    %1573 = vmatprep.subr.mxu0 0.0
    %1574 = vmatpush1.msra.mxu0 0.0
    %1575 = vmatprep.subr.mxu0 0.0
    %1576 = vmatpush1.msra.mxu0 0.0
    %1577 = vmatprep.subr.mxu0 0.0
    %1578 = vmatpush1.msra.mxu0 0.0
    %1579 = vmatprep.subr.mxu0 0.0
    %1580 = vmatpush1.msra.mxu0 0.0
    %1581 = vmatprep.subr.mxu0 0.0
    %1582 = vmatpush1.msra.mxu0 0.0
    %1583 = vmatprep.subr.mxu0 0.0
    %1584 = vmatpush1.msra.mxu0 0.0
    %1585 = vmatprep.subr.mxu0 0.0
    %1586 = vmatpush1.msra.mxu0 0.0
    %1587 = vmatprep.subr.mxu0 0.0
    %1588 = vmatpush1.msra.mxu0 0.0
    %1589 = vmatprep.subr.mxu0 0.0
    %1590 = vmatpush1.msra.mxu0 0.0
    %1591 = vmatprep.subr.mxu0 0.0
    %1592 = vmatpush1.msra.mxu0 0.0
    %1593 = vmatprep.subr.mxu0 0.0
    %1594 = vmatpush1.msra.mxu0 0.0
    %1595 = vmatprep.subr.mxu0 0.0
    %1596 = vmatpush1.msra.mxu0 0.0
    %1597 = vmatprep.subr.mxu0 0.0
    %1598 = vmatpush1.msra.mxu0 0.0
    %1599 = vmatprep.subr.mxu0 0.0
    %1600 = vmatpush1.msra.mxu0 0.0
    %1601 = vmatprep.subr.mxu0 0.0
    %1602 = vmatpush1.msra.mxu0 0.0
    %1603 = vmatprep.subr.mxu0 0.0
    %1604 = vmatpush1.msra.mxu0 0.0
    %1605 = vmatprep.subr.mxu0 0.0
    %1606 = vmatpush1.msra.mxu0 0.0
    %1607 = vmatprep.subr.mxu0 0.0
    %1608 = vmatpush1.msra.mxu0 0.0
    %1609 = vmatprep.subr.mxu0 0.0
    %1610 = vmatpush1.msra.mxu0 0.0
    %1611 = vmatprep.subr.mxu0 0.0
    %1612 = vmatpush1.msra.mxu0 0.0
    %1613 = vmatprep.subr.mxu0 0.0
    %1614 = vmatpush1.msra.mxu0 0.0
    %1615 = vmatprep.subr.mxu0 0.0
    %1616 = vmatpush1.msra.mxu0 0.0
    %1617 = vmatprep.subr.mxu0 0.0
    %1618 = vmatpush1.msra.mxu0 0.0
    %1619 = vmatprep.subr.mxu0 0.0
    %1620 = vmatpush1.msra.mxu0 0.0
    %1621 = vmatprep.subr.mxu0 0.0
    %1622 = vmatpush1.msra.mxu0 0.0
    %1623 = vmatprep.subr.mxu0 0.0
    %1624 = vmatpush1.msra.mxu0 0.0
    %1625 = vmatprep.subr.mxu0 0.0
    %1626 = vmatpush1.msra.mxu0 0.0
    %1627 = vmatprep.subr.mxu0 0.0
    %1628 = vmatpush1.msra.mxu0 0.0
    %1629 = vmatprep.subr.mxu0 0.0
    %1630 = vmatpush1.msra.mxu0 0.0
    %1631 = vmatprep.mubr.f32.mxu0 0.0
    %1632 = vmatmul.mubr.f32.gmra.mrb[0].mxu0 %v1562
    %v1633 = vpop.f32.mrb[0].mxu0
    %v1634 = vadd.f32 0.0, %v1633
    %v1635 = vpop.f32.mrb[0].mxu0
    %1636 = vmatprep.mubr.f32.mxu0 0.0
    %1637 = vmatmul.mubr.f32.gmra.mrb[0].mxu0 %v1565
    %v1638 = vpop.f32.mrb[0].mxu0
    %v1639 = vadd.f32 0.0, %v1638
    %v1640 = vpop.f32.mrb[0].mxu0
    %1641 = vdwg.mxu0
    %1642 = vrot.lane.b32.xlu0 %v199, 80
    %v1643 = vpop.permute.xlu0 %1642
    %1644 = vrot.lane.b32.xlu0 %v205, 80
    %v1645 = vpop.permute.xlu0 %1644
    %1646 = vrot.lane.b32.xlu0 %v199, 16
    %v1647 = vpop.permute.xlu0 %1646
    %1648 = vrot.lane.b32.xlu0 %v205, 16
    %v1649 = vpop.permute.xlu0 %1648
    %v1650 = vsel %vm221, %v1643, 0
    %v1652 = vsel %vm221, %v1645, 0
    %v1654 = vsel %vm221, %v1647, 0
    %v1656 = vsel %vm221, %v1649, 0
    %1658 = vmatprep.subr.mxu0 0.0
    %1659 = vmatpush1.xpose.msra.mxu0 %v1654
    %1660 = vmatprep.subr.mxu0 0.0
    %1661 = vmatpush1.xpose.msra.mxu0 %v1656
    %1662 = vmatprep.subr.mxu0 0.0
    %1663 = vmatpush1.xpose.msra.mxu0 0.0
    %1664 = vmatprep.subr.mxu0 0.0
    %1665 = vmatpush1.xpose.msra.mxu0 0.0
    %1666 = vmatprep.subr.mxu0 0.0
    %1667 = vmatpush1.xpose.msra.mxu0 0.0
    %1668 = vmatprep.subr.mxu0 0.0
    %1669 = vmatpush1.xpose.msra.mxu0 0.0
    %1670 = vmatprep.subr.mxu0 0.0
    %1671 = vmatpush1.xpose.msra.mxu0 0.0
    %1672 = vmatprep.subr.mxu0 0.0
    %1673 = vmatpush1.xpose.msra.mxu0 0.0
    %1674 = vmatprep.subr.mxu0 0.0
    %1675 = vmatpush1.xpose.msra.mxu0 0.0
    %1676 = vmatprep.subr.mxu0 0.0
    %1677 = vmatpush1.xpose.msra.mxu0 0.0
    %1678 = vmatprep.subr.mxu0 0.0
    %1679 = vmatpush1.xpose.msra.mxu0 0.0
    %1680 = vmatprep.subr.mxu0 0.0
    %1681 = vmatpush1.xpose.msra.mxu0 0.0
    %1682 = vmatprep.subr.mxu0 0.0
    %1683 = vmatpush1.xpose.msra.mxu0 0.0
    %1684 = vmatprep.subr.mxu0 0.0
    %1685 = vmatpush1.xpose.msra.mxu0 0.0
    %1686 = vmatprep.subr.mxu0 0.0
    %1687 = vmatpush1.xpose.msra.mxu0 0.0
    %1688 = vmatprep.subr.mxu0 0.0
    %1689 = vmatpush1.xpose.msra.mxu0 0.0
    %1690 = vmatprep.subr.mxu0 0.0
    %1691 = vmatpush1.xpose.msra.mxu0 0.0
    %1692 = vmatprep.subr.mxu0 0.0
    %1693 = vmatpush1.xpose.msra.mxu0 0.0
    %1694 = vmatprep.subr.mxu0 0.0
    %1695 = vmatpush1.xpose.msra.mxu0 0.0
    %1696 = vmatprep.subr.mxu0 0.0
    %1697 = vmatpush1.xpose.msra.mxu0 0.0
    %1698 = vmatprep.subr.mxu0 0.0
    %1699 = vmatpush1.xpose.msra.mxu0 0.0
    %1700 = vmatprep.subr.mxu0 0.0
    %1701 = vmatpush1.xpose.msra.mxu0 0.0
    %1702 = vmatprep.subr.mxu0 0.0
    %1703 = vmatpush1.xpose.msra.mxu0 0.0
    %1704 = vmatprep.subr.mxu0 0.0
    %1705 = vmatpush1.xpose.msra.mxu0 0.0
    %1706 = vmatprep.subr.mxu0 0.0
    %1707 = vmatpush1.xpose.msra.mxu0 0.0
    %1708 = vmatprep.subr.mxu0 0.0
    %1709 = vmatpush1.xpose.msra.mxu0 0.0
    %1710 = vmatprep.subr.mxu0 0.0
    %1711 = vmatpush1.xpose.msra.mxu0 0.0
    %1712 = vmatprep.subr.mxu0 0.0
    %1713 = vmatpush1.xpose.msra.mxu0 0.0
    %1714 = vmatprep.subr.mxu0 0.0
    %1715 = vmatpush1.xpose.msra.mxu0 0.0
    %1716 = vmatprep.subr.mxu0 0.0
    %1717 = vmatpush1.xpose.msra.mxu0 0.0
    %1718 = vmatprep.subr.mxu0 0.0
    %1719 = vmatpush1.xpose.msra.mxu0 0.0
    %1720 = vmatprep.subr.mxu0 0.0
    %1721 = vmatpush1.xpose.msra.mxu0 0.0
    %1722 = vmatprep.mubr.f32.mxu0 0.0
    %1723 = vmatmul.mubr.f32.gmra.mrb[0].mxu0 %v1650
    %v1724 = vpop.f32.mrb[0].mxu0
    %v1725 = vadd.f32 %v1046, %v1724
    %v1726 = vpop.f32.mrb[0].mxu0
    %1727 = vmatprep.mubr.f32.mxu0 0.0
    %1728 = vmatmul.mubr.f32.gmra.mrb[0].mxu0 %v1652
    %v1729 = vpop.f32.mrb[0].mxu0
    %v1730 = vadd.f32 %v1046, %v1729
    %v1731 = vpop.f32.mrb[0].mxu0
    %1732 = vdwg.mxu0
    %v1733 = vsel %vm221, %v1725, -inf
    %1734 = vmax.xlane.f32.xlu0 %v1733
    %v1735 = vpop.xlane.xlu0 %1734
    %v1736 = vsel %vm221, %v1730, -inf
    %1737 = vmax.xlane.f32.xlu0 %v1736
    %v1738 = vpop.xlane.xlu0 %1737
    %v1739 = vsub.f32 %v1725, %v1735
    %v1740 = vsub.f32 %v1730, %v1738
    %v1741 = vmul.f32 %v1739, 1.442695
    %v1742 = vpow.pop %v1741
    %v1743 = vmul.f32 %v1740, 1.442695
    %v1744 = vpow.pop %v1743
    %v1745 = vsel %vm221, %v1742, 0.0
    %1746 = vadd.xlane.f32.xlu0 %v1745
    %v1747 = vpop.xlane.xlu0 %1746
    %v1748 = vsel %vm221, %v1744, 0.0
    %1749 = vadd.xlane.f32.xlu0 %v1748
    %v1750 = vpop.xlane.xlu0 %1749
    %v1751 = vrcp.pop %v1747
    %v1752 = vrcp.pop %v1750
    %v1753 = vmul.f32 %v1742, %v1751
    %v1754 = vmul.f32 %v1744, %v1752
    %1755 = vrot.lane.b32.xlu0 %v201, 80
    %v1756 = vpop.permute.xlu0 %1755
    %1757 = vrot.lane.b32.xlu0 %v207, 80
    %v1758 = vpop.permute.xlu0 %1757
    %v1762 = vsel %vm221, %v1753, 0
    %v1765 = vsel %vm221, %v1754, 0
    %1767 = vmatprep.subr.mxu0 0.0
    %1768 = vmatpush1.msra.mxu0 %v1756
    %1769 = vmatprep.subr.mxu0 0.0
    %1770 = vmatpush1.msra.mxu0 %v1758
    %1771 = vmatprep.subr.mxu0 0.0
    %1772 = vmatpush1.msra.mxu0 0.0
    %1773 = vmatprep.subr.mxu0 0.0
    %1774 = vmatpush1.msra.mxu0 0.0
    %1775 = vmatprep.subr.mxu0 0.0
    %1776 = vmatpush1.msra.mxu0 0.0
    %1777 = vmatprep.subr.mxu0 0.0
    %1778 = vmatpush1.msra.mxu0 0.0
    %1779 = vmatprep.subr.mxu0 0.0
    %1780 = vmatpush1.msra.mxu0 0.0
    %1781 = vmatprep.subr.mxu0 0.0
    %1782 = vmatpush1.msra.mxu0 0.0
    %1783 = vmatprep.subr.mxu0 0.0
    %1784 = vmatpush1.msra.mxu0 0.0
    %1785 = vmatprep.subr.mxu0 0.0
    %1786 = vmatpush1.msra.mxu0 0.0
    %1787 = vmatprep.subr.mxu0 0.0
    %1788 = vmatpush1.msra.mxu0 0.0
    %1789 = vmatprep.subr.mxu0 0.0
    %1790 = vmatpush1.msra.mxu0 0.0
    %1791 = vmatprep.subr.mxu0 0.0
    %1792 = vmatpush1.msra.mxu0 0.0
    %1793 = vmatprep.subr.mxu0 0.0
    %1794 = vmatpush1.msra.mxu0 0.0
    %1795 = vmatprep.subr.mxu0 0.0
    %1796 = vmatpush1.msra.mxu0 0.0
    %1797 = vmatprep.subr.mxu0 0.0
    %1798 = vmatpush1.msra.mxu0 0.0
    %1799 = vmatprep.subr.mxu0 0.0
    %1800 = vmatpush1.msra.mxu0 0.0
    %1801 = vmatprep.subr.mxu0 0.0
    %1802 = vmatpush1.msra.mxu0 0.0
    %1803 = vmatprep.subr.mxu0 0.0
    %1804 = vmatpush1.msra.mxu0 0.0
    %1805 = vmatprep.subr.mxu0 0.0
    %1806 = vmatpush1.msra.mxu0 0.0
    %1807 = vmatprep.subr.mxu0 0.0
    %1808 = vmatpush1.msra.mxu0 0.0
    %1809 = vmatprep.subr.mxu0 0.0
    %1810 = vmatpush1.msra.mxu0 0.0
    %1811 = vmatprep.subr.mxu0 0.0
    %1812 = vmatpush1.msra.mxu0 0.0
    %1813 = vmatprep.subr.mxu0 0.0
    %1814 = vmatpush1.msra.mxu0 0.0
    %1815 = vmatprep.subr.mxu0 0.0
    %1816 = vmatpush1.msra.mxu0 0.0
    %1817 = vmatprep.subr.mxu0 0.0
    %1818 = vmatpush1.msra.mxu0 0.0
    %1819 = vmatprep.subr.mxu0 0.0
    %1820 = vmatpush1.msra.mxu0 0.0
    %1821 = vmatprep.subr.mxu0 0.0
    %1822 = vmatpush1.msra.mxu0 0.0
    %1823 = vmatprep.subr.mxu0 0.0
    %1824 = vmatpush1.msra.mxu0 0.0
    %1825 = vmatprep.subr.mxu0 0.0
    %1826 = vmatpush1.msra.mxu0 0.0
    %1827 = vmatprep.subr.mxu0 0.0
    %1828 = vmatpush1.msra.mxu0 0.0
    %1829 = vmatprep.subr.mxu0 0.0
    %1830 = vmatpush1.msra.mxu0 0.0
    %1831 = vmatprep.mubr.f32.mxu0 0.0
    %1832 = vmatmul.mubr.f32.gmra.mrb[0].mxu0 %v1762
    %v1833 = vpop.f32.mrb[0].mxu0
    %v1834 = vadd.f32 0.0, %v1833
    %v1835 = vpop.f32.mrb[0].mxu0
    %1836 = vmatprep.mubr.f32.mxu0 0.0
    %1837 = vmatmul.mubr.f32.gmra.mrb[0].mxu0 %v1765
    %v1838 = vpop.f32.mrb[0].mxu0
    %v1839 = vadd.f32 0.0, %v1838
    %v1840 = vpop.f32.mrb[0].mxu0
    %1841 = vdwg.mxu0
    %1844 = vrot.lane.b32.xlu0 %v1434, 16
    %v1845 = vpop.permute.xlu0 %1844
    %1846 = vrot.lane.b32.xlu0 %v1439, 16
    %v1847 = vpop.permute.xlu0 %1846
    %1852 = vrot.lane.b32.xlu0 %v1634, 32
    %v1853 = vpop.permute.xlu0 %1852
    %1854 = vrot.lane.b32.xlu0 %v1639, 32
    %v1855 = vpop.permute.xlu0 %1854
    %1860 = vrot.lane.b32.xlu0 %v1834, 48
    %v1861 = vpop.permute.xlu0 %1860
    %1862 = vrot.lane.b32.xlu0 %v1839, 48
    %v1863 = vpop.permute.xlu0 %1862
    %v1866 = vsel %vm221, %v1232, %v1845
    %v1867 = vsel %vm221, %v1237, %v1847
    %v1868 = vsel %vm1036, %v1866, %v1853
    %v1869 = vsel %vm1036, %v1867, %v1855
    %v1870 = vsel %vm1039, %v1868, %v1861
    %v1871 = vsel %vm1039, %v1869, %v1863
    %v1872 = vld [vmem:[%s5] sm:$0xff]
    %v1873 = vld [vmem:[%s5 + $0x8] sm:$0xff]
    %v1874 = vld [vmem:[%s5 + $0x10] sm:$0xff]
    %v1875 = vld [vmem:[%s5 + $0x18] sm:$0xff]
    %v1876 = vld [vmem:[%s5 + $0x20] sm:$0xff]
    %v1877 = vld [vmem:[%s5 + $0x28] sm:$0xff]
    %v1878 = vld [vmem:[%s5 + $0x30] sm:$0xff]
    %v1879 = vld [vmem:[%s5 + $0x38] sm:$0xff]
    %v1880 = vld [vmem:[%s6] sm:$0x1]
    %v1882 = vlaneseq
    %v1883 = vshrl.u32 %v1882, 7
    %v1884 = vsub.s32 0, %v1883
    %v1885 = vrot.slane %v1880, %v1884
    %v1888 = vsel %vm107, %v1040, 0
    %v1891 = vsel %vm107, %v1041, 0
    %v1894 = vsel %vm107, %v1870, 0
    %v1897 = vsel %vm107, %v1871, 0
    %1899 = vmatprep.subr.mxu0 0.0
    %1900 = vmatpush1.msra.mxu0 %v1872
    %1901 = vmatprep.subr.mxu0 0.0
    %1902 = vmatpush1.msra.mxu0 %v1873
    %1903 = vmatprep.subr.mxu0 0.0
    %1904 = vmatpush1.msra.mxu0 %v1874
    %1905 = vmatprep.subr.mxu0 0.0
    %1906 = vmatpush1.msra.mxu0 %v1875
    %1907 = vmatprep.subr.mxu0 0.0
    %1908 = vmatpush1.msra.mxu0 %v1876
    %1909 = vmatprep.subr.mxu0 0.0
    %1910 = vmatpush1.msra.mxu0 %v1877
    %1911 = vmatprep.subr.mxu0 0.0
    %1912 = vmatpush1.msra.mxu0 %v1878
    %1913 = vmatprep.subr.mxu0 0.0
    %1914 = vmatpush1.msra.mxu0 %v1879
    %1915 = vmatprep.subr.mxu0 0.0
    %1916 = vmatpush1.msra.mxu0 0.0
    %1917 = vmatprep.subr.mxu0 0.0
    %1918 = vmatpush1.msra.mxu0 0.0
    %1919 = vmatprep.subr.mxu0 0.0
    %1920 = vmatpush1.msra.mxu0 0.0
    %1921 = vmatprep.subr.mxu0 0.0
    %1922 = vmatpush1.msra.mxu0 0.0
    %1923 = vmatprep.subr.mxu0 0.0
    %1924 = vmatpush1.msra.mxu0 0.0
    %1925 = vmatprep.subr.mxu0 0.0
    %1926 = vmatpush1.msra.mxu0 0.0
    %1927 = vmatprep.subr.mxu0 0.0
    %1928 = vmatpush1.msra.mxu0 0.0
    %1929 = vmatprep.subr.mxu0 0.0
    %1930 = vmatpush1.msra.mxu0 0.0
    %1931 = vmatprep.subr.mxu0 0.0
    %1932 = vmatpush1.msra.mxu0 0.0
    %1933 = vmatprep.subr.mxu0 0.0
    %1934 = vmatpush1.msra.mxu0 0.0
    %1935 = vmatprep.subr.mxu0 0.0
    %1936 = vmatpush1.msra.mxu0 0.0
    %1937 = vmatprep.subr.mxu0 0.0
    %1938 = vmatpush1.msra.mxu0 0.0
    %1939 = vmatprep.subr.mxu0 0.0
    %1940 = vmatpush1.msra.mxu0 0.0
    %1941 = vmatprep.subr.mxu0 0.0
    %1942 = vmatpush1.msra.mxu0 0.0
    %1943 = vmatprep.subr.mxu0 0.0
    %1944 = vmatpush1.msra.mxu0 0.0
    %1945 = vmatprep.subr.mxu0 0.0
    %1946 = vmatpush1.msra.mxu0 0.0
    %1947 = vmatprep.subr.mxu0 0.0
    %1948 = vmatpush1.msra.mxu0 0.0
    %1949 = vmatprep.subr.mxu0 0.0
    %1950 = vmatpush1.msra.mxu0 0.0
    %1951 = vmatprep.subr.mxu0 0.0
    %1952 = vmatpush1.msra.mxu0 0.0
    %1953 = vmatprep.subr.mxu0 0.0
    %1954 = vmatpush1.msra.mxu0 0.0
    %1955 = vmatprep.subr.mxu0 0.0
    %1956 = vmatpush1.msra.mxu0 0.0
    %1957 = vmatprep.subr.mxu0 0.0
    %1958 = vmatpush1.msra.mxu0 0.0
    %1959 = vmatprep.subr.mxu0 0.0
    %1960 = vmatpush1.msra.mxu0 0.0
    %1961 = vmatprep.subr.mxu0 0.0
    %1962 = vmatpush1.msra.mxu0 0.0
    %1963 = vmatprep.mubr.f32.mxu0 0.0
    %1964 = vmatmul.mubr.f32.gmra.mrb[0].mxu0 %v1888
    %v1965 = vpop.f32.mrb[0].mxu0
    %v1966 = vadd.f32 %v1885, %v1965
    %v1967 = vpop.f32.mrb[0].mxu0
    %1968 = vmatprep.mubr.f32.mxu0 0.0
    %1969 = vmatmul.mubr.f32.gmra.mrb[0].mxu0 %v1891
    %v1970 = vpop.f32.mrb[0].mxu0
    %v1971 = vadd.f32 %v1885, %v1970
    %v1972 = vpop.f32.mrb[0].mxu0
    %1973 = vmatprep.mubr.f32.mxu0 0.0
    %1974 = vmatmul.mubr.f32.gmra.mrb[0].mxu0 %v1894
    %v1975 = vpop.f32.mrb[0].mxu0
    %v1976 = vadd.f32 %v1885, %v1975
    %v1977 = vpop.f32.mrb[0].mxu0
    %1978 = vmatprep.mubr.f32.mxu0 0.0
    %1979 = vmatmul.mubr.f32.gmra.mrb[0].mxu0 %v1897
    %v1980 = vpop.f32.mrb[0].mxu0
    %v1981 = vadd.f32 %v1885, %v1980
    %v1982 = vpop.f32.mrb[0].mxu0
    %1983 = vdwg.mxu0
    %v1984 = vadd.f32 %v69, %v1966
    %v1985 = vadd.f32 %v70, %v1971
    %v1986 = vadd.f32 %v71, %v1976
    %v1987 = vadd.f32 %v72, %v1981
    %v1988 = vld [vmem:[%s7] sm:$0x1]
    %v1989 = vld [vmem:[%s8] sm:$0x1]
    %v1990 = vsel %vm107, %v1984, 0.0
    %1991 = vadd.xlane.f32.xlu0 %v1990
    %v1992 = vpop.xlane.xlu0 %1991
    %v1993 = vsel %vm107, %v1985, 0.0
    %1994 = vadd.xlane.f32.xlu0 %v1993
    %v1995 = vpop.xlane.xlu0 %1994
    %v1996 = vsel %vm107, %v1986, 0.0
    %1997 = vadd.xlane.f32.xlu0 %v1996
    %v1998 = vpop.xlane.xlu0 %1997
    %v1999 = vsel %vm107, %v1987, 0.0
    %2000 = vadd.xlane.f32.xlu0 %v1999
    %v2001 = vpop.xlane.xlu0 %2000
    %v2002 = vrcp.pop 64.0
    %v2003 = vmul.f32 %v1992, %v2002
    %v2004 = vmul.f32 %v1995, %v2002
    %v2005 = vmul.f32 %v1998, %v2002
    %v2006 = vmul.f32 %v2001, %v2002
    %v2007 = vsub.f32 %v1984, %v2003
    %v2008 = vsub.f32 %v1985, %v2004
    %v2009 = vsub.f32 %v1986, %v2005
    %v2010 = vsub.f32 %v1987, %v2006
    %v2011 = vmul.f32 %v2007, %v2007
    %v2012 = vmul.f32 %v2008, %v2008
    %v2013 = vmul.f32 %v2009, %v2009
    %v2014 = vmul.f32 %v2010, %v2010
    %v2015 = vsel %vm107, %v2011, 0.0
    %2016 = vadd.xlane.f32.xlu0 %v2015
    %v2017 = vpop.xlane.xlu0 %2016
    %v2018 = vsel %vm107, %v2012, 0.0
    %2019 = vadd.xlane.f32.xlu0 %v2018
    %v2020 = vpop.xlane.xlu0 %2019
    %v2021 = vsel %vm107, %v2013, 0.0
    %2022 = vadd.xlane.f32.xlu0 %v2021
    %v2023 = vpop.xlane.xlu0 %2022
    %v2024 = vsel %vm107, %v2014, 0.0
    %2025 = vadd.xlane.f32.xlu0 %v2024
    %v2026 = vpop.xlane.xlu0 %2025
    %v2027 = vmul.f32 %v2017, %v2002
    %v2028 = vmul.f32 %v2020, %v2002
    %v2029 = vmul.f32 %v2023, %v2002
    %v2030 = vmul.f32 %v2026, %v2002
    %v2031 = vadd.f32 %v2027, 1e-05
    %v2032 = vadd.f32 %v2028, 1e-05
    %v2033 = vadd.f32 %v2029, 1e-05
    %v2034 = vadd.f32 %v2030, 1e-05
    %v2035 = vrsqrt.pop %v2031
    %v2036 = vrsqrt.pop %v2032
    %v2037 = vrsqrt.pop %v2033
    %v2038 = vrsqrt.pop %v2034
    %v2039 = vmul.f32 %v2007, %v2035
    %v2040 = vmul.f32 %v2008, %v2036
    %v2041 = vmul.f32 %v2009, %v2037
    %v2042 = vmul.f32 %v2010, %v2038
    %v2044 = vlaneseq
    %v2045 = vshrl.u32 %v2044, 7
    %v2046 = vsub.s32 0, %v2045
    %v2047 = vrot.slane %v1988, %v2046
    %v2049 = vmul.f32 %v2039, %v2047
    %v2050 = vmul.f32 %v2040, %v2047
    %v2051 = vmul.f32 %v2041, %v2047
    %v2052 = vmul.f32 %v2042, %v2047
    %v2054 = vlaneseq
    %v2055 = vshrl.u32 %v2054, 7
    %v2056 = vsub.s32 0, %v2055
    %v2057 = vrot.slane %v1989, %v2056
    %v2059 = vadd.f32 %v2049, %v2057
    %v2060 = vadd.f32 %v2050, %v2057
    %v2061 = vadd.f32 %v2051, %v2057
    %v2062 = vadd.f32 %v2052, %v2057
    %v2063 = vld [vmem:[%s9] sm:$0xff]
    %v2064 = vld [vmem:[%s9 + $0x8] sm:$0xff]
    %v2065 = vld [vmem:[%s9 + $0x10] sm:$0xff]
    %v2066 = vld [vmem:[%s9 + $0x18] sm:$0xff]
    %v2067 = vld [vmem:[%s9 + $0x20] sm:$0xff]
    %v2068 = vld [vmem:[%s9 + $0x28] sm:$0xff]
    %v2069 = vld [vmem:[%s9 + $0x30] sm:$0xff]
    %v2070 = vld [vmem:[%s9 + $0x38] sm:$0xff]
    %v2071 = vld [vmem:[%s9 + $0x40] sm:$0xff]
    %v2072 = vld [vmem:[%s9 + $0x48] sm:$0xff]
    %v2073 = vld [vmem:[%s9 + $0x50] sm:$0xff]
    %v2074 = vld [vmem:[%s9 + $0x58] sm:$0xff]
    %v2075 = vld [vmem:[%s9 + $0x60] sm:$0xff]
    %v2076 = vld [vmem:[%s9 + $0x68] sm:$0xff]
    %v2077 = vld [vmem:[%s9 + $0x70] sm:$0xff]
    %v2078 = vld [vmem:[%s9 + $0x78] sm:$0xff]
    %v2079 = vld [vmem:[%s10] sm:$0x3]
    %v2081 = vlaneseq
    %v2082 = vshrl.u32 %v2081, 7
    %v2083 = vsub.s32 0, %v2082
    %v2084 = vrot.slane %v2079, %v2083
    %v2085 = vlaneseq
    %v2086 = vshrl.u32 %v2085, 7
    %v2087 = vsub.s32 1, %v2086
    %v2088 = vrot.slane %v2079, %v2087
    %v2092 = vsel %vm107, %v2059, 0
    %v2095 = vsel %vm107, %v2060, 0
    %v2098 = vsel %vm107, %v2061, 0
    %v2101 = vsel %vm107, %v2062, 0
    %2103 = vmatprep.subr.mxu0 %v2064
    %2104 = vmatpush1.msra.mxu0 %v2063
    %2105 = vmatprep.subr.mxu0 %v2066
    %2106 = vmatpush1.msra.mxu0 %v2065
    %2107 = vmatprep.subr.mxu0 %v2068
    %2108 = vmatpush1.msra.mxu0 %v2067
    %2109 = vmatprep.subr.mxu0 %v2070
    %2110 = vmatpush1.msra.mxu0 %v2069
    %2111 = vmatprep.subr.mxu0 %v2072
    %2112 = vmatpush1.msra.mxu0 %v2071
    %2113 = vmatprep.subr.mxu0 %v2074
    %2114 = vmatpush1.msra.mxu0 %v2073
    %2115 = vmatprep.subr.mxu0 %v2076
    %2116 = vmatpush1.msra.mxu0 %v2075
    %2117 = vmatprep.subr.mxu0 %v2078
    %2118 = vmatpush1.msra.mxu0 %v2077
    %2119 = vmatprep.subr.mxu0 0.0
    %2120 = vmatpush1.msra.mxu0 0.0
    %2121 = vmatprep.subr.mxu0 0.0
    %2122 = vmatpush1.msra.mxu0 0.0
    %2123 = vmatprep.subr.mxu0 0.0
    %2124 = vmatpush1.msra.mxu0 0.0
    %2125 = vmatprep.subr.mxu0 0.0
    %2126 = vmatpush1.msra.mxu0 0.0
    %2127 = vmatprep.subr.mxu0 0.0
    %2128 = vmatpush1.msra.mxu0 0.0
    %2129 = vmatprep.subr.mxu0 0.0
    %2130 = vmatpush1.msra.mxu0 0.0
    %2131 = vmatprep.subr.mxu0 0.0
    %2132 = vmatpush1.msra.mxu0 0.0
    %2133 = vmatprep.subr.mxu0 0.0
    %2134 = vmatpush1.msra.mxu0 0.0
    %2135 = vmatprep.subr.mxu0 0.0
    %2136 = vmatpush1.msra.mxu0 0.0
    %2137 = vmatprep.subr.mxu0 0.0
    %2138 = vmatpush1.msra.mxu0 0.0
    %2139 = vmatprep.subr.mxu0 0.0
    %2140 = vmatpush1.msra.mxu0 0.0
    %2141 = vmatprep.subr.mxu0 0.0
    %2142 = vmatpush1.msra.mxu0 0.0
    %2143 = vmatprep.subr.mxu0 0.0
    %2144 = vmatpush1.msra.mxu0 0.0
    %2145 = vmatprep.subr.mxu0 0.0
    %2146 = vmatpush1.msra.mxu0 0.0
    %2147 = vmatprep.subr.mxu0 0.0
    %2148 = vmatpush1.msra.mxu0 0.0
    %2149 = vmatprep.subr.mxu0 0.0
    %2150 = vmatpush1.msra.mxu0 0.0
    %2151 = vmatprep.subr.mxu0 0.0
    %2152 = vmatpush1.msra.mxu0 0.0
    %2153 = vmatprep.subr.mxu0 0.0
    %2154 = vmatpush1.msra.mxu0 0.0
    %2155 = vmatprep.subr.mxu0 0.0
    %2156 = vmatpush1.msra.mxu0 0.0
    %2157 = vmatprep.subr.mxu0 0.0
    %2158 = vmatpush1.msra.mxu0 0.0
    %2159 = vmatprep.subr.mxu0 0.0
    %2160 = vmatpush1.msra.mxu0 0.0
    %2161 = vmatprep.subr.mxu0 0.0
    %2162 = vmatpush1.msra.mxu0 0.0
    %2163 = vmatprep.subr.mxu0 0.0
    %2164 = vmatpush1.msra.mxu0 0.0
    %2165 = vmatprep.subr.mxu0 0.0
    %2166 = vmatpush1.msra.mxu0 0.0
    %2167 = vmatprep.mubr.f32.mxu0 0.0
    %2168 = vmatmul.mubr.f32.gmra.mrb[0].mxu0 %v2092
    %v2169 = vpop.f32.mrb[0].mxu0
    %v2170 = vadd.f32 %v2084, %v2169
    %v2171 = vpop.f32.mrb[0].mxu0
    %v2172 = vadd.f32 %v2088, %v2171
    %2173 = vmatprep.mubr.f32.mxu0 0.0
    %2174 = vmatmul.mubr.f32.gmra.mrb[0].mxu0 %v2095
    %v2175 = vpop.f32.mrb[0].mxu0
    %v2176 = vadd.f32 %v2084, %v2175
    %v2177 = vpop.f32.mrb[0].mxu0
    %v2178 = vadd.f32 %v2088, %v2177
    %2179 = vmatprep.mubr.f32.mxu0 0.0
    %2180 = vmatmul.mubr.f32.gmra.mrb[0].mxu0 %v2098
    %v2181 = vpop.f32.mrb[0].mxu0
    %v2182 = vadd.f32 %v2084, %v2181
    %v2183 = vpop.f32.mrb[0].mxu0
    %v2184 = vadd.f32 %v2088, %v2183
    %2185 = vmatprep.mubr.f32.mxu0 0.0
    %2186 = vmatmul.mubr.f32.gmra.mrb[0].mxu0 %v2101
    %v2187 = vpop.f32.mrb[0].mxu0
    %v2188 = vadd.f32 %v2084, %v2187
    %v2189 = vpop.f32.mrb[0].mxu0
    %v2190 = vadd.f32 %v2088, %v2189
    %2191 = vdwg.mxu0
    %v2192 = vmax.f32 %v2170, 0.0
    %v2193 = vmax.f32 %v2172, 0.0
    %v2194 = vmax.f32 %v2176, 0.0
    %v2195 = vmax.f32 %v2178, 0.0
    %v2196 = vmax.f32 %v2182, 0.0
    %v2197 = vmax.f32 %v2184, 0.0
    %v2198 = vmax.f32 %v2188, 0.0
    %v2199 = vmax.f32 %v2190, 0.0
    %v2200 = vld [vmem:[%s11] sm:$0xff]
    %v2201 = vld [vmem:[%s11 + $0x8] sm:$0xff]
    %v2202 = vld [vmem:[%s11 + $0x10] sm:$0xff]
    %v2203 = vld [vmem:[%s11 + $0x18] sm:$0xff]
    %v2204 = vld [vmem:[%s11 + $0x20] sm:$0xff]
    %v2205 = vld [vmem:[%s11 + $0x28] sm:$0xff]
    %v2206 = vld [vmem:[%s11 + $0x30] sm:$0xff]
    %v2207 = vld [vmem:[%s11 + $0x38] sm:$0xff]
    %v2208 = vld [vmem:[%s11 + $0x40] sm:$0xff]
    %v2209 = vld [vmem:[%s11 + $0x48] sm:$0xff]
    %v2210 = vld [vmem:[%s11 + $0x50] sm:$0xff]
    %v2211 = vld [vmem:[%s11 + $0x58] sm:$0xff]
    %v2212 = vld [vmem:[%s11 + $0x60] sm:$0xff]
    %v2213 = vld [vmem:[%s11 + $0x68] sm:$0xff]
    %v2214 = vld [vmem:[%s11 + $0x70] sm:$0xff]
    %v2215 = vld [vmem:[%s11 + $0x78] sm:$0xff]
    %v2216 = vld [vmem:[%s11 + $0x80] sm:$0xff]
    %v2217 = vld [vmem:[%s11 + $0x88] sm:$0xff]
    %v2218 = vld [vmem:[%s11 + $0x90] sm:$0xff]
    %v2219 = vld [vmem:[%s11 + $0x98] sm:$0xff]
    %v2220 = vld [vmem:[%s11 + $0xa0] sm:$0xff]
    %v2221 = vld [vmem:[%s11 + $0xa8] sm:$0xff]
    %v2222 = vld [vmem:[%s11 + $0xb0] sm:$0xff]
    %v2223 = vld [vmem:[%s11 + $0xb8] sm:$0xff]
    %v2224 = vld [vmem:[%s11 + $0xc0] sm:$0xff]
    %v2225 = vld [vmem:[%s11 + $0xc8] sm:$0xff]
    %v2226 = vld [vmem:[%s11 + $0xd0] sm:$0xff]
    %v2227 = vld [vmem:[%s11 + $0xd8] sm:$0xff]
    %v2228 = vld [vmem:[%s11 + $0xe0] sm:$0xff]
    %v2229 = vld [vmem:[%s11 + $0xe8] sm:$0xff]
    %v2230 = vld [vmem:[%s11 + $0xf0] sm:$0xff]
    %v2231 = vld [vmem:[%s11 + $0xf8] sm:$0xff]
    %v2232 = vld [vmem:[%s12] sm:$0x1]
    %v2234 = vlaneseq
    %v2235 = vshrl.u32 %v2234, 7
    %v2236 = vsub.s32 0, %v2235
    %v2237 = vrot.slane %v2232, %v2236
    %2239 = vmatprep.subr.mxu0 0.0
    %2240 = vmatpush1.msra.mxu0 %v2200
    %2241 = vmatprep.subr.mxu0 0.0
    %2242 = vmatpush1.msra.mxu0 %v2201
    %2243 = vmatprep.subr.mxu0 0.0
    %2244 = vmatpush1.msra.mxu0 %v2202
    %2245 = vmatprep.subr.mxu0 0.0
    %2246 = vmatpush1.msra.mxu0 %v2203
    %2247 = vmatprep.subr.mxu0 0.0
    %2248 = vmatpush1.msra.mxu0 %v2204
    %2249 = vmatprep.subr.mxu0 0.0
    %2250 = vmatpush1.msra.mxu0 %v2205
    %2251 = vmatprep.subr.mxu0 0.0
    %2252 = vmatpush1.msra.mxu0 %v2206
    %2253 = vmatprep.subr.mxu0 0.0
    %2254 = vmatpush1.msra.mxu0 %v2207
    %2255 = vmatprep.subr.mxu0 0.0
    %2256 = vmatpush1.msra.mxu0 %v2208
    %2257 = vmatprep.subr.mxu0 0.0
    %2258 = vmatpush1.msra.mxu0 %v2209
    %2259 = vmatprep.subr.mxu0 0.0
    %2260 = vmatpush1.msra.mxu0 %v2210
    %2261 = vmatprep.subr.mxu0 0.0
    %2262 = vmatpush1.msra.mxu0 %v2211
    %2263 = vmatprep.subr.mxu0 0.0
    %2264 = vmatpush1.msra.mxu0 %v2212
    %2265 = vmatprep.subr.mxu0 0.0
    %2266 = vmatpush1.msra.mxu0 %v2213
    %2267 = vmatprep.subr.mxu0 0.0
    %2268 = vmatpush1.msra.mxu0 %v2214
    %2269 = vmatprep.subr.mxu0 0.0
    %2270 = vmatpush1.msra.mxu0 %v2215
    %2271 = vmatprep.subr.mxu0 0.0
    %2272 = vmatpush1.msra.mxu0 %v2216
    %2273 = vmatprep.subr.mxu0 0.0
    %2274 = vmatpush1.msra.mxu0 %v2217
    %2275 = vmatprep.subr.mxu0 0.0
    %2276 = vmatpush1.msra.mxu0 %v2218
    %2277 = vmatprep.subr.mxu0 0.0
    %2278 = vmatpush1.msra.mxu0 %v2219
    %2279 = vmatprep.subr.mxu0 0.0
    %2280 = vmatpush1.msra.mxu0 %v2220
    %2281 = vmatprep.subr.mxu0 0.0
    %2282 = vmatpush1.msra.mxu0 %v2221
    %2283 = vmatprep.subr.mxu0 0.0
    %2284 = vmatpush1.msra.mxu0 %v2222
    %2285 = vmatprep.subr.mxu0 0.0
    %2286 = vmatpush1.msra.mxu0 %v2223
    %2287 = vmatprep.subr.mxu0 0.0
    %2288 = vmatpush1.msra.mxu0 %v2224
    %2289 = vmatprep.subr.mxu0 0.0
    %2290 = vmatpush1.msra.mxu0 %v2225
    %2291 = vmatprep.subr.mxu0 0.0
    %2292 = vmatpush1.msra.mxu0 %v2226
    %2293 = vmatprep.subr.mxu0 0.0
    %2294 = vmatpush1.msra.mxu0 %v2227
    %2295 = vmatprep.subr.mxu0 0.0
    %2296 = vmatpush1.msra.mxu0 %v2228
    %2297 = vmatprep.subr.mxu0 0.0
    %2298 = vmatpush1.msra.mxu0 %v2229
    %2299 = vmatprep.subr.mxu0 0.0
    %2300 = vmatpush1.msra.mxu0 %v2230
    %2301 = vmatprep.subr.mxu0 0.0
    %2302 = vmatpush1.msra.mxu0 %v2231
    %2303 = vmatprep.mubr.f32.mxu0 %v2193
    %2304 = vmatmul.mubr.f32.gmra.mrb[0].mxu0 %v2192
    %v2305 = vpop.f32.mrb[0].mxu0
    %v2306 = vadd.f32 %v2237, %v2305
    %v2307 = vpop.f32.mrb[0].mxu0
    %2308 = vmatprep.mubr.f32.mxu0 %v2195
    %2309 = vmatmul.mubr.f32.gmra.mrb[0].mxu0 %v2194
    %v2310 = vpop.f32.mrb[0].mxu0
    %v2311 = vadd.f32 %v2237, %v2310
    %v2312 = vpop.f32.mrb[0].mxu0
    %2313 = vmatprep.mubr.f32.mxu0 %v2197
    %2314 = vmatmul.mubr.f32.gmra.mrb[0].mxu0 %v2196
    %v2315 = vpop.f32.mrb[0].mxu0
    %v2316 = vadd.f32 %v2237, %v2315
    %v2317 = vpop.f32.mrb[0].mxu0
    %2318 = vmatprep.mubr.f32.mxu0 %v2199
    %2319 = vmatmul.mubr.f32.gmra.mrb[0].mxu0 %v2198
    %v2320 = vpop.f32.mrb[0].mxu0
    %v2321 = vadd.f32 %v2237, %v2320
    %v2322 = vpop.f32.mrb[0].mxu0
    %2323 = vdwg.mxu0
    %v2324 = vadd.f32 %v2059, %v2306
    %v2325 = vadd.f32 %v2060, %v2311
    %v2326 = vadd.f32 %v2061, %v2316
    %v2327 = vadd.f32 %v2062, %v2321
    %v2328 = vld [vmem:[%s13] sm:$0x1]
    %v2329 = vld [vmem:[%s14] sm:$0x1]
    %v2330 = vsel %vm107, %v2324, 0.0
    %2331 = vadd.xlane.f32.xlu0 %v2330
    %v2332 = vpop.xlane.xlu0 %2331
    %v2333 = vsel %vm107, %v2325, 0.0
    %2334 = vadd.xlane.f32.xlu0 %v2333
    %v2335 = vpop.xlane.xlu0 %2334
    %v2336 = vsel %vm107, %v2326, 0.0
    %2337 = vadd.xlane.f32.xlu0 %v2336
    %v2338 = vpop.xlane.xlu0 %2337
    %v2339 = vsel %vm107, %v2327, 0.0
    %2340 = vadd.xlane.f32.xlu0 %v2339
    %v2341 = vpop.xlane.xlu0 %2340
    %v2342 = vmul.f32 %v2332, %v2002
    %v2343 = vmul.f32 %v2335, %v2002
    %v2344 = vmul.f32 %v2338, %v2002
    %v2345 = vmul.f32 %v2341, %v2002
    %v2346 = vsub.f32 %v2324, %v2342
    %v2347 = vsub.f32 %v2325, %v2343
    %v2348 = vsub.f32 %v2326, %v2344
    %v2349 = vsub.f32 %v2327, %v2345
    %v2350 = vmul.f32 %v2346, %v2346
    %v2351 = vmul.f32 %v2347, %v2347
    %v2352 = vmul.f32 %v2348, %v2348
    %v2353 = vmul.f32 %v2349, %v2349
    %v2354 = vsel %vm107, %v2350, 0.0
    %2355 = vadd.xlane.f32.xlu0 %v2354
    %v2356 = vpop.xlane.xlu0 %2355
    %v2357 = vsel %vm107, %v2351, 0.0
    %2358 = vadd.xlane.f32.xlu0 %v2357
    %v2359 = vpop.xlane.xlu0 %2358
    %v2360 = vsel %vm107, %v2352, 0.0
    %2361 = vadd.xlane.f32.xlu0 %v2360
    %v2362 = vpop.xlane.xlu0 %2361
    %v2363 = vsel %vm107, %v2353, 0.0
    %2364 = vadd.xlane.f32.xlu0 %v2363
    %v2365 = vpop.xlane.xlu0 %2364
    %v2366 = vmul.f32 %v2356, %v2002
    %v2367 = vmul.f32 %v2359, %v2002
    %v2368 = vmul.f32 %v2362, %v2002
    %v2369 = vmul.f32 %v2365, %v2002
    %v2370 = vadd.f32 %v2366, 1e-05
    %v2371 = vadd.f32 %v2367, 1e-05
    %v2372 = vadd.f32 %v2368, 1e-05
    %v2373 = vadd.f32 %v2369, 1e-05
    %v2374 = vrsqrt.pop %v2370
    %v2375 = vrsqrt.pop %v2371
    %v2376 = vrsqrt.pop %v2372
    %v2377 = vrsqrt.pop %v2373
    %v2378 = vmul.f32 %v2346, %v2374
    %v2379 = vmul.f32 %v2347, %v2375
    %v2380 = vmul.f32 %v2348, %v2376
    %v2381 = vmul.f32 %v2349, %v2377
    %v2383 = vlaneseq
    %v2384 = vshrl.u32 %v2383, 7
    %v2385 = vsub.s32 0, %v2384
    %v2386 = vrot.slane %v2328, %v2385
    %v2388 = vmul.f32 %v2378, %v2386
    %v2389 = vmul.f32 %v2379, %v2386
    %v2390 = vmul.f32 %v2380, %v2386
    %v2391 = vmul.f32 %v2381, %v2386
    %v2393 = vlaneseq
    %v2394 = vshrl.u32 %v2393, 7
    %v2395 = vsub.s32 0, %v2394
    %v2396 = vrot.slane %v2329, %v2395
    %v2398 = vadd.f32 %v2388, %v2396
    %v2399 = vadd.f32 %v2389, %v2396
    %v2400 = vadd.f32 %v2390, %v2396
    %v2401 = vadd.f32 %v2391, %v2396
    %s2402 = scalar_lea.vmem %s3, 128
    %v2403 = vld [vmem:[%s2402] sm:$0xff]
    %v2404 = vld [vmem:[%s2402 + $0x8] sm:$0xff]
    %v2405 = vld [vmem:[%s2402 + $0x10] sm:$0xff]
    %v2406 = vld [vmem:[%s2402 + $0x18] sm:$0xff]
    %v2407 = vld [vmem:[%s2402 + $0x20] sm:$0xff]
    %v2408 = vld [vmem:[%s2402 + $0x28] sm:$0xff]
    %v2409 = vld [vmem:[%s2402 + $0x30] sm:$0xff]
    %v2410 = vld [vmem:[%s2402 + $0x38] sm:$0xff]
    %v2411 = vld [vmem:[%s2402 + $0x40] sm:$0xff]
    %v2412 = vld [vmem:[%s2402 + $0x48] sm:$0xff]
    %v2413 = vld [vmem:[%s2402 + $0x50] sm:$0xff]
    %v2414 = vld [vmem:[%s2402 + $0x58] sm:$0xff]
    %v2415 = vld [vmem:[%s2402 + $0x60] sm:$0xff]
    %v2416 = vld [vmem:[%s2402 + $0x68] sm:$0xff]
    %v2417 = vld [vmem:[%s2402 + $0x70] sm:$0xff]
    %v2418 = vld [vmem:[%s2402 + $0x78] sm:$0xff]
    %s2419 = scalar_lea.vmem %s4, 2
    %v2420 = vld [vmem:[%s2419] sm:$0x3]
    %v2422 = vlaneseq
    %v2423 = vshrl.u32 %v2422, 7
    %v2424 = vsub.s32 0, %v2423
    %v2425 = vrot.slane %v2420, %v2424
    %v2426 = vlaneseq
    %v2427 = vshrl.u32 %v2426, 7
    %v2428 = vsub.s32 1, %v2427
    %v2429 = vrot.slane %v2420, %v2428
    %v2433 = vsel %vm107, %v2398, 0
    %v2436 = vsel %vm107, %v2399, 0
    %v2439 = vsel %vm107, %v2400, 0
    %v2442 = vsel %vm107, %v2401, 0
    %2444 = vmatprep.subr.mxu0 %v2404
    %2445 = vmatpush1.msra.mxu0 %v2403
    %2446 = vmatprep.subr.mxu0 %v2406
    %2447 = vmatpush1.msra.mxu0 %v2405
    %2448 = vmatprep.subr.mxu0 %v2408
    %2449 = vmatpush1.msra.mxu0 %v2407
    %2450 = vmatprep.subr.mxu0 %v2410
    %2451 = vmatpush1.msra.mxu0 %v2409
    %2452 = vmatprep.subr.mxu0 %v2412
    %2453 = vmatpush1.msra.mxu0 %v2411
    %2454 = vmatprep.subr.mxu0 %v2414
    %2455 = vmatpush1.msra.mxu0 %v2413
    %2456 = vmatprep.subr.mxu0 %v2416
    %2457 = vmatpush1.msra.mxu0 %v2415
    %2458 = vmatprep.subr.mxu0 %v2418
    %2459 = vmatpush1.msra.mxu0 %v2417
    %2460 = vmatprep.subr.mxu0 0.0
    %2461 = vmatpush1.msra.mxu0 0.0
    %2462 = vmatprep.subr.mxu0 0.0
    %2463 = vmatpush1.msra.mxu0 0.0
    %2464 = vmatprep.subr.mxu0 0.0
    %2465 = vmatpush1.msra.mxu0 0.0
    %2466 = vmatprep.subr.mxu0 0.0
    %2467 = vmatpush1.msra.mxu0 0.0
    %2468 = vmatprep.subr.mxu0 0.0
    %2469 = vmatpush1.msra.mxu0 0.0
    %2470 = vmatprep.subr.mxu0 0.0
    %2471 = vmatpush1.msra.mxu0 0.0
    %2472 = vmatprep.subr.mxu0 0.0
    %2473 = vmatpush1.msra.mxu0 0.0
    %2474 = vmatprep.subr.mxu0 0.0
    %2475 = vmatpush1.msra.mxu0 0.0
    %2476 = vmatprep.subr.mxu0 0.0
    %2477 = vmatpush1.msra.mxu0 0.0
    %2478 = vmatprep.subr.mxu0 0.0
    %2479 = vmatpush1.msra.mxu0 0.0
    %2480 = vmatprep.subr.mxu0 0.0
    %2481 = vmatpush1.msra.mxu0 0.0
    %2482 = vmatprep.subr.mxu0 0.0
    %2483 = vmatpush1.msra.mxu0 0.0
    %2484 = vmatprep.subr.mxu0 0.0
    %2485 = vmatpush1.msra.mxu0 0.0
    %2486 = vmatprep.subr.mxu0 0.0
    %2487 = vmatpush1.msra.mxu0 0.0
    %2488 = vmatprep.subr.mxu0 0.0
    %2489 = vmatpush1.msra.mxu0 0.0
    %2490 = vmatprep.subr.mxu0 0.0
    %2491 = vmatpush1.msra.mxu0 0.0
    %2492 = vmatprep.subr.mxu0 0.0
    %2493 = vmatpush1.msra.mxu0 0.0
    %2494 = vmatprep.subr.mxu0 0.0
    %2495 = vmatpush1.msra.mxu0 0.0
    %2496 = vmatprep.subr.mxu0 0.0
    %2497 = vmatpush1.msra.mxu0 0.0
    %2498 = vmatprep.subr.mxu0 0.0
    %2499 = vmatpush1.msra.mxu0 0.0
    %2500 = vmatprep.subr.mxu0 0.0
    %2501 = vmatpush1.msra.mxu0 0.0
    %2502 = vmatprep.subr.mxu0 0.0
    %2503 = vmatpush1.msra.mxu0 0.0
    %2504 = vmatprep.subr.mxu0 0.0
    %2505 = vmatpush1.msra.mxu0 0.0
    %2506 = vmatprep.subr.mxu0 0.0
    %2507 = vmatpush1.msra.mxu0 0.0
    %2508 = vmatprep.mubr.f32.mxu0 0.0
    %2509 = vmatmul.mubr.f32.gmra.mrb[0].mxu0 %v2433
    %v2510 = vpop.f32.mrb[0].mxu0
    %v2511 = vadd.f32 %v2425, %v2510
    %v2512 = vpop.f32.mrb[0].mxu0
    %v2513 = vadd.f32 %v2429, %v2512
    %2514 = vmatprep.mubr.f32.mxu0 0.0
    %2515 = vmatmul.mubr.f32.gmra.mrb[0].mxu0 %v2436
    %v2516 = vpop.f32.mrb[0].mxu0
    %v2517 = vadd.f32 %v2425, %v2516
    %v2518 = vpop.f32.mrb[0].mxu0
    %v2519 = vadd.f32 %v2429, %v2518
    %2520 = vmatprep.mubr.f32.mxu0 0.0
    %2521 = vmatmul.mubr.f32.gmra.mrb[0].mxu0 %v2439
    %v2522 = vpop.f32.mrb[0].mxu0
    %v2523 = vadd.f32 %v2425, %v2522
    %v2524 = vpop.f32.mrb[0].mxu0
    %v2525 = vadd.f32 %v2429, %v2524
    %2526 = vmatprep.mubr.f32.mxu0 0.0
    %2527 = vmatmul.mubr.f32.gmra.mrb[0].mxu0 %v2442
    %v2528 = vpop.f32.mrb[0].mxu0
    %v2529 = vadd.f32 %v2425, %v2528
    %v2530 = vpop.f32.mrb[0].mxu0
    %v2531 = vadd.f32 %v2429, %v2530
    %2532 = vdwg.mxu0
    %2535 = vrot.lane.b32.xlu0 %v2511, 64
    %v2536 = vpop.permute.xlu0 %2535
    %2537 = vrot.lane.b32.xlu0 %v2517, 64
    %v2538 = vpop.permute.xlu0 %2537
    %v2539 = vsel %vm221, %v2511, 0
    %v2541 = vsel %vm221, %v2517, 0
    %v2543 = vsel %vm221, %v2536, 0
    %v2545 = vsel %vm221, %v2538, 0
    %2547 = vmatprep.subr.mxu0 0.0
    %2548 = vmatpush1.xpose.msra.mxu0 %v2543
    %2549 = vmatprep.subr.mxu0 0.0
    %2550 = vmatpush1.xpose.msra.mxu0 %v2545
    %2551 = vmatprep.subr.mxu0 0.0
    %2552 = vmatpush1.xpose.msra.mxu0 0.0
    %2553 = vmatprep.subr.mxu0 0.0
    %2554 = vmatpush1.xpose.msra.mxu0 0.0
    %2555 = vmatprep.subr.mxu0 0.0
    %2556 = vmatpush1.xpose.msra.mxu0 0.0
    %2557 = vmatprep.subr.mxu0 0.0
    %2558 = vmatpush1.xpose.msra.mxu0 0.0
    %2559 = vmatprep.subr.mxu0 0.0
    %2560 = vmatpush1.xpose.msra.mxu0 0.0
    %2561 = vmatprep.subr.mxu0 0.0
    %2562 = vmatpush1.xpose.msra.mxu0 0.0
    %2563 = vmatprep.subr.mxu0 0.0
    %2564 = vmatpush1.xpose.msra.mxu0 0.0
    %2565 = vmatprep.subr.mxu0 0.0
    %2566 = vmatpush1.xpose.msra.mxu0 0.0
    %2567 = vmatprep.subr.mxu0 0.0
    %2568 = vmatpush1.xpose.msra.mxu0 0.0
    %2569 = vmatprep.subr.mxu0 0.0
    %2570 = vmatpush1.xpose.msra.mxu0 0.0
    %2571 = vmatprep.subr.mxu0 0.0
    %2572 = vmatpush1.xpose.msra.mxu0 0.0
    %2573 = vmatprep.subr.mxu0 0.0
    %2574 = vmatpush1.xpose.msra.mxu0 0.0
    %2575 = vmatprep.subr.mxu0 0.0
    %2576 = vmatpush1.xpose.msra.mxu0 0.0
    %2577 = vmatprep.subr.mxu0 0.0
    %2578 = vmatpush1.xpose.msra.mxu0 0.0
    %2579 = vmatprep.subr.mxu0 0.0
    %2580 = vmatpush1.xpose.msra.mxu0 0.0
    %2581 = vmatprep.subr.mxu0 0.0
    %2582 = vmatpush1.xpose.msra.mxu0 0.0
    %2583 = vmatprep.subr.mxu0 0.0
    %2584 = vmatpush1.xpose.msra.mxu0 0.0
    %2585 = vmatprep.subr.mxu0 0.0
    %2586 = vmatpush1.xpose.msra.mxu0 0.0
    %2587 = vmatprep.subr.mxu0 0.0
    %2588 = vmatpush1.xpose.msra.mxu0 0.0
    %2589 = vmatprep.subr.mxu0 0.0
    %2590 = vmatpush1.xpose.msra.mxu0 0.0
    %2591 = vmatprep.subr.mxu0 0.0
    %2592 = vmatpush1.xpose.msra.mxu0 0.0
    %2593 = vmatprep.subr.mxu0 0.0
    %2594 = vmatpush1.xpose.msra.mxu0 0.0
    %2595 = vmatprep.subr.mxu0 0.0
    %2596 = vmatpush1.xpose.msra.mxu0 0.0
    %2597 = vmatprep.subr.mxu0 0.0
    %2598 = vmatpush1.xpose.msra.mxu0 0.0
    %2599 = vmatprep.subr.mxu0 0.0
    %2600 = vmatpush1.xpose.msra.mxu0 0.0
    %2601 = vmatprep.subr.mxu0 0.0
    %2602 = vmatpush1.xpose.msra.mxu0 0.0
    %2603 = vmatprep.subr.mxu0 0.0
    %2604 = vmatpush1.xpose.msra.mxu0 0.0
    %2605 = vmatprep.subr.mxu0 0.0
    %2606 = vmatpush1.xpose.msra.mxu0 0.0
    %2607 = vmatprep.subr.mxu0 0.0
    %2608 = vmatpush1.xpose.msra.mxu0 0.0
    %2609 = vmatprep.subr.mxu0 0.0
    %2610 = vmatpush1.xpose.msra.mxu0 0.0
    %2611 = vmatprep.mubr.f32.mxu0 0.0
    %2612 = vmatmul.mubr.f32.gmra.mrb[0].mxu0 %v2539
    %v2613 = vpop.f32.mrb[0].mxu0
    %v2614 = vadd.f32 %v213, %v2613
    %v2615 = vpop.f32.mrb[0].mxu0
    %2616 = vmatprep.mubr.f32.mxu0 0.0
    %2617 = vmatmul.mubr.f32.gmra.mrb[0].mxu0 %v2541
    %v2618 = vpop.f32.mrb[0].mxu0
    %v2619 = vadd.f32 %v213, %v2618
    %v2620 = vpop.f32.mrb[0].mxu0
    %2621 = vdwg.mxu0
    %v2622 = vsel %vm221, %v2614, -inf
    %2623 = vmax.xlane.f32.xlu0 %v2622
    %v2624 = vpop.xlane.xlu0 %2623
    %v2625 = vsel %vm221, %v2619, -inf
    %2626 = vmax.xlane.f32.xlu0 %v2625
    %v2627 = vpop.xlane.xlu0 %2626
    %v2628 = vsub.f32 %v2614, %v2624
    %v2629 = vsub.f32 %v2619, %v2627
    %v2630 = vmul.f32 %v2628, 1.442695
    %v2631 = vpow.pop %v2630
    %v2632 = vmul.f32 %v2629, 1.442695
    %v2633 = vpow.pop %v2632
    %v2634 = vsel %vm221, %v2631, 0.0
    %2635 = vadd.xlane.f32.xlu0 %v2634
    %v2636 = vpop.xlane.xlu0 %2635
    %v2637 = vsel %vm221, %v2633, 0.0
    %2638 = vadd.xlane.f32.xlu0 %v2637
    %v2639 = vpop.xlane.xlu0 %2638
    %v2640 = vrcp.pop %v2636
    %v2641 = vrcp.pop %v2639
    %v2642 = vmul.f32 %v2631, %v2640
    %v2643 = vmul.f32 %v2633, %v2641
    %v2645 = vsel %vm221, %v2642, 0
    %v2648 = vsel %vm221, %v2643, 0
    %2650 = vmatprep.subr.mxu0 0.0
    %2651 = vmatpush1.msra.mxu0 %v2513
    %2652 = vmatprep.subr.mxu0 0.0
    %2653 = vmatpush1.msra.mxu0 %v2519
    %2654 = vmatprep.subr.mxu0 0.0
    %2655 = vmatpush1.msra.mxu0 0.0
    %2656 = vmatprep.subr.mxu0 0.0
    %2657 = vmatpush1.msra.mxu0 0.0
    %2658 = vmatprep.subr.mxu0 0.0
    %2659 = vmatpush1.msra.mxu0 0.0
    %2660 = vmatprep.subr.mxu0 0.0
    %2661 = vmatpush1.msra.mxu0 0.0
    %2662 = vmatprep.subr.mxu0 0.0
    %2663 = vmatpush1.msra.mxu0 0.0
    %2664 = vmatprep.subr.mxu0 0.0
    %2665 = vmatpush1.msra.mxu0 0.0
    %2666 = vmatprep.subr.mxu0 0.0
    %2667 = vmatpush1.msra.mxu0 0.0
    %2668 = vmatprep.subr.mxu0 0.0
    %2669 = vmatpush1.msra.mxu0 0.0
    %2670 = vmatprep.subr.mxu0 0.0
    %2671 = vmatpush1.msra.mxu0 0.0
    %2672 = vmatprep.subr.mxu0 0.0
    %2673 = vmatpush1.msra.mxu0 0.0
    %2674 = vmatprep.subr.mxu0 0.0
    %2675 = vmatpush1.msra.mxu0 0.0
    %2676 = vmatprep.subr.mxu0 0.0
    %2677 = vmatpush1.msra.mxu0 0.0
    %2678 = vmatprep.subr.mxu0 0.0
    %2679 = vmatpush1.msra.mxu0 0.0
    %2680 = vmatprep.subr.mxu0 0.0
    %2681 = vmatpush1.msra.mxu0 0.0
    %2682 = vmatprep.subr.mxu0 0.0
    %2683 = vmatpush1.msra.mxu0 0.0
    %2684 = vmatprep.subr.mxu0 0.0
    %2685 = vmatpush1.msra.mxu0 0.0
    %2686 = vmatprep.subr.mxu0 0.0
    %2687 = vmatpush1.msra.mxu0 0.0
    %2688 = vmatprep.subr.mxu0 0.0
    %2689 = vmatpush1.msra.mxu0 0.0
    %2690 = vmatprep.subr.mxu0 0.0
    %2691 = vmatpush1.msra.mxu0 0.0
    %2692 = vmatprep.subr.mxu0 0.0
    %2693 = vmatpush1.msra.mxu0 0.0
    %2694 = vmatprep.subr.mxu0 0.0
    %2695 = vmatpush1.msra.mxu0 0.0
    %2696 = vmatprep.subr.mxu0 0.0
    %2697 = vmatpush1.msra.mxu0 0.0
    %2698 = vmatprep.subr.mxu0 0.0
    %2699 = vmatpush1.msra.mxu0 0.0
    %2700 = vmatprep.subr.mxu0 0.0
    %2701 = vmatpush1.msra.mxu0 0.0
    %2702 = vmatprep.subr.mxu0 0.0
    %2703 = vmatpush1.msra.mxu0 0.0
    %2704 = vmatprep.subr.mxu0 0.0
    %2705 = vmatpush1.msra.mxu0 0.0
    %2706 = vmatprep.subr.mxu0 0.0
    %2707 = vmatpush1.msra.mxu0 0.0
    %2708 = vmatprep.subr.mxu0 0.0
    %2709 = vmatpush1.msra.mxu0 0.0
    %2710 = vmatprep.subr.mxu0 0.0
    %2711 = vmatpush1.msra.mxu0 0.0
    %2712 = vmatprep.subr.mxu0 0.0
    %2713 = vmatpush1.msra.mxu0 0.0
    %2714 = vmatprep.mubr.f32.mxu0 0.0
    %2715 = vmatmul.mubr.f32.gmra.mrb[0].mxu0 %v2645
    %v2716 = vpop.f32.mrb[0].mxu0
    %v2717 = vadd.f32 0.0, %v2716
    %v2718 = vpop.f32.mrb[0].mxu0
    %2719 = vmatprep.mubr.f32.mxu0 0.0
    %2720 = vmatmul.mubr.f32.gmra.mrb[0].mxu0 %v2648
    %v2721 = vpop.f32.mrb[0].mxu0
    %v2722 = vadd.f32 0.0, %v2721
    %v2723 = vpop.f32.mrb[0].mxu0
    %2724 = vdwg.mxu0
    %2725 = vrot.lane.b32.xlu0 %v2511, 112
    %v2726 = vpop.permute.xlu0 %2725
    %2727 = vrot.lane.b32.xlu0 %v2517, 112
    %v2728 = vpop.permute.xlu0 %2727
    %2729 = vrot.lane.b32.xlu0 %v2511, 48
    %v2730 = vpop.permute.xlu0 %2729
    %2731 = vrot.lane.b32.xlu0 %v2517, 48
    %v2732 = vpop.permute.xlu0 %2731
    %v2733 = vsel %vm221, %v2726, 0
    %v2735 = vsel %vm221, %v2728, 0
    %v2737 = vsel %vm221, %v2730, 0
    %v2739 = vsel %vm221, %v2732, 0
    %2741 = vmatprep.subr.mxu0 0.0
    %2742 = vmatpush1.xpose.msra.mxu0 %v2737
    %2743 = vmatprep.subr.mxu0 0.0
    %2744 = vmatpush1.xpose.msra.mxu0 %v2739
    %2745 = vmatprep.subr.mxu0 0.0
    %2746 = vmatpush1.xpose.msra.mxu0 0.0
    %2747 = vmatprep.subr.mxu0 0.0
    %2748 = vmatpush1.xpose.msra.mxu0 0.0
    %2749 = vmatprep.subr.mxu0 0.0
    %2750 = vmatpush1.xpose.msra.mxu0 0.0
    %2751 = vmatprep.subr.mxu0 0.0
    %2752 = vmatpush1.xpose.msra.mxu0 0.0
    %2753 = vmatprep.subr.mxu0 0.0
    %2754 = vmatpush1.xpose.msra.mxu0 0.0
    %2755 = vmatprep.subr.mxu0 0.0
    %2756 = vmatpush1.xpose.msra.mxu0 0.0
    %2757 = vmatprep.subr.mxu0 0.0
    %2758 = vmatpush1.xpose.msra.mxu0 0.0
    %2759 = vmatprep.subr.mxu0 0.0
    %2760 = vmatpush1.xpose.msra.mxu0 0.0
    %2761 = vmatprep.subr.mxu0 0.0
    %2762 = vmatpush1.xpose.msra.mxu0 0.0
    %2763 = vmatprep.subr.mxu0 0.0
    %2764 = vmatpush1.xpose.msra.mxu0 0.0
    %2765 = vmatprep.subr.mxu0 0.0
    %2766 = vmatpush1.xpose.msra.mxu0 0.0
    %2767 = vmatprep.subr.mxu0 0.0
    %2768 = vmatpush1.xpose.msra.mxu0 0.0
    %2769 = vmatprep.subr.mxu0 0.0
    %2770 = vmatpush1.xpose.msra.mxu0 0.0
    %2771 = vmatprep.subr.mxu0 0.0
    %2772 = vmatpush1.xpose.msra.mxu0 0.0
    %2773 = vmatprep.subr.mxu0 0.0
    %2774 = vmatpush1.xpose.msra.mxu0 0.0
    %2775 = vmatprep.subr.mxu0 0.0
    %2776 = vmatpush1.xpose.msra.mxu0 0.0
    %2777 = vmatprep.subr.mxu0 0.0
    %2778 = vmatpush1.xpose.msra.mxu0 0.0
    %2779 = vmatprep.subr.mxu0 0.0
    %2780 = vmatpush1.xpose.msra.mxu0 0.0
    %2781 = vmatprep.subr.mxu0 0.0
    %2782 = vmatpush1.xpose.msra.mxu0 0.0
    %2783 = vmatprep.subr.mxu0 0.0
    %2784 = vmatpush1.xpose.msra.mxu0 0.0
    %2785 = vmatprep.subr.mxu0 0.0
    %2786 = vmatpush1.xpose.msra.mxu0 0.0
    %2787 = vmatprep.subr.mxu0 0.0
    %2788 = vmatpush1.xpose.msra.mxu0 0.0
    %2789 = vmatprep.subr.mxu0 0.0
    %2790 = vmatpush1.xpose.msra.mxu0 0.0
    %2791 = vmatprep.subr.mxu0 0.0
    %2792 = vmatpush1.xpose.msra.mxu0 0.0
    %2793 = vmatprep.subr.mxu0 0.0
    %2794 = vmatpush1.xpose.msra.mxu0 0.0
    %2795 = vmatprep.subr.mxu0 0.0
    %2796 = vmatpush1.xpose.msra.mxu0 0.0
    %2797 = vmatprep.subr.mxu0 0.0
    %2798 = vmatpush1.xpose.msra.mxu0 0.0
    %2799 = vmatprep.subr.mxu0 0.0
    %2800 = vmatpush1.xpose.msra.mxu0 0.0
    %2801 = vmatprep.subr.mxu0 0.0
    %2802 = vmatpush1.xpose.msra.mxu0 0.0
    %2803 = vmatprep.subr.mxu0 0.0
    %2804 = vmatpush1.xpose.msra.mxu0 0.0
    %2805 = vmatprep.mubr.f32.mxu0 0.0
    %2806 = vmatmul.mubr.f32.gmra.mrb[0].mxu0 %v2733
    %v2807 = vpop.f32.mrb[0].mxu0
    %v2808 = vadd.f32 %v213, %v2807
    %v2809 = vpop.f32.mrb[0].mxu0
    %2810 = vmatprep.mubr.f32.mxu0 0.0
    %2811 = vmatmul.mubr.f32.gmra.mrb[0].mxu0 %v2735
    %v2812 = vpop.f32.mrb[0].mxu0
    %v2813 = vadd.f32 %v213, %v2812
    %v2814 = vpop.f32.mrb[0].mxu0
    %2815 = vdwg.mxu0
    %v2816 = vsel %vm221, %v2808, -inf
    %2817 = vmax.xlane.f32.xlu0 %v2816
    %v2818 = vpop.xlane.xlu0 %2817
    %v2819 = vsel %vm221, %v2813, -inf
    %2820 = vmax.xlane.f32.xlu0 %v2819
    %v2821 = vpop.xlane.xlu0 %2820
    %v2822 = vsub.f32 %v2808, %v2818
    %v2823 = vsub.f32 %v2813, %v2821
    %v2824 = vmul.f32 %v2822, 1.442695
    %v2825 = vpow.pop %v2824
    %v2826 = vmul.f32 %v2823, 1.442695
    %v2827 = vpow.pop %v2826
    %v2828 = vsel %vm221, %v2825, 0.0
    %2829 = vadd.xlane.f32.xlu0 %v2828
    %v2830 = vpop.xlane.xlu0 %2829
    %v2831 = vsel %vm221, %v2827, 0.0
    %2832 = vadd.xlane.f32.xlu0 %v2831
    %v2833 = vpop.xlane.xlu0 %2832
    %v2834 = vrcp.pop %v2830
    %v2835 = vrcp.pop %v2833
    %v2836 = vmul.f32 %v2825, %v2834
    %v2837 = vmul.f32 %v2827, %v2835
    %2840 = vrot.lane.b32.xlu0 %v2513, 112
    %v2841 = vpop.permute.xlu0 %2840
    %2842 = vrot.lane.b32.xlu0 %v2519, 112
    %v2843 = vpop.permute.xlu0 %2842
    %v2847 = vsel %vm221, %v2836, 0
    %v2850 = vsel %vm221, %v2837, 0
    %2852 = vmatprep.subr.mxu0 0.0
    %2853 = vmatpush1.msra.mxu0 %v2841
    %2854 = vmatprep.subr.mxu0 0.0
    %2855 = vmatpush1.msra.mxu0 %v2843
    %2856 = vmatprep.subr.mxu0 0.0
    %2857 = vmatpush1.msra.mxu0 0.0
    %2858 = vmatprep.subr.mxu0 0.0
    %2859 = vmatpush1.msra.mxu0 0.0
    %2860 = vmatprep.subr.mxu0 0.0
    %2861 = vmatpush1.msra.mxu0 0.0
    %2862 = vmatprep.subr.mxu0 0.0
    %2863 = vmatpush1.msra.mxu0 0.0
    %2864 = vmatprep.subr.mxu0 0.0
    %2865 = vmatpush1.msra.mxu0 0.0
    %2866 = vmatprep.subr.mxu0 0.0
    %2867 = vmatpush1.msra.mxu0 0.0
    %2868 = vmatprep.subr.mxu0 0.0
    %2869 = vmatpush1.msra.mxu0 0.0
    %2870 = vmatprep.subr.mxu0 0.0
    %2871 = vmatpush1.msra.mxu0 0.0
    %2872 = vmatprep.subr.mxu0 0.0
    %2873 = vmatpush1.msra.mxu0 0.0
    %2874 = vmatprep.subr.mxu0 0.0
    %2875 = vmatpush1.msra.mxu0 0.0
    %2876 = vmatprep.subr.mxu0 0.0
    %2877 = vmatpush1.msra.mxu0 0.0
    %2878 = vmatprep.subr.mxu0 0.0
    %2879 = vmatpush1.msra.mxu0 0.0
    %2880 = vmatprep.subr.mxu0 0.0
    %2881 = vmatpush1.msra.mxu0 0.0
    %2882 = vmatprep.subr.mxu0 0.0
    %2883 = vmatpush1.msra.mxu0 0.0
    %2884 = vmatprep.subr.mxu0 0.0
    %2885 = vmatpush1.msra.mxu0 0.0
    %2886 = vmatprep.subr.mxu0 0.0
    %2887 = vmatpush1.msra.mxu0 0.0
    %2888 = vmatprep.subr.mxu0 0.0
    %2889 = vmatpush1.msra.mxu0 0.0
    %2890 = vmatprep.subr.mxu0 0.0
    %2891 = vmatpush1.msra.mxu0 0.0
    %2892 = vmatprep.subr.mxu0 0.0
    %2893 = vmatpush1.msra.mxu0 0.0
    %2894 = vmatprep.subr.mxu0 0.0
    %2895 = vmatpush1.msra.mxu0 0.0
    %2896 = vmatprep.subr.mxu0 0.0
    %2897 = vmatpush1.msra.mxu0 0.0
    %2898 = vmatprep.subr.mxu0 0.0
    %2899 = vmatpush1.msra.mxu0 0.0
    %2900 = vmatprep.subr.mxu0 0.0
    %2901 = vmatpush1.msra.mxu0 0.0
    %2902 = vmatprep.subr.mxu0 0.0
    %2903 = vmatpush1.msra.mxu0 0.0
    %2904 = vmatprep.subr.mxu0 0.0
    %2905 = vmatpush1.msra.mxu0 0.0
    %2906 = vmatprep.subr.mxu0 0.0
    %2907 = vmatpush1.msra.mxu0 0.0
    %2908 = vmatprep.subr.mxu0 0.0
    %2909 = vmatpush1.msra.mxu0 0.0
    %2910 = vmatprep.subr.mxu0 0.0
    %2911 = vmatpush1.msra.mxu0 0.0
    %2912 = vmatprep.subr.mxu0 0.0
    %2913 = vmatpush1.msra.mxu0 0.0
    %2914 = vmatprep.subr.mxu0 0.0
    %2915 = vmatpush1.msra.mxu0 0.0
    %2916 = vmatprep.mubr.f32.mxu0 0.0
    %2917 = vmatmul.mubr.f32.gmra.mrb[0].mxu0 %v2847
    %v2918 = vpop.f32.mrb[0].mxu0
    %v2919 = vadd.f32 0.0, %v2918
    %v2920 = vpop.f32.mrb[0].mxu0
    %2921 = vmatprep.mubr.f32.mxu0 0.0
    %2922 = vmatmul.mubr.f32.gmra.mrb[0].mxu0 %v2850
    %v2923 = vpop.f32.mrb[0].mxu0
    %v2924 = vadd.f32 0.0, %v2923
    %v2925 = vpop.f32.mrb[0].mxu0
    %2926 = vdwg.mxu0
    %2927 = vrot.lane.b32.xlu0 %v2511, 96
    %v2928 = vpop.permute.xlu0 %2927
    %2929 = vrot.lane.b32.xlu0 %v2517, 96
    %v2930 = vpop.permute.xlu0 %2929
    %2931 = vrot.lane.b32.xlu0 %v2511, 32
    %v2932 = vpop.permute.xlu0 %2931
    %2933 = vrot.lane.b32.xlu0 %v2517, 32
    %v2934 = vpop.permute.xlu0 %2933
    %v2935 = vsel %vm221, %v2928, 0
    %v2937 = vsel %vm221, %v2930, 0
    %v2939 = vsel %vm221, %v2932, 0
    %v2941 = vsel %vm221, %v2934, 0
    %2943 = vmatprep.subr.mxu0 0.0
    %2944 = vmatpush1.xpose.msra.mxu0 %v2939
    %2945 = vmatprep.subr.mxu0 0.0
    %2946 = vmatpush1.xpose.msra.mxu0 %v2941
    %2947 = vmatprep.subr.mxu0 0.0
    %2948 = vmatpush1.xpose.msra.mxu0 0.0
    %2949 = vmatprep.subr.mxu0 0.0
    %2950 = vmatpush1.xpose.msra.mxu0 0.0
    %2951 = vmatprep.subr.mxu0 0.0
    %2952 = vmatpush1.xpose.msra.mxu0 0.0
    %2953 = vmatprep.subr.mxu0 0.0
    %2954 = vmatpush1.xpose.msra.mxu0 0.0
    %2955 = vmatprep.subr.mxu0 0.0
    %2956 = vmatpush1.xpose.msra.mxu0 0.0
    %2957 = vmatprep.subr.mxu0 0.0
    %2958 = vmatpush1.xpose.msra.mxu0 0.0
    %2959 = vmatprep.subr.mxu0 0.0
    %2960 = vmatpush1.xpose.msra.mxu0 0.0
    %2961 = vmatprep.subr.mxu0 0.0
    %2962 = vmatpush1.xpose.msra.mxu0 0.0
    %2963 = vmatprep.subr.mxu0 0.0
    %2964 = vmatpush1.xpose.msra.mxu0 0.0
    %2965 = vmatprep.subr.mxu0 0.0
    %2966 = vmatpush1.xpose.msra.mxu0 0.0
    %2967 = vmatprep.subr.mxu0 0.0
    %2968 = vmatpush1.xpose.msra.mxu0 0.0
    %2969 = vmatprep.subr.mxu0 0.0
    %2970 = vmatpush1.xpose.msra.mxu0 0.0
    %2971 = vmatprep.subr.mxu0 0.0
    %2972 = vmatpush1.xpose.msra.mxu0 0.0
    %2973 = vmatprep.subr.mxu0 0.0
    %2974 = vmatpush1.xpose.msra.mxu0 0.0
    %2975 = vmatprep.subr.mxu0 0.0
    %2976 = vmatpush1.xpose.msra.mxu0 0.0
    %2977 = vmatprep.subr.mxu0 0.0
    %2978 = vmatpush1.xpose.msra.mxu0 0.0
    %2979 = vmatprep.subr.mxu0 0.0
    %2980 = vmatpush1.xpose.msra.mxu0 0.0
    %2981 = vmatprep.subr.mxu0 0.0
    %2982 = vmatpush1.xpose.msra.mxu0 0.0
    %2983 = vmatprep.subr.mxu0 0.0
    %2984 = vmatpush1.xpose.msra.mxu0 0.0
    %2985 = vmatprep.subr.mxu0 0.0
    %2986 = vmatpush1.xpose.msra.mxu0 0.0
    %2987 = vmatprep.subr.mxu0 0.0
    %2988 = vmatpush1.xpose.msra.mxu0 0.0
    %2989 = vmatprep.subr.mxu0 0.0
    %2990 = vmatpush1.xpose.msra.mxu0 0.0
    %2991 = vmatprep.subr.mxu0 0.0
    %2992 = vmatpush1.xpose.msra.mxu0 0.0
    %2993 = vmatprep.subr.mxu0 0.0
    %2994 = vmatpush1.xpose.msra.mxu0 0.0
    %2995 = vmatprep.subr.mxu0 0.0
    %2996 = vmatpush1.xpose.msra.mxu0 0.0
    %2997 = vmatprep.subr.mxu0 0.0
    %2998 = vmatpush1.xpose.msra.mxu0 0.0
    %2999 = vmatprep.subr.mxu0 0.0
    %3000 = vmatpush1.xpose.msra.mxu0 0.0
    %3001 = vmatprep.subr.mxu0 0.0
    %3002 = vmatpush1.xpose.msra.mxu0 0.0
    %3003 = vmatprep.subr.mxu0 0.0
    %3004 = vmatpush1.xpose.msra.mxu0 0.0
    %3005 = vmatprep.subr.mxu0 0.0
    %3006 = vmatpush1.xpose.msra.mxu0 0.0
    %3007 = vmatprep.mubr.f32.mxu0 0.0
    %3008 = vmatmul.mubr.f32.gmra.mrb[0].mxu0 %v2935
    %v3009 = vpop.f32.mrb[0].mxu0
    %v3010 = vadd.f32 %v213, %v3009
    %v3011 = vpop.f32.mrb[0].mxu0
    %3012 = vmatprep.mubr.f32.mxu0 0.0
    %3013 = vmatmul.mubr.f32.gmra.mrb[0].mxu0 %v2937
    %v3014 = vpop.f32.mrb[0].mxu0
    %v3015 = vadd.f32 %v213, %v3014
    %v3016 = vpop.f32.mrb[0].mxu0
    %3017 = vdwg.mxu0
    %v3018 = vsel %vm221, %v3010, -inf
    %3019 = vmax.xlane.f32.xlu0 %v3018
    %v3020 = vpop.xlane.xlu0 %3019
    %v3021 = vsel %vm221, %v3015, -inf
    %3022 = vmax.xlane.f32.xlu0 %v3021
    %v3023 = vpop.xlane.xlu0 %3022
    %v3024 = vsub.f32 %v3010, %v3020
    %v3025 = vsub.f32 %v3015, %v3023
    %v3026 = vmul.f32 %v3024, 1.442695
    %v3027 = vpow.pop %v3026
    %v3028 = vmul.f32 %v3025, 1.442695
    %v3029 = vpow.pop %v3028
    %v3030 = vsel %vm221, %v3027, 0.0
    %3031 = vadd.xlane.f32.xlu0 %v3030
    %v3032 = vpop.xlane.xlu0 %3031
    %v3033 = vsel %vm221, %v3029, 0.0
    %3034 = vadd.xlane.f32.xlu0 %v3033
    %v3035 = vpop.xlane.xlu0 %3034
    %v3036 = vrcp.pop %v3032
    %v3037 = vrcp.pop %v3035
    %v3038 = vmul.f32 %v3027, %v3036
    %v3039 = vmul.f32 %v3029, %v3037
    %3040 = vrot.lane.b32.xlu0 %v2513, 96
    %v3041 = vpop.permute.xlu0 %3040
    %3042 = vrot.lane.b32.xlu0 %v2519, 96
    %v3043 = vpop.permute.xlu0 %3042
    %v3047 = vsel %vm221, %v3038, 0
    %v3050 = vsel %vm221, %v3039, 0
    %3052 = vmatprep.subr.mxu0 0.0
    %3053 = vmatpush1.msra.mxu0 %v3041
    %3054 = vmatprep.subr.mxu0 0.0
    %3055 = vmatpush1.msra.mxu0 %v3043
    %3056 = vmatprep.subr.mxu0 0.0
    %3057 = vmatpush1.msra.mxu0 0.0
    %3058 = vmatprep.subr.mxu0 0.0
    %3059 = vmatpush1.msra.mxu0 0.0
    %3060 = vmatprep.subr.mxu0 0.0
    %3061 = vmatpush1.msra.mxu0 0.0
    %3062 = vmatprep.subr.mxu0 0.0
    %3063 = vmatpush1.msra.mxu0 0.0
    %3064 = vmatprep.subr.mxu0 0.0
    %3065 = vmatpush1.msra.mxu0 0.0
    %3066 = vmatprep.subr.mxu0 0.0
    %3067 = vmatpush1.msra.mxu0 0.0
    %3068 = vmatprep.subr.mxu0 0.0
    %3069 = vmatpush1.msra.mxu0 0.0
    %3070 = vmatprep.subr.mxu0 0.0
    %3071 = vmatpush1.msra.mxu0 0.0
    %3072 = vmatprep.subr.mxu0 0.0
    %3073 = vmatpush1.msra.mxu0 0.0
    %3074 = vmatprep.subr.mxu0 0.0
    %3075 = vmatpush1.msra.mxu0 0.0
    %3076 = vmatprep.subr.mxu0 0.0
    %3077 = vmatpush1.msra.mxu0 0.0
    %3078 = vmatprep.subr.mxu0 0.0
    %3079 = vmatpush1.msra.mxu0 0.0
    %3080 = vmatprep.subr.mxu0 0.0
    %3081 = vmatpush1.msra.mxu0 0.0
    %3082 = vmatprep.subr.mxu0 0.0
    %3083 = vmatpush1.msra.mxu0 0.0
    %3084 = vmatprep.subr.mxu0 0.0
    %3085 = vmatpush1.msra.mxu0 0.0
    %3086 = vmatprep.subr.mxu0 0.0
    %3087 = vmatpush1.msra.mxu0 0.0
    %3088 = vmatprep.subr.mxu0 0.0
    %3089 = vmatpush1.msra.mxu0 0.0
    %3090 = vmatprep.subr.mxu0 0.0
    %3091 = vmatpush1.msra.mxu0 0.0
    %3092 = vmatprep.subr.mxu0 0.0
    %3093 = vmatpush1.msra.mxu0 0.0
    %3094 = vmatprep.subr.mxu0 0.0
    %3095 = vmatpush1.msra.mxu0 0.0
    %3096 = vmatprep.subr.mxu0 0.0
    %3097 = vmatpush1.msra.mxu0 0.0
    %3098 = vmatprep.subr.mxu0 0.0
    %3099 = vmatpush1.msra.mxu0 0.0
    %3100 = vmatprep.subr.mxu0 0.0
    %3101 = vmatpush1.msra.mxu0 0.0
    %3102 = vmatprep.subr.mxu0 0.0
    %3103 = vmatpush1.msra.mxu0 0.0
    %3104 = vmatprep.subr.mxu0 0.0
    %3105 = vmatpush1.msra.mxu0 0.0
    %3106 = vmatprep.subr.mxu0 0.0
    %3107 = vmatpush1.msra.mxu0 0.0
    %3108 = vmatprep.subr.mxu0 0.0
    %3109 = vmatpush1.msra.mxu0 0.0
    %3110 = vmatprep.subr.mxu0 0.0
    %3111 = vmatpush1.msra.mxu0 0.0
    %3112 = vmatprep.subr.mxu0 0.0
    %3113 = vmatpush1.msra.mxu0 0.0
    %3114 = vmatprep.subr.mxu0 0.0
    %3115 = vmatpush1.msra.mxu0 0.0
    %3116 = vmatprep.mubr.f32.mxu0 0.0
    %3117 = vmatmul.mubr.f32.gmra.mrb[0].mxu0 %v3047
    %v3118 = vpop.f32.mrb[0].mxu0
    %v3119 = vadd.f32 0.0, %v3118
    %v3120 = vpop.f32.mrb[0].mxu0
    %3121 = vmatprep.mubr.f32.mxu0 0.0
    %3122 = vmatmul.mubr.f32.gmra.mrb[0].mxu0 %v3050
    %v3123 = vpop.f32.mrb[0].mxu0
    %v3124 = vadd.f32 0.0, %v3123
    %v3125 = vpop.f32.mrb[0].mxu0
    %3126 = vdwg.mxu0
    %3127 = vrot.lane.b32.xlu0 %v2511, 80
    %v3128 = vpop.permute.xlu0 %3127
    %3129 = vrot.lane.b32.xlu0 %v2517, 80
    %v3130 = vpop.permute.xlu0 %3129
    %3131 = vrot.lane.b32.xlu0 %v2511, 16
    %v3132 = vpop.permute.xlu0 %3131
    %3133 = vrot.lane.b32.xlu0 %v2517, 16
    %v3134 = vpop.permute.xlu0 %3133
    %v3135 = vsel %vm221, %v3128, 0
    %v3137 = vsel %vm221, %v3130, 0
    %v3139 = vsel %vm221, %v3132, 0
    %v3141 = vsel %vm221, %v3134, 0
    %3143 = vmatprep.subr.mxu0 0.0
    %3144 = vmatpush1.xpose.msra.mxu0 %v3139
    %3145 = vmatprep.subr.mxu0 0.0
    %3146 = vmatpush1.xpose.msra.mxu0 %v3141
    %3147 = vmatprep.subr.mxu0 0.0
    %3148 = vmatpush1.xpose.msra.mxu0 0.0
    %3149 = vmatprep.subr.mxu0 0.0
    %3150 = vmatpush1.xpose.msra.mxu0 0.0
    %3151 = vmatprep.subr.mxu0 0.0
    %3152 = vmatpush1.xpose.msra.mxu0 0.0
    %3153 = vmatprep.subr.mxu0 0.0
    %3154 = vmatpush1.xpose.msra.mxu0 0.0
    %3155 = vmatprep.subr.mxu0 0.0
    %3156 = vmatpush1.xpose.msra.mxu0 0.0
    %3157 = vmatprep.subr.mxu0 0.0
    %3158 = vmatpush1.xpose.msra.mxu0 0.0
    %3159 = vmatprep.subr.mxu0 0.0
    %3160 = vmatpush1.xpose.msra.mxu0 0.0
    %3161 = vmatprep.subr.mxu0 0.0
    %3162 = vmatpush1.xpose.msra.mxu0 0.0
    %3163 = vmatprep.subr.mxu0 0.0
    %3164 = vmatpush1.xpose.msra.mxu0 0.0
    %3165 = vmatprep.subr.mxu0 0.0
    %3166 = vmatpush1.xpose.msra.mxu0 0.0
    %3167 = vmatprep.subr.mxu0 0.0
    %3168 = vmatpush1.xpose.msra.mxu0 0.0
    %3169 = vmatprep.subr.mxu0 0.0
    %3170 = vmatpush1.xpose.msra.mxu0 0.0
    %3171 = vmatprep.subr.mxu0 0.0
    %3172 = vmatpush1.xpose.msra.mxu0 0.0
    %3173 = vmatprep.subr.mxu0 0.0
    %3174 = vmatpush1.xpose.msra.mxu0 0.0
    %3175 = vmatprep.subr.mxu0 0.0
    %3176 = vmatpush1.xpose.msra.mxu0 0.0
    %3177 = vmatprep.subr.mxu0 0.0
    %3178 = vmatpush1.xpose.msra.mxu0 0.0
    %3179 = vmatprep.subr.mxu0 0.0
    %3180 = vmatpush1.xpose.msra.mxu0 0.0
    %3181 = vmatprep.subr.mxu0 0.0
    %3182 = vmatpush1.xpose.msra.mxu0 0.0
    %3183 = vmatprep.subr.mxu0 0.0
    %3184 = vmatpush1.xpose.msra.mxu0 0.0
    %3185 = vmatprep.subr.mxu0 0.0
    %3186 = vmatpush1.xpose.msra.mxu0 0.0
    %3187 = vmatprep.subr.mxu0 0.0
    %3188 = vmatpush1.xpose.msra.mxu0 0.0
    %3189 = vmatprep.subr.mxu0 0.0
    %3190 = vmatpush1.xpose.msra.mxu0 0.0
    %3191 = vmatprep.subr.mxu0 0.0
    %3192 = vmatpush1.xpose.msra.mxu0 0.0
    %3193 = vmatprep.subr.mxu0 0.0
    %3194 = vmatpush1.xpose.msra.mxu0 0.0
    %3195 = vmatprep.subr.mxu0 0.0
    %3196 = vmatpush1.xpose.msra.mxu0 0.0
    %3197 = vmatprep.subr.mxu0 0.0
    %3198 = vmatpush1.xpose.msra.mxu0 0.0
    %3199 = vmatprep.subr.mxu0 0.0
    %3200 = vmatpush1.xpose.msra.mxu0 0.0
    %3201 = vmatprep.subr.mxu0 0.0
    %3202 = vmatpush1.xpose.msra.mxu0 0.0
    %3203 = vmatprep.subr.mxu0 0.0
    %3204 = vmatpush1.xpose.msra.mxu0 0.0
    %3205 = vmatprep.subr.mxu0 0.0
    %3206 = vmatpush1.xpose.msra.mxu0 0.0
    %3207 = vmatprep.mubr.f32.mxu0 0.0
    %3208 = vmatmul.mubr.f32.gmra.mrb[0].mxu0 %v3135
    %v3209 = vpop.f32.mrb[0].mxu0
    %v3210 = vadd.f32 %v213, %v3209
    %v3211 = vpop.f32.mrb[0].mxu0
    %3212 = vmatprep.mubr.f32.mxu0 0.0
    %3213 = vmatmul.mubr.f32.gmra.mrb[0].mxu0 %v3137
    %v3214 = vpop.f32.mrb[0].mxu0
    %v3215 = vadd.f32 %v213, %v3214
    %v3216 = vpop.f32.mrb[0].mxu0
    %3217 = vdwg.mxu0
    %v3218 = vsel %vm221, %v3210, -inf
    %3219 = vmax.xlane.f32.xlu0 %v3218
    %v3220 = vpop.xlane.xlu0 %3219
    %v3221 = vsel %vm221, %v3215, -inf
    %3222 = vmax.xlane.f32.xlu0 %v3221
    %v3223 = vpop.xlane.xlu0 %3222
    %v3224 = vsub.f32 %v3210, %v3220
    %v3225 = vsub.f32 %v3215, %v3223
    %v3226 = vmul.f32 %v3224, 1.442695
    %v3227 = vpow.pop %v3226
    %v3228 = vmul.f32 %v3225, 1.442695
    %v3229 = vpow.pop %v3228
    %v3230 = vsel %vm221, %v3227, 0.0
    %3231 = vadd.xlane.f32.xlu0 %v3230
    %v3232 = vpop.xlane.xlu0 %3231
    %v3233 = vsel %vm221, %v3229, 0.0
    %3234 = vadd.xlane.f32.xlu0 %v3233
    %v3235 = vpop.xlane.xlu0 %3234
    %v3236 = vrcp.pop %v3232
    %v3237 = vrcp.pop %v3235
    %v3238 = vmul.f32 %v3227, %v3236
    %v3239 = vmul.f32 %v3229, %v3237
    %3240 = vrot.lane.b32.xlu0 %v2513, 80
    %v3241 = vpop.permute.xlu0 %3240
    %3242 = vrot.lane.b32.xlu0 %v2519, 80
    %v3243 = vpop.permute.xlu0 %3242
    %v3247 = vsel %vm221, %v3238, 0
    %v3250 = vsel %vm221, %v3239, 0
    %3252 = vmatprep.subr.mxu0 0.0
    %3253 = vmatpush1.msra.mxu0 %v3241
    %3254 = vmatprep.subr.mxu0 0.0
    %3255 = vmatpush1.msra.mxu0 %v3243
    %3256 = vmatprep.subr.mxu0 0.0
    %3257 = vmatpush1.msra.mxu0 0.0
    %3258 = vmatprep.subr.mxu0 0.0
    %3259 = vmatpush1.msra.mxu0 0.0
    %3260 = vmatprep.subr.mxu0 0.0
    %3261 = vmatpush1.msra.mxu0 0.0
    %3262 = vmatprep.subr.mxu0 0.0
    %3263 = vmatpush1.msra.mxu0 0.0
    %3264 = vmatprep.subr.mxu0 0.0
    %3265 = vmatpush1.msra.mxu0 0.0
    %3266 = vmatprep.subr.mxu0 0.0
    %3267 = vmatpush1.msra.mxu0 0.0
    %3268 = vmatprep.subr.mxu0 0.0
    %3269 = vmatpush1.msra.mxu0 0.0
    %3270 = vmatprep.subr.mxu0 0.0
    %3271 = vmatpush1.msra.mxu0 0.0
    %3272 = vmatprep.subr.mxu0 0.0
    %3273 = vmatpush1.msra.mxu0 0.0
    %3274 = vmatprep.subr.mxu0 0.0
    %3275 = vmatpush1.msra.mxu0 0.0
    %3276 = vmatprep.subr.mxu0 0.0
    %3277 = vmatpush1.msra.mxu0 0.0
    %3278 = vmatprep.subr.mxu0 0.0
    %3279 = vmatpush1.msra.mxu0 0.0
    %3280 = vmatprep.subr.mxu0 0.0
    %3281 = vmatpush1.msra.mxu0 0.0
    %3282 = vmatprep.subr.mxu0 0.0
    %3283 = vmatpush1.msra.mxu0 0.0
    %3284 = vmatprep.subr.mxu0 0.0
    %3285 = vmatpush1.msra.mxu0 0.0
    %3286 = vmatprep.subr.mxu0 0.0
    %3287 = vmatpush1.msra.mxu0 0.0
    %3288 = vmatprep.subr.mxu0 0.0
    %3289 = vmatpush1.msra.mxu0 0.0
    %3290 = vmatprep.subr.mxu0 0.0
    %3291 = vmatpush1.msra.mxu0 0.0
    %3292 = vmatprep.subr.mxu0 0.0
    %3293 = vmatpush1.msra.mxu0 0.0
    %3294 = vmatprep.subr.mxu0 0.0
    %3295 = vmatpush1.msra.mxu0 0.0
    %3296 = vmatprep.subr.mxu0 0.0
    %3297 = vmatpush1.msra.mxu0 0.0
    %3298 = vmatprep.subr.mxu0 0.0
    %3299 = vmatpush1.msra.mxu0 0.0
    %3300 = vmatprep.subr.mxu0 0.0
    %3301 = vmatpush1.msra.mxu0 0.0
    %3302 = vmatprep.subr.mxu0 0.0
    %3303 = vmatpush1.msra.mxu0 0.0
    %3304 = vmatprep.subr.mxu0 0.0
    %3305 = vmatpush1.msra.mxu0 0.0
    %3306 = vmatprep.subr.mxu0 0.0
    %3307 = vmatpush1.msra.mxu0 0.0
    %3308 = vmatprep.subr.mxu0 0.0
    %3309 = vmatpush1.msra.mxu0 0.0
    %3310 = vmatprep.subr.mxu0 0.0
    %3311 = vmatpush1.msra.mxu0 0.0
    %3312 = vmatprep.subr.mxu0 0.0
    %3313 = vmatpush1.msra.mxu0 0.0
    %3314 = vmatprep.subr.mxu0 0.0
    %3315 = vmatpush1.msra.mxu0 0.0
    %3316 = vmatprep.mubr.f32.mxu0 0.0
    %3317 = vmatmul.mubr.f32.gmra.mrb[0].mxu0 %v3247
    %v3318 = vpop.f32.mrb[0].mxu0
    %v3319 = vadd.f32 0.0, %v3318
    %v3320 = vpop.f32.mrb[0].mxu0
    %3321 = vmatprep.mubr.f32.mxu0 0.0
    %3322 = vmatmul.mubr.f32.gmra.mrb[0].mxu0 %v3250
    %v3323 = vpop.f32.mrb[0].mxu0
    %v3324 = vadd.f32 0.0, %v3323
    %v3325 = vpop.f32.mrb[0].mxu0
    %3326 = vdwg.mxu0
    %3329 = vrot.lane.b32.xlu0 %v2919, 16
    %v3330 = vpop.permute.xlu0 %3329
    %3331 = vrot.lane.b32.xlu0 %v2924, 16
    %v3332 = vpop.permute.xlu0 %3331
    %3337 = vrot.lane.b32.xlu0 %v3119, 32
    %v3338 = vpop.permute.xlu0 %3337
    %3339 = vrot.lane.b32.xlu0 %v3124, 32
    %v3340 = vpop.permute.xlu0 %3339
    %3345 = vrot.lane.b32.xlu0 %v3319, 48
    %v3346 = vpop.permute.xlu0 %3345
    %3347 = vrot.lane.b32.xlu0 %v3324, 48
    %v3348 = vpop.permute.xlu0 %3347
    %v3351 = vsel %vm221, %v2717, %v3330
    %v3352 = vsel %vm221, %v2722, %v3332
    %v3353 = vsel %vm1036, %v3351, %v3338
    %v3354 = vsel %vm1036, %v3352, %v3340
    %v3355 = vsel %vm1039, %v3353, %v3346
    %v3356 = vsel %vm1039, %v3354, %v3348
    %3359 = vrot.lane.b32.xlu0 %v2523, 64
    %v3360 = vpop.permute.xlu0 %3359
    %3361 = vrot.lane.b32.xlu0 %v2529, 64
    %v3362 = vpop.permute.xlu0 %3361
    %v3363 = vsel %vm221, %v2523, 0
    %v3365 = vsel %vm221, %v2529, 0
    %v3367 = vsel %vm221, %v3360, 0
    %v3369 = vsel %vm221, %v3362, 0
    %3371 = vmatprep.subr.mxu0 0.0
    %3372 = vmatpush1.xpose.msra.mxu0 %v3367
    %3373 = vmatprep.subr.mxu0 0.0
    %3374 = vmatpush1.xpose.msra.mxu0 %v3369
    %3375 = vmatprep.subr.mxu0 0.0
    %3376 = vmatpush1.xpose.msra.mxu0 0.0
    %3377 = vmatprep.subr.mxu0 0.0
    %3378 = vmatpush1.xpose.msra.mxu0 0.0
    %3379 = vmatprep.subr.mxu0 0.0
    %3380 = vmatpush1.xpose.msra.mxu0 0.0
    %3381 = vmatprep.subr.mxu0 0.0
    %3382 = vmatpush1.xpose.msra.mxu0 0.0
    %3383 = vmatprep.subr.mxu0 0.0
    %3384 = vmatpush1.xpose.msra.mxu0 0.0
    %3385 = vmatprep.subr.mxu0 0.0
    %3386 = vmatpush1.xpose.msra.mxu0 0.0
    %3387 = vmatprep.subr.mxu0 0.0
    %3388 = vmatpush1.xpose.msra.mxu0 0.0
    %3389 = vmatprep.subr.mxu0 0.0
    %3390 = vmatpush1.xpose.msra.mxu0 0.0
    %3391 = vmatprep.subr.mxu0 0.0
    %3392 = vmatpush1.xpose.msra.mxu0 0.0
    %3393 = vmatprep.subr.mxu0 0.0
    %3394 = vmatpush1.xpose.msra.mxu0 0.0
    %3395 = vmatprep.subr.mxu0 0.0
    %3396 = vmatpush1.xpose.msra.mxu0 0.0
    %3397 = vmatprep.subr.mxu0 0.0
    %3398 = vmatpush1.xpose.msra.mxu0 0.0
    %3399 = vmatprep.subr.mxu0 0.0
    %3400 = vmatpush1.xpose.msra.mxu0 0.0
    %3401 = vmatprep.subr.mxu0 0.0
    %3402 = vmatpush1.xpose.msra.mxu0 0.0
    %3403 = vmatprep.subr.mxu0 0.0
    %3404 = vmatpush1.xpose.msra.mxu0 0.0
    %3405 = vmatprep.subr.mxu0 0.0
    %3406 = vmatpush1.xpose.msra.mxu0 0.0
    %3407 = vmatprep.subr.mxu0 0.0
    %3408 = vmatpush1.xpose.msra.mxu0 0.0
    %3409 = vmatprep.subr.mxu0 0.0
    %3410 = vmatpush1.xpose.msra.mxu0 0.0
    %3411 = vmatprep.subr.mxu0 0.0
    %3412 = vmatpush1.xpose.msra.mxu0 0.0
    %3413 = vmatprep.subr.mxu0 0.0
    %3414 = vmatpush1.xpose.msra.mxu0 0.0
    %3415 = vmatprep.subr.mxu0 0.0
    %3416 = vmatpush1.xpose.msra.mxu0 0.0
    %3417 = vmatprep.subr.mxu0 0.0
    %3418 = vmatpush1.xpose.msra.mxu0 0.0
    %3419 = vmatprep.subr.mxu0 0.0
    %3420 = vmatpush1.xpose.msra.mxu0 0.0
    %3421 = vmatprep.subr.mxu0 0.0
    %3422 = vmatpush1.xpose.msra.mxu0 0.0
    %3423 = vmatprep.subr.mxu0 0.0
    %3424 = vmatpush1.xpose.msra.mxu0 0.0
    %3425 = vmatprep.subr.mxu0 0.0
    %3426 = vmatpush1.xpose.msra.mxu0 0.0
    %3427 = vmatprep.subr.mxu0 0.0
    %3428 = vmatpush1.xpose.msra.mxu0 0.0
    %3429 = vmatprep.subr.mxu0 0.0
    %3430 = vmatpush1.xpose.msra.mxu0 0.0
    %3431 = vmatprep.subr.mxu0 0.0
    %3432 = vmatpush1.xpose.msra.mxu0 0.0
    %3433 = vmatprep.subr.mxu0 0.0
    %3434 = vmatpush1.xpose.msra.mxu0 0.0
    %3435 = vmatprep.mubr.f32.mxu0 0.0
    %3436 = vmatmul.mubr.f32.gmra.mrb[0].mxu0 %v3363
    %v3437 = vpop.f32.mrb[0].mxu0
    %v3438 = vadd.f32 %v1046, %v3437
    %v3439 = vpop.f32.mrb[0].mxu0
    %3440 = vmatprep.mubr.f32.mxu0 0.0
    %3441 = vmatmul.mubr.f32.gmra.mrb[0].mxu0 %v3365
    %v3442 = vpop.f32.mrb[0].mxu0
    %v3443 = vadd.f32 %v1046, %v3442
    %v3444 = vpop.f32.mrb[0].mxu0
    %3445 = vdwg.mxu0
    %v3446 = vsel %vm221, %v3438, -inf
    %3447 = vmax.xlane.f32.xlu0 %v3446
    %v3448 = vpop.xlane.xlu0 %3447
    %v3449 = vsel %vm221, %v3443, -inf
    %3450 = vmax.xlane.f32.xlu0 %v3449
    %v3451 = vpop.xlane.xlu0 %3450
    %v3452 = vsub.f32 %v3438, %v3448
    %v3453 = vsub.f32 %v3443, %v3451
    %v3454 = vmul.f32 %v3452, 1.442695
    %v3455 = vpow.pop %v3454
    %v3456 = vmul.f32 %v3453, 1.442695
    %v3457 = vpow.pop %v3456
    %v3458 = vsel %vm221, %v3455, 0.0
    %3459 = vadd.xlane.f32.xlu0 %v3458
    %v3460 = vpop.xlane.xlu0 %3459
    %v3461 = vsel %vm221, %v3457, 0.0
    %3462 = vadd.xlane.f32.xlu0 %v3461
    %v3463 = vpop.xlane.xlu0 %3462
    %v3464 = vrcp.pop %v3460
    %v3465 = vrcp.pop %v3463
    %v3466 = vmul.f32 %v3455, %v3464
    %v3467 = vmul.f32 %v3457, %v3465
    %v3469 = vsel %vm221, %v3466, 0
    %v3472 = vsel %vm221, %v3467, 0
    %3474 = vmatprep.subr.mxu0 0.0
    %3475 = vmatpush1.msra.mxu0 %v2525
    %3476 = vmatprep.subr.mxu0 0.0
    %3477 = vmatpush1.msra.mxu0 %v2531
    %3478 = vmatprep.subr.mxu0 0.0
    %3479 = vmatpush1.msra.mxu0 0.0
    %3480 = vmatprep.subr.mxu0 0.0
    %3481 = vmatpush1.msra.mxu0 0.0
    %3482 = vmatprep.subr.mxu0 0.0
    %3483 = vmatpush1.msra.mxu0 0.0
    %3484 = vmatprep.subr.mxu0 0.0
    %3485 = vmatpush1.msra.mxu0 0.0
    %3486 = vmatprep.subr.mxu0 0.0
    %3487 = vmatpush1.msra.mxu0 0.0
    %3488 = vmatprep.subr.mxu0 0.0
    %3489 = vmatpush1.msra.mxu0 0.0
    %3490 = vmatprep.subr.mxu0 0.0
    %3491 = vmatpush1.msra.mxu0 0.0
    %3492 = vmatprep.subr.mxu0 0.0
    %3493 = vmatpush1.msra.mxu0 0.0
    %3494 = vmatprep.subr.mxu0 0.0
    %3495 = vmatpush1.msra.mxu0 0.0
    %3496 = vmatprep.subr.mxu0 0.0
    %3497 = vmatpush1.msra.mxu0 0.0
    %3498 = vmatprep.subr.mxu0 0.0
    %3499 = vmatpush1.msra.mxu0 0.0
    %3500 = vmatprep.subr.mxu0 0.0
    %3501 = vmatpush1.msra.mxu0 0.0
    %3502 = vmatprep.subr.mxu0 0.0
    %3503 = vmatpush1.msra.mxu0 0.0
    %3504 = vmatprep.subr.mxu0 0.0
    %3505 = vmatpush1.msra.mxu0 0.0
    %3506 = vmatprep.subr.mxu0 0.0
    %3507 = vmatpush1.msra.mxu0 0.0
    %3508 = vmatprep.subr.mxu0 0.0
    %3509 = vmatpush1.msra.mxu0 0.0
    %3510 = vmatprep.subr.mxu0 0.0
    %3511 = vmatpush1.msra.mxu0 0.0
    %3512 = vmatprep.subr.mxu0 0.0
    %3513 = vmatpush1.msra.mxu0 0.0
    %3514 = vmatprep.subr.mxu0 0.0
    %3515 = vmatpush1.msra.mxu0 0.0
    %3516 = vmatprep.subr.mxu0 0.0
    %3517 = vmatpush1.msra.mxu0 0.0
    %3518 = vmatprep.subr.mxu0 0.0
    %3519 = vmatpush1.msra.mxu0 0.0
    %3520 = vmatprep.subr.mxu0 0.0
    %3521 = vmatpush1.msra.mxu0 0.0
    %3522 = vmatprep.subr.mxu0 0.0
    %3523 = vmatpush1.msra.mxu0 0.0
    %3524 = vmatprep.subr.mxu0 0.0
    %3525 = vmatpush1.msra.mxu0 0.0
    %3526 = vmatprep.subr.mxu0 0.0
    %3527 = vmatpush1.msra.mxu0 0.0
    %3528 = vmatprep.subr.mxu0 0.0
    %3529 = vmatpush1.msra.mxu0 0.0
    %3530 = vmatprep.subr.mxu0 0.0
    %3531 = vmatpush1.msra.mxu0 0.0
    %3532 = vmatprep.subr.mxu0 0.0
    %3533 = vmatpush1.msra.mxu0 0.0
    %3534 = vmatprep.subr.mxu0 0.0
    %3535 = vmatpush1.msra.mxu0 0.0
    %3536 = vmatprep.subr.mxu0 0.0
    %3537 = vmatpush1.msra.mxu0 0.0
    %3538 = vmatprep.mubr.f32.mxu0 0.0
    %3539 = vmatmul.mubr.f32.gmra.mrb[0].mxu0 %v3469
    %v3540 = vpop.f32.mrb[0].mxu0
    %v3541 = vadd.f32 0.0, %v3540
    %v3542 = vpop.f32.mrb[0].mxu0
    %3543 = vmatprep.mubr.f32.mxu0 0.0
    %3544 = vmatmul.mubr.f32.gmra.mrb[0].mxu0 %v3472
    %v3545 = vpop.f32.mrb[0].mxu0
    %v3546 = vadd.f32 0.0, %v3545
    %v3547 = vpop.f32.mrb[0].mxu0
    %3548 = vdwg.mxu0
    %3549 = vrot.lane.b32.xlu0 %v2523, 112
    %v3550 = vpop.permute.xlu0 %3549
    %3551 = vrot.lane.b32.xlu0 %v2529, 112
    %v3552 = vpop.permute.xlu0 %3551
    %3553 = vrot.lane.b32.xlu0 %v2523, 48
    %v3554 = vpop.permute.xlu0 %3553
    %3555 = vrot.lane.b32.xlu0 %v2529, 48
    %v3556 = vpop.permute.xlu0 %3555
    %v3557 = vsel %vm221, %v3550, 0
    %v3559 = vsel %vm221, %v3552, 0
    %v3561 = vsel %vm221, %v3554, 0
    %v3563 = vsel %vm221, %v3556, 0
    %3565 = vmatprep.subr.mxu0 0.0
    %3566 = vmatpush1.xpose.msra.mxu0 %v3561
    %3567 = vmatprep.subr.mxu0 0.0
    %3568 = vmatpush1.xpose.msra.mxu0 %v3563
    %3569 = vmatprep.subr.mxu0 0.0
    %3570 = vmatpush1.xpose.msra.mxu0 0.0
    %3571 = vmatprep.subr.mxu0 0.0
    %3572 = vmatpush1.xpose.msra.mxu0 0.0
    %3573 = vmatprep.subr.mxu0 0.0
    %3574 = vmatpush1.xpose.msra.mxu0 0.0
    %3575 = vmatprep.subr.mxu0 0.0
    %3576 = vmatpush1.xpose.msra.mxu0 0.0
    %3577 = vmatprep.subr.mxu0 0.0
    %3578 = vmatpush1.xpose.msra.mxu0 0.0
    %3579 = vmatprep.subr.mxu0 0.0
    %3580 = vmatpush1.xpose.msra.mxu0 0.0
    %3581 = vmatprep.subr.mxu0 0.0
    %3582 = vmatpush1.xpose.msra.mxu0 0.0
    %3583 = vmatprep.subr.mxu0 0.0
    %3584 = vmatpush1.xpose.msra.mxu0 0.0
    %3585 = vmatprep.subr.mxu0 0.0
    %3586 = vmatpush1.xpose.msra.mxu0 0.0
    %3587 = vmatprep.subr.mxu0 0.0
    %3588 = vmatpush1.xpose.msra.mxu0 0.0
    %3589 = vmatprep.subr.mxu0 0.0
    %3590 = vmatpush1.xpose.msra.mxu0 0.0
    %3591 = vmatprep.subr.mxu0 0.0
    %3592 = vmatpush1.xpose.msra.mxu0 0.0
    %3593 = vmatprep.subr.mxu0 0.0
    %3594 = vmatpush1.xpose.msra.mxu0 0.0
    %3595 = vmatprep.subr.mxu0 0.0
    %3596 = vmatpush1.xpose.msra.mxu0 0.0
    %3597 = vmatprep.subr.mxu0 0.0
    %3598 = vmatpush1.xpose.msra.mxu0 0.0
    %3599 = vmatprep.subr.mxu0 0.0
    %3600 = vmatpush1.xpose.msra.mxu0 0.0
    %3601 = vmatprep.subr.mxu0 0.0
    %3602 = vmatpush1.xpose.msra.mxu0 0.0
    %3603 = vmatprep.subr.mxu0 0.0
    %3604 = vmatpush1.xpose.msra.mxu0 0.0
    %3605 = vmatprep.subr.mxu0 0.0
    %3606 = vmatpush1.xpose.msra.mxu0 0.0
    %3607 = vmatprep.subr.mxu0 0.0
    %3608 = vmatpush1.xpose.msra.mxu0 0.0
    %3609 = vmatprep.subr.mxu0 0.0
    %3610 = vmatpush1.xpose.msra.mxu0 0.0
    %3611 = vmatprep.subr.mxu0 0.0
    %3612 = vmatpush1.xpose.msra.mxu0 0.0
    %3613 = vmatprep.subr.mxu0 0.0
    %3614 = vmatpush1.xpose.msra.mxu0 0.0
    %3615 = vmatprep.subr.mxu0 0.0
    %3616 = vmatpush1.xpose.msra.mxu0 0.0
    %3617 = vmatprep.subr.mxu0 0.0
    %3618 = vmatpush1.xpose.msra.mxu0 0.0
    %3619 = vmatprep.subr.mxu0 0.0
    %3620 = vmatpush1.xpose.msra.mxu0 0.0
    %3621 = vmatprep.subr.mxu0 0.0
    %3622 = vmatpush1.xpose.msra.mxu0 0.0
    %3623 = vmatprep.subr.mxu0 0.0
    %3624 = vmatpush1.xpose.msra.mxu0 0.0
    %3625 = vmatprep.subr.mxu0 0.0
    %3626 = vmatpush1.xpose.msra.mxu0 0.0
    %3627 = vmatprep.subr.mxu0 0.0
    %3628 = vmatpush1.xpose.msra.mxu0 0.0
    %3629 = vmatprep.mubr.f32.mxu0 0.0
    %3630 = vmatmul.mubr.f32.gmra.mrb[0].mxu0 %v3557
    %v3631 = vpop.f32.mrb[0].mxu0
    %v3632 = vadd.f32 %v1046, %v3631
    %v3633 = vpop.f32.mrb[0].mxu0
    %3634 = vmatprep.mubr.f32.mxu0 0.0
    %3635 = vmatmul.mubr.f32.gmra.mrb[0].mxu0 %v3559
    %v3636 = vpop.f32.mrb[0].mxu0
    %v3637 = vadd.f32 %v1046, %v3636
    %v3638 = vpop.f32.mrb[0].mxu0
    %3639 = vdwg.mxu0
    %v3640 = vsel %vm221, %v3632, -inf
    %3641 = vmax.xlane.f32.xlu0 %v3640
    %v3642 = vpop.xlane.xlu0 %3641
    %v3643 = vsel %vm221, %v3637, -inf
    %3644 = vmax.xlane.f32.xlu0 %v3643
    %v3645 = vpop.xlane.xlu0 %3644
    %v3646 = vsub.f32 %v3632, %v3642
    %v3647 = vsub.f32 %v3637, %v3645
    %v3648 = vmul.f32 %v3646, 1.442695
    %v3649 = vpow.pop %v3648
    %v3650 = vmul.f32 %v3647, 1.442695
    %v3651 = vpow.pop %v3650
    %v3652 = vsel %vm221, %v3649, 0.0
    %3653 = vadd.xlane.f32.xlu0 %v3652
    %v3654 = vpop.xlane.xlu0 %3653
    %v3655 = vsel %vm221, %v3651, 0.0
    %3656 = vadd.xlane.f32.xlu0 %v3655
    %v3657 = vpop.xlane.xlu0 %3656
    %v3658 = vrcp.pop %v3654
    %v3659 = vrcp.pop %v3657
    %v3660 = vmul.f32 %v3649, %v3658
    %v3661 = vmul.f32 %v3651, %v3659
    %3664 = vrot.lane.b32.xlu0 %v2525, 112
    %v3665 = vpop.permute.xlu0 %3664
    %3666 = vrot.lane.b32.xlu0 %v2531, 112
    %v3667 = vpop.permute.xlu0 %3666
    %v3671 = vsel %vm221, %v3660, 0
    %v3674 = vsel %vm221, %v3661, 0
    %3676 = vmatprep.subr.mxu0 0.0
    %3677 = vmatpush1.msra.mxu0 %v3665
    %3678 = vmatprep.subr.mxu0 0.0
    %3679 = vmatpush1.msra.mxu0 %v3667
    %3680 = vmatprep.subr.mxu0 0.0
    %3681 = vmatpush1.msra.mxu0 0.0
    %3682 = vmatprep.subr.mxu0 0.0
    %3683 = vmatpush1.msra.mxu0 0.0
    %3684 = vmatprep.subr.mxu0 0.0
    %3685 = vmatpush1.msra.mxu0 0.0
    %3686 = vmatprep.subr.mxu0 0.0
    %3687 = vmatpush1.msra.mxu0 0.0
    %3688 = vmatprep.subr.mxu0 0.0
    %3689 = vmatpush1.msra.mxu0 0.0
    %3690 = vmatprep.subr.mxu0 0.0
    %3691 = vmatpush1.msra.mxu0 0.0
    %3692 = vmatprep.subr.mxu0 0.0
    %3693 = vmatpush1.msra.mxu0 0.0
    %3694 = vmatprep.subr.mxu0 0.0
    %3695 = vmatpush1.msra.mxu0 0.0
    %3696 = vmatprep.subr.mxu0 0.0
    %3697 = vmatpush1.msra.mxu0 0.0
    %3698 = vmatprep.subr.mxu0 0.0
    %3699 = vmatpush1.msra.mxu0 0.0
    %3700 = vmatprep.subr.mxu0 0.0
    %3701 = vmatpush1.msra.mxu0 0.0
    %3702 = vmatprep.subr.mxu0 0.0
    %3703 = vmatpush1.msra.mxu0 0.0
    %3704 = vmatprep.subr.mxu0 0.0
    %3705 = vmatpush1.msra.mxu0 0.0
    %3706 = vmatprep.subr.mxu0 0.0
    %3707 = vmatpush1.msra.mxu0 0.0
    %3708 = vmatprep.subr.mxu0 0.0
    %3709 = vmatpush1.msra.mxu0 0.0
    %3710 = vmatprep.subr.mxu0 0.0
    %3711 = vmatpush1.msra.mxu0 0.0
    %3712 = vmatprep.subr.mxu0 0.0
    %3713 = vmatpush1.msra.mxu0 0.0
    %3714 = vmatprep.subr.mxu0 0.0
    %3715 = vmatpush1.msra.mxu0 0.0
    %3716 = vmatprep.subr.mxu0 0.0
    %3717 = vmatpush1.msra.mxu0 0.0
    %3718 = vmatprep.subr.mxu0 0.0
    %3719 = vmatpush1.msra.mxu0 0.0
    %3720 = vmatprep.subr.mxu0 0.0
    %3721 = vmatpush1.msra.mxu0 0.0
    %3722 = vmatprep.subr.mxu0 0.0
    %3723 = vmatpush1.msra.mxu0 0.0
    %3724 = vmatprep.subr.mxu0 0.0
    %3725 = vmatpush1.msra.mxu0 0.0
    %3726 = vmatprep.subr.mxu0 0.0
    %3727 = vmatpush1.msra.mxu0 0.0
    %3728 = vmatprep.subr.mxu0 0.0
    %3729 = vmatpush1.msra.mxu0 0.0
    %3730 = vmatprep.subr.mxu0 0.0
    %3731 = vmatpush1.msra.mxu0 0.0
    %3732 = vmatprep.subr.mxu0 0.0
    %3733 = vmatpush1.msra.mxu0 0.0
    %3734 = vmatprep.subr.mxu0 0.0
    %3735 = vmatpush1.msra.mxu0 0.0
    %3736 = vmatprep.subr.mxu0 0.0
    %3737 = vmatpush1.msra.mxu0 0.0
    %3738 = vmatprep.subr.mxu0 0.0
    %3739 = vmatpush1.msra.mxu0 0.0
    %3740 = vmatprep.mubr.f32.mxu0 0.0
    %3741 = vmatmul.mubr.f32.gmra.mrb[0].mxu0 %v3671
    %v3742 = vpop.f32.mrb[0].mxu0
    %v3743 = vadd.f32 0.0, %v3742
    %v3744 = vpop.f32.mrb[0].mxu0
    %3745 = vmatprep.mubr.f32.mxu0 0.0
    %3746 = vmatmul.mubr.f32.gmra.mrb[0].mxu0 %v3674
    %v3747 = vpop.f32.mrb[0].mxu0
    %v3748 = vadd.f32 0.0, %v3747
    %v3749 = vpop.f32.mrb[0].mxu0
    %3750 = vdwg.mxu0
    %3751 = vrot.lane.b32.xlu0 %v2523, 96
    %v3752 = vpop.permute.xlu0 %3751
    %3753 = vrot.lane.b32.xlu0 %v2529, 96
    %v3754 = vpop.permute.xlu0 %3753
    %3755 = vrot.lane.b32.xlu0 %v2523, 32
    %v3756 = vpop.permute.xlu0 %3755
    %3757 = vrot.lane.b32.xlu0 %v2529, 32
    %v3758 = vpop.permute.xlu0 %3757
    %v3759 = vsel %vm221, %v3752, 0
    %v3761 = vsel %vm221, %v3754, 0
    %v3763 = vsel %vm221, %v3756, 0
    %v3765 = vsel %vm221, %v3758, 0
    %3767 = vmatprep.subr.mxu0 0.0
    %3768 = vmatpush1.xpose.msra.mxu0 %v3763
    %3769 = vmatprep.subr.mxu0 0.0
    %3770 = vmatpush1.xpose.msra.mxu0 %v3765
    %3771 = vmatprep.subr.mxu0 0.0
    %3772 = vmatpush1.xpose.msra.mxu0 0.0
    %3773 = vmatprep.subr.mxu0 0.0
    %3774 = vmatpush1.xpose.msra.mxu0 0.0
    %3775 = vmatprep.subr.mxu0 0.0
    %3776 = vmatpush1.xpose.msra.mxu0 0.0
    %3777 = vmatprep.subr.mxu0 0.0
    %3778 = vmatpush1.xpose.msra.mxu0 0.0
    %3779 = vmatprep.subr.mxu0 0.0
    %3780 = vmatpush1.xpose.msra.mxu0 0.0
    %3781 = vmatprep.subr.mxu0 0.0
    %3782 = vmatpush1.xpose.msra.mxu0 0.0
    %3783 = vmatprep.subr.mxu0 0.0
    %3784 = vmatpush1.xpose.msra.mxu0 0.0
    %3785 = vmatprep.subr.mxu0 0.0
    %3786 = vmatpush1.xpose.msra.mxu0 0.0
    %3787 = vmatprep.subr.mxu0 0.0
    %3788 = vmatpush1.xpose.msra.mxu0 0.0
    %3789 = vmatprep.subr.mxu0 0.0
    %3790 = vmatpush1.xpose.msra.mxu0 0.0
    %3791 = vmatprep.subr.mxu0 0.0
    %3792 = vmatpush1.xpose.msra.mxu0 0.0
    %3793 = vmatprep.subr.mxu0 0.0
    %3794 = vmatpush1.xpose.msra.mxu0 0.0
    %3795 = vmatprep.subr.mxu0 0.0
    %3796 = vmatpush1.xpose.msra.mxu0 0.0
    %3797 = vmatprep.subr.mxu0 0.0
    %3798 = vmatpush1.xpose.msra.mxu0 0.0
    %3799 = vmatprep.subr.mxu0 0.0
    %3800 = vmatpush1.xpose.msra.mxu0 0.0
    %3801 = vmatprep.subr.mxu0 0.0
    %3802 = vmatpush1.xpose.msra.mxu0 0.0
    %3803 = vmatprep.subr.mxu0 0.0
    %3804 = vmatpush1.xpose.msra.mxu0 0.0
    %3805 = vmatprep.subr.mxu0 0.0
    %3806 = vmatpush1.xpose.msra.mxu0 0.0
    %3807 = vmatprep.subr.mxu0 0.0
    %3808 = vmatpush1.xpose.msra.mxu0 0.0
    %3809 = vmatprep.subr.mxu0 0.0
    %3810 = vmatpush1.xpose.msra.mxu0 0.0
    %3811 = vmatprep.subr.mxu0 0.0
    %3812 = vmatpush1.xpose.msra.mxu0 0.0
    %3813 = vmatprep.subr.mxu0 0.0
    %3814 = vmatpush1.xpose.msra.mxu0 0.0
    %3815 = vmatprep.subr.mxu0 0.0
    %3816 = vmatpush1.xpose.msra.mxu0 0.0
    %3817 = vmatprep.subr.mxu0 0.0
    %3818 = vmatpush1.xpose.msra.mxu0 0.0
    %3819 = vmatprep.subr.mxu0 0.0
    %3820 = vmatpush1.xpose.msra.mxu0 0.0
    %3821 = vmatprep.subr.mxu0 0.0
    %3822 = vmatpush1.xpose.msra.mxu0 0.0
    %3823 = vmatprep.subr.mxu0 0.0
    %3824 = vmatpush1.xpose.msra.mxu0 0.0
    %3825 = vmatprep.subr.mxu0 0.0
    %3826 = vmatpush1.xpose.msra.mxu0 0.0
    %3827 = vmatprep.subr.mxu0 0.0
    %3828 = vmatpush1.xpose.msra.mxu0 0.0
    %3829 = vmatprep.subr.mxu0 0.0
    %3830 = vmatpush1.xpose.msra.mxu0 0.0
    %3831 = vmatprep.mubr.f32.mxu0 0.0
    %3832 = vmatmul.mubr.f32.gmra.mrb[0].mxu0 %v3759
    %v3833 = vpop.f32.mrb[0].mxu0
    %v3834 = vadd.f32 %v1046, %v3833
    %v3835 = vpop.f32.mrb[0].mxu0
    %3836 = vmatprep.mubr.f32.mxu0 0.0
    %3837 = vmatmul.mubr.f32.gmra.mrb[0].mxu0 %v3761
    %v3838 = vpop.f32.mrb[0].mxu0
    %v3839 = vadd.f32 %v1046, %v3838
    %v3840 = vpop.f32.mrb[0].mxu0
    %3841 = vdwg.mxu0
    %v3842 = vsel %vm221, %v3834, -inf
    %3843 = vmax.xlane.f32.xlu0 %v3842
    %v3844 = vpop.xlane.xlu0 %3843
    %v3845 = vsel %vm221, %v3839, -inf
    %3846 = vmax.xlane.f32.xlu0 %v3845
    %v3847 = vpop.xlane.xlu0 %3846
    %v3848 = vsub.f32 %v3834, %v3844
    %v3849 = vsub.f32 %v3839, %v3847
    %v3850 = vmul.f32 %v3848, 1.442695
    %v3851 = vpow.pop %v3850
    %v3852 = vmul.f32 %v3849, 1.442695
    %v3853 = vpow.pop %v3852
    %v3854 = vsel %vm221, %v3851, 0.0
    %3855 = vadd.xlane.f32.xlu0 %v3854
    %v3856 = vpop.xlane.xlu0 %3855
    %v3857 = vsel %vm221, %v3853, 0.0
    %3858 = vadd.xlane.f32.xlu0 %v3857
    %v3859 = vpop.xlane.xlu0 %3858
    %v3860 = vrcp.pop %v3856
    %v3861 = vrcp.pop %v3859
    %v3862 = vmul.f32 %v3851, %v3860
    %v3863 = vmul.f32 %v3853, %v3861
    %3864 = vrot.lane.b32.xlu0 %v2525, 96
    %v3865 = vpop.permute.xlu0 %3864
    %3866 = vrot.lane.b32.xlu0 %v2531, 96
    %v3867 = vpop.permute.xlu0 %3866
    %v3871 = vsel %vm221, %v3862, 0
    %v3874 = vsel %vm221, %v3863, 0
    %3876 = vmatprep.subr.mxu0 0.0
    %3877 = vmatpush1.msra.mxu0 %v3865
    %3878 = vmatprep.subr.mxu0 0.0
    %3879 = vmatpush1.msra.mxu0 %v3867
    %3880 = vmatprep.subr.mxu0 0.0
    %3881 = vmatpush1.msra.mxu0 0.0
    %3882 = vmatprep.subr.mxu0 0.0
    %3883 = vmatpush1.msra.mxu0 0.0
    %3884 = vmatprep.subr.mxu0 0.0
    %3885 = vmatpush1.msra.mxu0 0.0
    %3886 = vmatprep.subr.mxu0 0.0
    %3887 = vmatpush1.msra.mxu0 0.0
    %3888 = vmatprep.subr.mxu0 0.0
    %3889 = vmatpush1.msra.mxu0 0.0
    %3890 = vmatprep.subr.mxu0 0.0
    %3891 = vmatpush1.msra.mxu0 0.0
    %3892 = vmatprep.subr.mxu0 0.0
    %3893 = vmatpush1.msra.mxu0 0.0
    %3894 = vmatprep.subr.mxu0 0.0
    %3895 = vmatpush1.msra.mxu0 0.0
    %3896 = vmatprep.subr.mxu0 0.0
    %3897 = vmatpush1.msra.mxu0 0.0
    %3898 = vmatprep.subr.mxu0 0.0
    %3899 = vmatpush1.msra.mxu0 0.0
    %3900 = vmatprep.subr.mxu0 0.0
    %3901 = vmatpush1.msra.mxu0 0.0
    %3902 = vmatprep.subr.mxu0 0.0
    %3903 = vmatpush1.msra.mxu0 0.0
    %3904 = vmatprep.subr.mxu0 0.0
    %3905 = vmatpush1.msra.mxu0 0.0
    %3906 = vmatprep.subr.mxu0 0.0
    %3907 = vmatpush1.msra.mxu0 0.0
    %3908 = vmatprep.subr.mxu0 0.0
    %3909 = vmatpush1.msra.mxu0 0.0
    %3910 = vmatprep.subr.mxu0 0.0
    %3911 = vmatpush1.msra.mxu0 0.0
    %3912 = vmatprep.subr.mxu0 0.0
    %3913 = vmatpush1.msra.mxu0 0.0
    %3914 = vmatprep.subr.mxu0 0.0
    %3915 = vmatpush1.msra.mxu0 0.0
    %3916 = vmatprep.subr.mxu0 0.0
    %3917 = vmatpush1.msra.mxu0 0.0
    %3918 = vmatprep.subr.mxu0 0.0
    %3919 = vmatpush1.msra.mxu0 0.0
    %3920 = vmatprep.subr.mxu0 0.0
    %3921 = vmatpush1.msra.mxu0 0.0
    %3922 = vmatprep.subr.mxu0 0.0
    %3923 = vmatpush1.msra.mxu0 0.0
    %3924 = vmatprep.subr.mxu0 0.0
    %3925 = vmatpush1.msra.mxu0 0.0
    %3926 = vmatprep.subr.mxu0 0.0
    %3927 = vmatpush1.msra.mxu0 0.0
    %3928 = vmatprep.subr.mxu0 0.0
    %3929 = vmatpush1.msra.mxu0 0.0
    %3930 = vmatprep.subr.mxu0 0.0
    %3931 = vmatpush1.msra.mxu0 0.0
    %3932 = vmatprep.subr.mxu0 0.0
    %3933 = vmatpush1.msra.mxu0 0.0
    %3934 = vmatprep.subr.mxu0 0.0
    %3935 = vmatpush1.msra.mxu0 0.0
    %3936 = vmatprep.subr.mxu0 0.0
    %3937 = vmatpush1.msra.mxu0 0.0
    %3938 = vmatprep.subr.mxu0 0.0
    %3939 = vmatpush1.msra.mxu0 0.0
    %3940 = vmatprep.mubr.f32.mxu0 0.0
    %3941 = vmatmul.mubr.f32.gmra.mrb[0].mxu0 %v3871
    %v3942 = vpop.f32.mrb[0].mxu0
    %v3943 = vadd.f32 0.0, %v3942
    %v3944 = vpop.f32.mrb[0].mxu0
    %3945 = vmatprep.mubr.f32.mxu0 0.0
    %3946 = vmatmul.mubr.f32.gmra.mrb[0].mxu0 %v3874
    %v3947 = vpop.f32.mrb[0].mxu0
    %v3948 = vadd.f32 0.0, %v3947
    %v3949 = vpop.f32.mrb[0].mxu0
    %3950 = vdwg.mxu0
    %3951 = vrot.lane.b32.xlu0 %v2523, 80
    %v3952 = vpop.permute.xlu0 %3951
    %3953 = vrot.lane.b32.xlu0 %v2529, 80
    %v3954 = vpop.permute.xlu0 %3953
    %3955 = vrot.lane.b32.xlu0 %v2523, 16
    %v3956 = vpop.permute.xlu0 %3955
    %3957 = vrot.lane.b32.xlu0 %v2529, 16
    %v3958 = vpop.permute.xlu0 %3957
    %v3959 = vsel %vm221, %v3952, 0
    %v3961 = vsel %vm221, %v3954, 0
    %v3963 = vsel %vm221, %v3956, 0
    %v3965 = vsel %vm221, %v3958, 0
    %3967 = vmatprep.subr.mxu0 0.0
    %3968 = vmatpush1.xpose.msra.mxu0 %v3963
    %3969 = vmatprep.subr.mxu0 0.0
    %3970 = vmatpush1.xpose.msra.mxu0 %v3965
    %3971 = vmatprep.subr.mxu0 0.0
    %3972 = vmatpush1.xpose.msra.mxu0 0.0
    %3973 = vmatprep.subr.mxu0 0.0
    %3974 = vmatpush1.xpose.msra.mxu0 0.0
    %3975 = vmatprep.subr.mxu0 0.0
    %3976 = vmatpush1.xpose.msra.mxu0 0.0
    %3977 = vmatprep.subr.mxu0 0.0
    %3978 = vmatpush1.xpose.msra.mxu0 0.0
    %3979 = vmatprep.subr.mxu0 0.0
    %3980 = vmatpush1.xpose.msra.mxu0 0.0
    %3981 = vmatprep.subr.mxu0 0.0
    %3982 = vmatpush1.xpose.msra.mxu0 0.0
    %3983 = vmatprep.subr.mxu0 0.0
    %3984 = vmatpush1.xpose.msra.mxu0 0.0
    %3985 = vmatprep.subr.mxu0 0.0
    %3986 = vmatpush1.xpose.msra.mxu0 0.0
    %3987 = vmatprep.subr.mxu0 0.0
    %3988 = vmatpush1.xpose.msra.mxu0 0.0
    %3989 = vmatprep.subr.mxu0 0.0
    %3990 = vmatpush1.xpose.msra.mxu0 0.0
    %3991 = vmatprep.subr.mxu0 0.0
    %3992 = vmatpush1.xpose.msra.mxu0 0.0
    %3993 = vmatprep.subr.mxu0 0.0
    %3994 = vmatpush1.xpose.msra.mxu0 0.0
    %3995 = vmatprep.subr.mxu0 0.0
    %3996 = vmatpush1.xpose.msra.mxu0 0.0
    %3997 = vmatprep.subr.mxu0 0.0
    %3998 = vmatpush1.xpose.msra.mxu0 0.0
    %3999 = vmatprep.subr.mxu0 0.0
    %4000 = vmatpush1.xpose.msra.mxu0 0.0
    %4001 = vmatprep.subr.mxu0 0.0
    %4002 = vmatpush1.xpose.msra.mxu0 0.0
    %4003 = vmatprep.subr.mxu0 0.0
    %4004 = vmatpush1.xpose.msra.mxu0 0.0
    %4005 = vmatprep.subr.mxu0 0.0
    %4006 = vmatpush1.xpose.msra.mxu0 0.0
    %4007 = vmatprep.subr.mxu0 0.0
    %4008 = vmatpush1.xpose.msra.mxu0 0.0
    %4009 = vmatprep.subr.mxu0 0.0
    %4010 = vmatpush1.xpose.msra.mxu0 0.0
    %4011 = vmatprep.subr.mxu0 0.0
    %4012 = vmatpush1.xpose.msra.mxu0 0.0
    %4013 = vmatprep.subr.mxu0 0.0
    %4014 = vmatpush1.xpose.msra.mxu0 0.0
    %4015 = vmatprep.subr.mxu0 0.0
    %4016 = vmatpush1.xpose.msra.mxu0 0.0
    %4017 = vmatprep.subr.mxu0 0.0
    %4018 = vmatpush1.xpose.msra.mxu0 0.0
    %4019 = vmatprep.subr.mxu0 0.0
    %4020 = vmatpush1.xpose.msra.mxu0 0.0
    %4021 = vmatprep.subr.mxu0 0.0
    %4022 = vmatpush1.xpose.msra.mxu0 0.0
    %4023 = vmatprep.subr.mxu0 0.0
    %4024 = vmatpush1.xpose.msra.mxu0 0.0
    %4025 = vmatprep.subr.mxu0 0.0
    %4026 = vmatpush1.xpose.msra.mxu0 0.0
    %4027 = vmatprep.subr.mxu0 0.0
    %4028 = vmatpush1.xpose.msra.mxu0 0.0
    %4029 = vmatprep.subr.mxu0 0.0
    %4030 = vmatpush1.xpose.msra.mxu0 0.0
    %4031 = vmatprep.mubr.f32.mxu0 0.0
    %4032 = vmatmul.mubr.f32.gmra.mrb[0].mxu0 %v3959
    %v4033 = vpop.f32.mrb[0].mxu0
    %v4034 = vadd.f32 %v1046, %v4033
    %v4035 = vpop.f32.mrb[0].mxu0
    %4036 = vmatprep.mubr.f32.mxu0 0.0
    %4037 = vmatmul.mubr.f32.gmra.mrb[0].mxu0 %v3961
    %v4038 = vpop.f32.mrb[0].mxu0
    %v4039 = vadd.f32 %v1046, %v4038
    %v4040 = vpop.f32.mrb[0].mxu0
    %4041 = vdwg.mxu0
    %v4042 = vsel %vm221, %v4034, -inf
    %4043 = vmax.xlane.f32.xlu0 %v4042
    %v4044 = vpop.xlane.xlu0 %4043
    %v4045 = vsel %vm221, %v4039, -inf
    %4046 = vmax.xlane.f32.xlu0 %v4045
    %v4047 = vpop.xlane.xlu0 %4046
    %v4048 = vsub.f32 %v4034, %v4044
    %v4049 = vsub.f32 %v4039, %v4047
    %v4050 = vmul.f32 %v4048, 1.442695
    %v4051 = vpow.pop %v4050
    %v4052 = vmul.f32 %v4049, 1.442695
    %v4053 = vpow.pop %v4052
    %v4054 = vsel %vm221, %v4051, 0.0
    %4055 = vadd.xlane.f32.xlu0 %v4054
    %v4056 = vpop.xlane.xlu0 %4055
    %v4057 = vsel %vm221, %v4053, 0.0
    %4058 = vadd.xlane.f32.xlu0 %v4057
    %v4059 = vpop.xlane.xlu0 %4058
    %v4060 = vrcp.pop %v4056
    %v4061 = vrcp.pop %v4059
    %v4062 = vmul.f32 %v4051, %v4060
    %v4063 = vmul.f32 %v4053, %v4061
    %4064 = vrot.lane.b32.xlu0 %v2525, 80
    %v4065 = vpop.permute.xlu0 %4064
    %4066 = vrot.lane.b32.xlu0 %v2531, 80
    %v4067 = vpop.permute.xlu0 %4066
    %v4071 = vsel %vm221, %v4062, 0
    %v4074 = vsel %vm221, %v4063, 0
    %4076 = vmatprep.subr.mxu0 0.0
    %4077 = vmatpush1.msra.mxu0 %v4065
    %4078 = vmatprep.subr.mxu0 0.0
    %4079 = vmatpush1.msra.mxu0 %v4067
    %4080 = vmatprep.subr.mxu0 0.0
    %4081 = vmatpush1.msra.mxu0 0.0
    %4082 = vmatprep.subr.mxu0 0.0
    %4083 = vmatpush1.msra.mxu0 0.0
    %4084 = vmatprep.subr.mxu0 0.0
    %4085 = vmatpush1.msra.mxu0 0.0
    %4086 = vmatprep.subr.mxu0 0.0
    %4087 = vmatpush1.msra.mxu0 0.0
    %4088 = vmatprep.subr.mxu0 0.0
    %4089 = vmatpush1.msra.mxu0 0.0
    %4090 = vmatprep.subr.mxu0 0.0
    %4091 = vmatpush1.msra.mxu0 0.0
    %4092 = vmatprep.subr.mxu0 0.0
    %4093 = vmatpush1.msra.mxu0 0.0
    %4094 = vmatprep.subr.mxu0 0.0
    %4095 = vmatpush1.msra.mxu0 0.0
    %4096 = vmatprep.subr.mxu0 0.0
    %4097 = vmatpush1.msra.mxu0 0.0
    %4098 = vmatprep.subr.mxu0 0.0
    %4099 = vmatpush1.msra.mxu0 0.0
    %4100 = vmatprep.subr.mxu0 0.0
    %4101 = vmatpush1.msra.mxu0 0.0
    %4102 = vmatprep.subr.mxu0 0.0
    %4103 = vmatpush1.msra.mxu0 0.0
    %4104 = vmatprep.subr.mxu0 0.0
    %4105 = vmatpush1.msra.mxu0 0.0
    %4106 = vmatprep.subr.mxu0 0.0
    %4107 = vmatpush1.msra.mxu0 0.0
    %4108 = vmatprep.subr.mxu0 0.0
    %4109 = vmatpush1.msra.mxu0 0.0
    %4110 = vmatprep.subr.mxu0 0.0
    %4111 = vmatpush1.msra.mxu0 0.0
    %4112 = vmatprep.subr.mxu0 0.0
    %4113 = vmatpush1.msra.mxu0 0.0
    %4114 = vmatprep.subr.mxu0 0.0
    %4115 = vmatpush1.msra.mxu0 0.0
    %4116 = vmatprep.subr.mxu0 0.0
    %4117 = vmatpush1.msra.mxu0 0.0
    %4118 = vmatprep.subr.mxu0 0.0
    %4119 = vmatpush1.msra.mxu0 0.0
    %4120 = vmatprep.subr.mxu0 0.0
    %4121 = vmatpush1.msra.mxu0 0.0
    %4122 = vmatprep.subr.mxu0 0.0
    %4123 = vmatpush1.msra.mxu0 0.0
    %4124 = vmatprep.subr.mxu0 0.0
    %4125 = vmatpush1.msra.mxu0 0.0
    %4126 = vmatprep.subr.mxu0 0.0
    %4127 = vmatpush1.msra.mxu0 0.0
    %4128 = vmatprep.subr.mxu0 0.0
    %4129 = vmatpush1.msra.mxu0 0.0
    %4130 = vmatprep.subr.mxu0 0.0
    %4131 = vmatpush1.msra.mxu0 0.0
    %4132 = vmatprep.subr.mxu0 0.0
    %4133 = vmatpush1.msra.mxu0 0.0
    %4134 = vmatprep.subr.mxu0 0.0
    %4135 = vmatpush1.msra.mxu0 0.0
    %4136 = vmatprep.subr.mxu0 0.0
    %4137 = vmatpush1.msra.mxu0 0.0
    %4138 = vmatprep.subr.mxu0 0.0
    %4139 = vmatpush1.msra.mxu0 0.0
    %4140 = vmatprep.mubr.f32.mxu0 0.0
    %4141 = vmatmul.mubr.f32.gmra.mrb[0].mxu0 %v4071
    %v4142 = vpop.f32.mrb[0].mxu0
    %v4143 = vadd.f32 0.0, %v4142
    %v4144 = vpop.f32.mrb[0].mxu0
    %4145 = vmatprep.mubr.f32.mxu0 0.0
    %4146 = vmatmul.mubr.f32.gmra.mrb[0].mxu0 %v4074
    %v4147 = vpop.f32.mrb[0].mxu0
    %v4148 = vadd.f32 0.0, %v4147
    %v4149 = vpop.f32.mrb[0].mxu0
    %4150 = vdwg.mxu0
    %4153 = vrot.lane.b32.xlu0 %v3743, 16
    %v4154 = vpop.permute.xlu0 %4153
    %4155 = vrot.lane.b32.xlu0 %v3748, 16
    %v4156 = vpop.permute.xlu0 %4155
    %4161 = vrot.lane.b32.xlu0 %v3943, 32
    %v4162 = vpop.permute.xlu0 %4161
    %4163 = vrot.lane.b32.xlu0 %v3948, 32
    %v4164 = vpop.permute.xlu0 %4163
    %4169 = vrot.lane.b32.xlu0 %v4143, 48
    %v4170 = vpop.permute.xlu0 %4169
    %4171 = vrot.lane.b32.xlu0 %v4148, 48
    %v4172 = vpop.permute.xlu0 %4171
    %v4175 = vsel %vm221, %v3541, %v4154
    %v4176 = vsel %vm221, %v3546, %v4156
    %v4177 = vsel %vm1036, %v4175, %v4162
    %v4178 = vsel %vm1036, %v4176, %v4164
    %v4179 = vsel %vm1039, %v4177, %v4170
    %v4180 = vsel %vm1039, %v4178, %v4172
    %s4181 = scalar_lea.vmem %s5, 64
    %v4182 = vld [vmem:[%s4181] sm:$0xff]
    %v4183 = vld [vmem:[%s4181 + $0x8] sm:$0xff]
    %v4184 = vld [vmem:[%s4181 + $0x10] sm:$0xff]
    %v4185 = vld [vmem:[%s4181 + $0x18] sm:$0xff]
    %v4186 = vld [vmem:[%s4181 + $0x20] sm:$0xff]
    %v4187 = vld [vmem:[%s4181 + $0x28] sm:$0xff]
    %v4188 = vld [vmem:[%s4181 + $0x30] sm:$0xff]
    %v4189 = vld [vmem:[%s4181 + $0x38] sm:$0xff]
    %s4190 = scalar_lea.vmem %s6, 1
    %v4191 = vld [vmem:[%s4190] sm:$0x1]
    %v4193 = vlaneseq
    %v4194 = vshrl.u32 %v4193, 7
    %v4195 = vsub.s32 0, %v4194
    %v4196 = vrot.slane %v4191, %v4195
    %v4199 = vsel %vm107, %v3355, 0
    %v4202 = vsel %vm107, %v3356, 0
    %v4205 = vsel %vm107, %v4179, 0
    %v4208 = vsel %vm107, %v4180, 0
    %4210 = vmatprep.subr.mxu0 0.0
    %4211 = vmatpush1.msra.mxu0 %v4182
    %4212 = vmatprep.subr.mxu0 0.0
    %4213 = vmatpush1.msra.mxu0 %v4183
    %4214 = vmatprep.subr.mxu0 0.0
    %4215 = vmatpush1.msra.mxu0 %v4184
    %4216 = vmatprep.subr.mxu0 0.0
    %4217 = vmatpush1.msra.mxu0 %v4185
    %4218 = vmatprep.subr.mxu0 0.0
    %4219 = vmatpush1.msra.mxu0 %v4186
    %4220 = vmatprep.subr.mxu0 0.0
    %4221 = vmatpush1.msra.mxu0 %v4187
    %4222 = vmatprep.subr.mxu0 0.0
    %4223 = vmatpush1.msra.mxu0 %v4188
    %4224 = vmatprep.subr.mxu0 0.0
    %4225 = vmatpush1.msra.mxu0 %v4189
    %4226 = vmatprep.subr.mxu0 0.0
    %4227 = vmatpush1.msra.mxu0 0.0
    %4228 = vmatprep.subr.mxu0 0.0
    %4229 = vmatpush1.msra.mxu0 0.0
    %4230 = vmatprep.subr.mxu0 0.0
    %4231 = vmatpush1.msra.mxu0 0.0
    %4232 = vmatprep.subr.mxu0 0.0
    %4233 = vmatpush1.msra.mxu0 0.0
    %4234 = vmatprep.subr.mxu0 0.0
    %4235 = vmatpush1.msra.mxu0 0.0
    %4236 = vmatprep.subr.mxu0 0.0
    %4237 = vmatpush1.msra.mxu0 0.0
    %4238 = vmatprep.subr.mxu0 0.0
    %4239 = vmatpush1.msra.mxu0 0.0
    %4240 = vmatprep.subr.mxu0 0.0
    %4241 = vmatpush1.msra.mxu0 0.0
    %4242 = vmatprep.subr.mxu0 0.0
    %4243 = vmatpush1.msra.mxu0 0.0
    %4244 = vmatprep.subr.mxu0 0.0
    %4245 = vmatpush1.msra.mxu0 0.0
    %4246 = vmatprep.subr.mxu0 0.0
    %4247 = vmatpush1.msra.mxu0 0.0
    %4248 = vmatprep.subr.mxu0 0.0
    %4249 = vmatpush1.msra.mxu0 0.0
    %4250 = vmatprep.subr.mxu0 0.0
    %4251 = vmatpush1.msra.mxu0 0.0
    %4252 = vmatprep.subr.mxu0 0.0
    %4253 = vmatpush1.msra.mxu0 0.0
    %4254 = vmatprep.subr.mxu0 0.0
    %4255 = vmatpush1.msra.mxu0 0.0
    %4256 = vmatprep.subr.mxu0 0.0
    %4257 = vmatpush1.msra.mxu0 0.0
    %4258 = vmatprep.subr.mxu0 0.0
    %4259 = vmatpush1.msra.mxu0 0.0
    %4260 = vmatprep.subr.mxu0 0.0
    %4261 = vmatpush1.msra.mxu0 0.0
    %4262 = vmatprep.subr.mxu0 0.0
    %4263 = vmatpush1.msra.mxu0 0.0
    %4264 = vmatprep.subr.mxu0 0.0
    %4265 = vmatpush1.msra.mxu0 0.0
    %4266 = vmatprep.subr.mxu0 0.0
    %4267 = vmatpush1.msra.mxu0 0.0
    %4268 = vmatprep.subr.mxu0 0.0
    %4269 = vmatpush1.msra.mxu0 0.0
    %4270 = vmatprep.subr.mxu0 0.0
    %4271 = vmatpush1.msra.mxu0 0.0
    %4272 = vmatprep.subr.mxu0 0.0
    %4273 = vmatpush1.msra.mxu0 0.0
    %4274 = vmatprep.mubr.f32.mxu0 0.0
    %4275 = vmatmul.mubr.f32.gmra.mrb[0].mxu0 %v4199
    %v4276 = vpop.f32.mrb[0].mxu0
    %v4277 = vadd.f32 %v4196, %v4276
    %v4278 = vpop.f32.mrb[0].mxu0
    %4279 = vmatprep.mubr.f32.mxu0 0.0
    %4280 = vmatmul.mubr.f32.gmra.mrb[0].mxu0 %v4202
    %v4281 = vpop.f32.mrb[0].mxu0
    %v4282 = vadd.f32 %v4196, %v4281
    %v4283 = vpop.f32.mrb[0].mxu0
    %4284 = vmatprep.mubr.f32.mxu0 0.0
    %4285 = vmatmul.mubr.f32.gmra.mrb[0].mxu0 %v4205
    %v4286 = vpop.f32.mrb[0].mxu0
    %v4287 = vadd.f32 %v4196, %v4286
    %v4288 = vpop.f32.mrb[0].mxu0
    %4289 = vmatprep.mubr.f32.mxu0 0.0
    %4290 = vmatmul.mubr.f32.gmra.mrb[0].mxu0 %v4208
    %v4291 = vpop.f32.mrb[0].mxu0
    %v4292 = vadd.f32 %v4196, %v4291
    %v4293 = vpop.f32.mrb[0].mxu0
    %4294 = vdwg.mxu0
    %v4295 = vadd.f32 %v2398, %v4277
    %v4296 = vadd.f32 %v2399, %v4282
    %v4297 = vadd.f32 %v2400, %v4287
    %v4298 = vadd.f32 %v2401, %v4292
    %s4299 = scalar_lea.vmem %s7, 1
    %v4300 = vld [vmem:[%s4299] sm:$0x1]
    %s4301 = scalar_lea.vmem %s8, 1
    %v4302 = vld [vmem:[%s4301] sm:$0x1]
    %v4303 = vsel %vm107, %v4295, 0.0
    %4304 = vadd.xlane.f32.xlu0 %v4303
    %v4305 = vpop.xlane.xlu0 %4304
    %v4306 = vsel %vm107, %v4296, 0.0
    %4307 = vadd.xlane.f32.xlu0 %v4306
    %v4308 = vpop.xlane.xlu0 %4307
    %v4309 = vsel %vm107, %v4297, 0.0
    %4310 = vadd.xlane.f32.xlu0 %v4309
    %v4311 = vpop.xlane.xlu0 %4310
    %v4312 = vsel %vm107, %v4298, 0.0
    %4313 = vadd.xlane.f32.xlu0 %v4312
    %v4314 = vpop.xlane.xlu0 %4313
    %v4315 = vmul.f32 %v4305, %v2002
    %v4316 = vmul.f32 %v4308, %v2002
    %v4317 = vmul.f32 %v4311, %v2002
    %v4318 = vmul.f32 %v4314, %v2002
    %v4319 = vsub.f32 %v4295, %v4315
    %v4320 = vsub.f32 %v4296, %v4316
    %v4321 = vsub.f32 %v4297, %v4317
    %v4322 = vsub.f32 %v4298, %v4318
    %v4323 = vmul.f32 %v4319, %v4319
    %v4324 = vmul.f32 %v4320, %v4320
    %v4325 = vmul.f32 %v4321, %v4321
    %v4326 = vmul.f32 %v4322, %v4322
    %v4327 = vsel %vm107, %v4323, 0.0
    %4328 = vadd.xlane.f32.xlu0 %v4327
    %v4329 = vpop.xlane.xlu0 %4328
    %v4330 = vsel %vm107, %v4324, 0.0
    %4331 = vadd.xlane.f32.xlu0 %v4330
    %v4332 = vpop.xlane.xlu0 %4331
    %v4333 = vsel %vm107, %v4325, 0.0
    %4334 = vadd.xlane.f32.xlu0 %v4333
    %v4335 = vpop.xlane.xlu0 %4334
    %v4336 = vsel %vm107, %v4326, 0.0
    %4337 = vadd.xlane.f32.xlu0 %v4336
    %v4338 = vpop.xlane.xlu0 %4337
    %v4339 = vmul.f32 %v4329, %v2002
    %v4340 = vmul.f32 %v4332, %v2002
    %v4341 = vmul.f32 %v4335, %v2002
    %v4342 = vmul.f32 %v4338, %v2002
    %v4343 = vadd.f32 %v4339, 1e-05
    %v4344 = vadd.f32 %v4340, 1e-05
    %v4345 = vadd.f32 %v4341, 1e-05
    %v4346 = vadd.f32 %v4342, 1e-05
    %v4347 = vrsqrt.pop %v4343
    %v4348 = vrsqrt.pop %v4344
    %v4349 = vrsqrt.pop %v4345
    %v4350 = vrsqrt.pop %v4346
    %v4351 = vmul.f32 %v4319, %v4347
    %v4352 = vmul.f32 %v4320, %v4348
    %v4353 = vmul.f32 %v4321, %v4349
    %v4354 = vmul.f32 %v4322, %v4350
    %v4356 = vlaneseq
    %v4357 = vshrl.u32 %v4356, 7
    %v4358 = vsub.s32 0, %v4357
    %v4359 = vrot.slane %v4300, %v4358
    %v4361 = vmul.f32 %v4351, %v4359
    %v4362 = vmul.f32 %v4352, %v4359
    %v4363 = vmul.f32 %v4353, %v4359
    %v4364 = vmul.f32 %v4354, %v4359
    %v4366 = vlaneseq
    %v4367 = vshrl.u32 %v4366, 7
    %v4368 = vsub.s32 0, %v4367
    %v4369 = vrot.slane %v4302, %v4368
    %v4371 = vadd.f32 %v4361, %v4369
    %v4372 = vadd.f32 %v4362, %v4369
    %v4373 = vadd.f32 %v4363, %v4369
    %v4374 = vadd.f32 %v4364, %v4369
    %s4375 = scalar_lea.vmem %s9, 128
    %v4376 = vld [vmem:[%s4375] sm:$0xff]
    %v4377 = vld [vmem:[%s4375 + $0x8] sm:$0xff]
    %v4378 = vld [vmem:[%s4375 + $0x10] sm:$0xff]
    %v4379 = vld [vmem:[%s4375 + $0x18] sm:$0xff]
    %v4380 = vld [vmem:[%s4375 + $0x20] sm:$0xff]
    %v4381 = vld [vmem:[%s4375 + $0x28] sm:$0xff]
    %v4382 = vld [vmem:[%s4375 + $0x30] sm:$0xff]
    %v4383 = vld [vmem:[%s4375 + $0x38] sm:$0xff]
    %v4384 = vld [vmem:[%s4375 + $0x40] sm:$0xff]
    %v4385 = vld [vmem:[%s4375 + $0x48] sm:$0xff]
    %v4386 = vld [vmem:[%s4375 + $0x50] sm:$0xff]
    %v4387 = vld [vmem:[%s4375 + $0x58] sm:$0xff]
    %v4388 = vld [vmem:[%s4375 + $0x60] sm:$0xff]
    %v4389 = vld [vmem:[%s4375 + $0x68] sm:$0xff]
    %v4390 = vld [vmem:[%s4375 + $0x70] sm:$0xff]
    %v4391 = vld [vmem:[%s4375 + $0x78] sm:$0xff]
    %s4392 = scalar_lea.vmem %s10, 2
    %v4393 = vld [vmem:[%s4392] sm:$0x3]
    %v4395 = vlaneseq
    %v4396 = vshrl.u32 %v4395, 7
    %v4397 = vsub.s32 0, %v4396
    %v4398 = vrot.slane %v4393, %v4397
    %v4399 = vlaneseq
    %v4400 = vshrl.u32 %v4399, 7
    %v4401 = vsub.s32 1, %v4400
    %v4402 = vrot.slane %v4393, %v4401
    %v4406 = vsel %vm107, %v4371, 0
    %v4409 = vsel %vm107, %v4372, 0
    %v4412 = vsel %vm107, %v4373, 0
    %v4415 = vsel %vm107, %v4374, 0
    %4417 = vmatprep.subr.mxu0 %v4377
    %4418 = vmatpush1.msra.mxu0 %v4376
    %4419 = vmatprep.subr.mxu0 %v4379
    %4420 = vmatpush1.msra.mxu0 %v4378
    %4421 = vmatprep.subr.mxu0 %v4381
    %4422 = vmatpush1.msra.mxu0 %v4380
    %4423 = vmatprep.subr.mxu0 %v4383
    %4424 = vmatpush1.msra.mxu0 %v4382
    %4425 = vmatprep.subr.mxu0 %v4385
    %4426 = vmatpush1.msra.mxu0 %v4384
    %4427 = vmatprep.subr.mxu0 %v4387
    %4428 = vmatpush1.msra.mxu0 %v4386
    %4429 = vmatprep.subr.mxu0 %v4389
    %4430 = vmatpush1.msra.mxu0 %v4388
    %4431 = vmatprep.subr.mxu0 %v4391
    %4432 = vmatpush1.msra.mxu0 %v4390
    %4433 = vmatprep.subr.mxu0 0.0
    %4434 = vmatpush1.msra.mxu0 0.0
    %4435 = vmatprep.subr.mxu0 0.0
    %4436 = vmatpush1.msra.mxu0 0.0
    %4437 = vmatprep.subr.mxu0 0.0
    %4438 = vmatpush1.msra.mxu0 0.0
    %4439 = vmatprep.subr.mxu0 0.0
    %4440 = vmatpush1.msra.mxu0 0.0
    %4441 = vmatprep.subr.mxu0 0.0
    %4442 = vmatpush1.msra.mxu0 0.0
    %4443 = vmatprep.subr.mxu0 0.0
    %4444 = vmatpush1.msra.mxu0 0.0
    %4445 = vmatprep.subr.mxu0 0.0
    %4446 = vmatpush1.msra.mxu0 0.0
    %4447 = vmatprep.subr.mxu0 0.0
    %4448 = vmatpush1.msra.mxu0 0.0
    %4449 = vmatprep.subr.mxu0 0.0
    %4450 = vmatpush1.msra.mxu0 0.0
    %4451 = vmatprep.subr.mxu0 0.0
    %4452 = vmatpush1.msra.mxu0 0.0
    %4453 = vmatprep.subr.mxu0 0.0
    %4454 = vmatpush1.msra.mxu0 0.0
    %4455 = vmatprep.subr.mxu0 0.0
    %4456 = vmatpush1.msra.mxu0 0.0
    %4457 = vmatprep.subr.mxu0 0.0
    %4458 = vmatpush1.msra.mxu0 0.0
    %4459 = vmatprep.subr.mxu0 0.0
    %4460 = vmatpush1.msra.mxu0 0.0
    %4461 = vmatprep.subr.mxu0 0.0
    %4462 = vmatpush1.msra.mxu0 0.0
    %4463 = vmatprep.subr.mxu0 0.0
    %4464 = vmatpush1.msra.mxu0 0.0
    %4465 = vmatprep.subr.mxu0 0.0
    %4466 = vmatpush1.msra.mxu0 0.0
    %4467 = vmatprep.subr.mxu0 0.0
    %4468 = vmatpush1.msra.mxu0 0.0
    %4469 = vmatprep.subr.mxu0 0.0
    %4470 = vmatpush1.msra.mxu0 0.0
    %4471 = vmatprep.subr.mxu0 0.0
    %4472 = vmatpush1.msra.mxu0 0.0
    %4473 = vmatprep.subr.mxu0 0.0
    %4474 = vmatpush1.msra.mxu0 0.0
    %4475 = vmatprep.subr.mxu0 0.0
    %4476 = vmatpush1.msra.mxu0 0.0
    %4477 = vmatprep.subr.mxu0 0.0
    %4478 = vmatpush1.msra.mxu0 0.0
    %4479 = vmatprep.subr.mxu0 0.0
    %4480 = vmatpush1.msra.mxu0 0.0
    %4481 = vmatprep.mubr.f32.mxu0 0.0
    %4482 = vmatmul.mubr.f32.gmra.mrb[0].mxu0 %v4406
    %v4483 = vpop.f32.mrb[0].mxu0
    %v4484 = vadd.f32 %v4398, %v4483
    %v4485 = vpop.f32.mrb[0].mxu0
    %v4486 = vadd.f32 %v4402, %v4485
    %4487 = vmatprep.mubr.f32.mxu0 0.0
    %4488 = vmatmul.mubr.f32.gmra.mrb[0].mxu0 %v4409
    %v4489 = vpop.f32.mrb[0].mxu0
    %v4490 = vadd.f32 %v4398, %v4489
    %v4491 = vpop.f32.mrb[0].mxu0
    %v4492 = vadd.f32 %v4402, %v4491
    %4493 = vmatprep.mubr.f32.mxu0 0.0
    %4494 = vmatmul.mubr.f32.gmra.mrb[0].mxu0 %v4412
    %v4495 = vpop.f32.mrb[0].mxu0
    %v4496 = vadd.f32 %v4398, %v4495
    %v4497 = vpop.f32.mrb[0].mxu0
    %v4498 = vadd.f32 %v4402, %v4497
    %4499 = vmatprep.mubr.f32.mxu0 0.0
    %4500 = vmatmul.mubr.f32.gmra.mrb[0].mxu0 %v4415
    %v4501 = vpop.f32.mrb[0].mxu0
    %v4502 = vadd.f32 %v4398, %v4501
    %v4503 = vpop.f32.mrb[0].mxu0
    %v4504 = vadd.f32 %v4402, %v4503
    %4505 = vdwg.mxu0
    %v4506 = vmax.f32 %v4484, 0.0
    %v4507 = vmax.f32 %v4486, 0.0
    %v4508 = vmax.f32 %v4490, 0.0
    %v4509 = vmax.f32 %v4492, 0.0
    %v4510 = vmax.f32 %v4496, 0.0
    %v4511 = vmax.f32 %v4498, 0.0
    %v4512 = vmax.f32 %v4502, 0.0
    %v4513 = vmax.f32 %v4504, 0.0
    %s4514 = scalar_lea.vmem %s11, 256
    %v4515 = vld [vmem:[%s4514] sm:$0xff]
    %v4516 = vld [vmem:[%s4514 + $0x8] sm:$0xff]
    %v4517 = vld [vmem:[%s4514 + $0x10] sm:$0xff]
    %v4518 = vld [vmem:[%s4514 + $0x18] sm:$0xff]
    %v4519 = vld [vmem:[%s4514 + $0x20] sm:$0xff]
    %v4520 = vld [vmem:[%s4514 + $0x28] sm:$0xff]
    %v4521 = vld [vmem:[%s4514 + $0x30] sm:$0xff]
    %v4522 = vld [vmem:[%s4514 + $0x38] sm:$0xff]
    %v4523 = vld [vmem:[%s4514 + $0x40] sm:$0xff]
    %v4524 = vld [vmem:[%s4514 + $0x48] sm:$0xff]
    %v4525 = vld [vmem:[%s4514 + $0x50] sm:$0xff]
    %v4526 = vld [vmem:[%s4514 + $0x58] sm:$0xff]
    %v4527 = vld [vmem:[%s4514 + $0x60] sm:$0xff]
    %v4528 = vld [vmem:[%s4514 + $0x68] sm:$0xff]
    %v4529 = vld [vmem:[%s4514 + $0x70] sm:$0xff]
    %v4530 = vld [vmem:[%s4514 + $0x78] sm:$0xff]
    %v4531 = vld [vmem:[%s4514 + $0x80] sm:$0xff]
    %v4532 = vld [vmem:[%s4514 + $0x88] sm:$0xff]
    %v4533 = vld [vmem:[%s4514 + $0x90] sm:$0xff]
    %v4534 = vld [vmem:[%s4514 + $0x98] sm:$0xff]
    %v4535 = vld [vmem:[%s4514 + $0xa0] sm:$0xff]
    %v4536 = vld [vmem:[%s4514 + $0xa8] sm:$0xff]
    %v4537 = vld [vmem:[%s4514 + $0xb0] sm:$0xff]
    %v4538 = vld [vmem:[%s4514 + $0xb8] sm:$0xff]
    %v4539 = vld [vmem:[%s4514 + $0xc0] sm:$0xff]
    %v4540 = vld [vmem:[%s4514 + $0xc8] sm:$0xff]
    %v4541 = vld [vmem:[%s4514 + $0xd0] sm:$0xff]
    %v4542 = vld [vmem:[%s4514 + $0xd8] sm:$0xff]
    %v4543 = vld [vmem:[%s4514 + $0xe0] sm:$0xff]
    %v4544 = vld [vmem:[%s4514 + $0xe8] sm:$0xff]
    %v4545 = vld [vmem:[%s4514 + $0xf0] sm:$0xff]
    %v4546 = vld [vmem:[%s4514 + $0xf8] sm:$0xff]
    %s4547 = scalar_lea.vmem %s12, 1
    %v4548 = vld [vmem:[%s4547] sm:$0x1]
    %v4550 = vlaneseq
    %v4551 = vshrl.u32 %v4550, 7
    %v4552 = vsub.s32 0, %v4551
    %v4553 = vrot.slane %v4548, %v4552
    %4555 = vmatprep.subr.mxu0 0.0
    %4556 = vmatpush1.msra.mxu0 %v4515
    %4557 = vmatprep.subr.mxu0 0.0
    %4558 = vmatpush1.msra.mxu0 %v4516
    %4559 = vmatprep.subr.mxu0 0.0
    %4560 = vmatpush1.msra.mxu0 %v4517
    %4561 = vmatprep.subr.mxu0 0.0
    %4562 = vmatpush1.msra.mxu0 %v4518
    %4563 = vmatprep.subr.mxu0 0.0
    %4564 = vmatpush1.msra.mxu0 %v4519
    %4565 = vmatprep.subr.mxu0 0.0
    %4566 = vmatpush1.msra.mxu0 %v4520
    %4567 = vmatprep.subr.mxu0 0.0
    %4568 = vmatpush1.msra.mxu0 %v4521
    %4569 = vmatprep.subr.mxu0 0.0
    %4570 = vmatpush1.msra.mxu0 %v4522
    %4571 = vmatprep.subr.mxu0 0.0
    %4572 = vmatpush1.msra.mxu0 %v4523
    %4573 = vmatprep.subr.mxu0 0.0
    %4574 = vmatpush1.msra.mxu0 %v4524
    %4575 = vmatprep.subr.mxu0 0.0
    %4576 = vmatpush1.msra.mxu0 %v4525
    %4577 = vmatprep.subr.mxu0 0.0
    %4578 = vmatpush1.msra.mxu0 %v4526
    %4579 = vmatprep.subr.mxu0 0.0
    %4580 = vmatpush1.msra.mxu0 %v4527
    %4581 = vmatprep.subr.mxu0 0.0
    %4582 = vmatpush1.msra.mxu0 %v4528
    %4583 = vmatprep.subr.mxu0 0.0
    %4584 = vmatpush1.msra.mxu0 %v4529
    %4585 = vmatprep.subr.mxu0 0.0
    %4586 = vmatpush1.msra.mxu0 %v4530
    %4587 = vmatprep.subr.mxu0 0.0
    %4588 = vmatpush1.msra.mxu0 %v4531
    %4589 = vmatprep.subr.mxu0 0.0
    %4590 = vmatpush1.msra.mxu0 %v4532
    %4591 = vmatprep.subr.mxu0 0.0
    %4592 = vmatpush1.msra.mxu0 %v4533
    %4593 = vmatprep.subr.mxu0 0.0
    %4594 = vmatpush1.msra.mxu0 %v4534
    %4595 = vmatprep.subr.mxu0 0.0
    %4596 = vmatpush1.msra.mxu0 %v4535
    %4597 = vmatprep.subr.mxu0 0.0
    %4598 = vmatpush1.msra.mxu0 %v4536
    %4599 = vmatprep.subr.mxu0 0.0
    %4600 = vmatpush1.msra.mxu0 %v4537
    %4601 = vmatprep.subr.mxu0 0.0
    %4602 = vmatpush1.msra.mxu0 %v4538
    %4603 = vmatprep.subr.mxu0 0.0
    %4604 = vmatpush1.msra.mxu0 %v4539
    %4605 = vmatprep.subr.mxu0 0.0
    %4606 = vmatpush1.msra.mxu0 %v4540
    %4607 = vmatprep.subr.mxu0 0.0
    %4608 = vmatpush1.msra.mxu0 %v4541
    %4609 = vmatprep.subr.mxu0 0.0
    %4610 = vmatpush1.msra.mxu0 %v4542
    %4611 = vmatprep.subr.mxu0 0.0
    %4612 = vmatpush1.msra.mxu0 %v4543
    %4613 = vmatprep.subr.mxu0 0.0
    %4614 = vmatpush1.msra.mxu0 %v4544
    %4615 = vmatprep.subr.mxu0 0.0
    %4616 = vmatpush1.msra.mxu0 %v4545
    %4617 = vmatprep.subr.mxu0 0.0
    %4618 = vmatpush1.msra.mxu0 %v4546
    %4619 = vmatprep.mubr.f32.mxu0 %v4507
    %4620 = vmatmul.mubr.f32.gmra.mrb[0].mxu0 %v4506
    %v4621 = vpop.f32.mrb[0].mxu0
    %v4622 = vadd.f32 %v4553, %v4621
    %v4623 = vpop.f32.mrb[0].mxu0
    %4624 = vmatprep.mubr.f32.mxu0 %v4509
    %4625 = vmatmul.mubr.f32.gmra.mrb[0].mxu0 %v4508
    %v4626 = vpop.f32.mrb[0].mxu0
    %v4627 = vadd.f32 %v4553, %v4626
    %v4628 = vpop.f32.mrb[0].mxu0
    %4629 = vmatprep.mubr.f32.mxu0 %v4511
    %4630 = vmatmul.mubr.f32.gmra.mrb[0].mxu0 %v4510
    %v4631 = vpop.f32.mrb[0].mxu0
    %v4632 = vadd.f32 %v4553, %v4631
    %v4633 = vpop.f32.mrb[0].mxu0
    %4634 = vmatprep.mubr.f32.mxu0 %v4513
    %4635 = vmatmul.mubr.f32.gmra.mrb[0].mxu0 %v4512
    %v4636 = vpop.f32.mrb[0].mxu0
    %v4637 = vadd.f32 %v4553, %v4636
    %v4638 = vpop.f32.mrb[0].mxu0
    %4639 = vdwg.mxu0
    %v4640 = vadd.f32 %v4371, %v4622
    %v4641 = vadd.f32 %v4372, %v4627
    %v4642 = vadd.f32 %v4373, %v4632
    %v4643 = vadd.f32 %v4374, %v4637
    %s4644 = scalar_lea.vmem %s13, 1
    %v4645 = vld [vmem:[%s4644] sm:$0x1]
    %s4646 = scalar_lea.vmem %s14, 1
    %v4647 = vld [vmem:[%s4646] sm:$0x1]
    %v4648 = vsel %vm107, %v4640, 0.0
    %4649 = vadd.xlane.f32.xlu0 %v4648
    %v4650 = vpop.xlane.xlu0 %4649
    %v4651 = vsel %vm107, %v4641, 0.0
    %4652 = vadd.xlane.f32.xlu0 %v4651
    %v4653 = vpop.xlane.xlu0 %4652
    %v4654 = vsel %vm107, %v4642, 0.0
    %4655 = vadd.xlane.f32.xlu0 %v4654
    %v4656 = vpop.xlane.xlu0 %4655
    %v4657 = vsel %vm107, %v4643, 0.0
    %4658 = vadd.xlane.f32.xlu0 %v4657
    %v4659 = vpop.xlane.xlu0 %4658
    %v4660 = vmul.f32 %v4650, %v2002
    %v4661 = vmul.f32 %v4653, %v2002
    %v4662 = vmul.f32 %v4656, %v2002
    %v4663 = vmul.f32 %v4659, %v2002
    %v4664 = vsub.f32 %v4640, %v4660
    %v4665 = vsub.f32 %v4641, %v4661
    %v4666 = vsub.f32 %v4642, %v4662
    %v4667 = vsub.f32 %v4643, %v4663
    %v4668 = vmul.f32 %v4664, %v4664
    %v4669 = vmul.f32 %v4665, %v4665
    %v4670 = vmul.f32 %v4666, %v4666
    %v4671 = vmul.f32 %v4667, %v4667
    %v4672 = vsel %vm107, %v4668, 0.0
    %4673 = vadd.xlane.f32.xlu0 %v4672
    %v4674 = vpop.xlane.xlu0 %4673
    %v4675 = vsel %vm107, %v4669, 0.0
    %4676 = vadd.xlane.f32.xlu0 %v4675
    %v4677 = vpop.xlane.xlu0 %4676
    %v4678 = vsel %vm107, %v4670, 0.0
    %4679 = vadd.xlane.f32.xlu0 %v4678
    %v4680 = vpop.xlane.xlu0 %4679
    %v4681 = vsel %vm107, %v4671, 0.0
    %4682 = vadd.xlane.f32.xlu0 %v4681
    %v4683 = vpop.xlane.xlu0 %4682
    %v4684 = vmul.f32 %v4674, %v2002
    %v4685 = vmul.f32 %v4677, %v2002
    %v4686 = vmul.f32 %v4680, %v2002
    %v4687 = vmul.f32 %v4683, %v2002
    %v4688 = vadd.f32 %v4684, 1e-05
    %v4689 = vadd.f32 %v4685, 1e-05
    %v4690 = vadd.f32 %v4686, 1e-05
    %v4691 = vadd.f32 %v4687, 1e-05
    %v4692 = vrsqrt.pop %v4688
    %v4693 = vrsqrt.pop %v4689
    %v4694 = vrsqrt.pop %v4690
    %v4695 = vrsqrt.pop %v4691
    %v4696 = vmul.f32 %v4664, %v4692
    %v4697 = vmul.f32 %v4665, %v4693
    %v4698 = vmul.f32 %v4666, %v4694
    %v4699 = vmul.f32 %v4667, %v4695
    %v4701 = vlaneseq
    %v4702 = vshrl.u32 %v4701, 7
    %v4703 = vsub.s32 0, %v4702
    %v4704 = vrot.slane %v4645, %v4703
    %v4706 = vmul.f32 %v4696, %v4704
    %v4707 = vmul.f32 %v4697, %v4704
    %v4708 = vmul.f32 %v4698, %v4704
    %v4709 = vmul.f32 %v4699, %v4704
    %v4711 = vlaneseq
    %v4712 = vshrl.u32 %v4711, 7
    %v4713 = vsub.s32 0, %v4712
    %v4714 = vrot.slane %v4647, %v4713
    %v4716 = vadd.f32 %v4706, %v4714
    %v4717 = vadd.f32 %v4707, %v4714
    %v4718 = vadd.f32 %v4708, %v4714
    %v4719 = vadd.f32 %v4709, %v4714
    %v4720 = vld [vmem:[%s15] sm:$0x1]
    %v4721 = vld [vmem:[%s16] sm:$0x1]
    %v4722 = vsel %vm107, %v4716, 0.0
    %4723 = vadd.xlane.f32.xlu0 %v4722
    %v4724 = vpop.xlane.xlu0 %4723
    %v4725 = vsel %vm107, %v4717, 0.0
    %4726 = vadd.xlane.f32.xlu0 %v4725
    %v4727 = vpop.xlane.xlu0 %4726
    %v4728 = vsel %vm107, %v4718, 0.0
    %4729 = vadd.xlane.f32.xlu0 %v4728
    %v4730 = vpop.xlane.xlu0 %4729
    %v4731 = vsel %vm107, %v4719, 0.0
    %4732 = vadd.xlane.f32.xlu0 %v4731
    %v4733 = vpop.xlane.xlu0 %4732
    %v4734 = vmul.f32 %v4724, %v2002
    %v4735 = vmul.f32 %v4727, %v2002
    %v4736 = vmul.f32 %v4730, %v2002
    %v4737 = vmul.f32 %v4733, %v2002
    %v4738 = vsub.f32 %v4716, %v4734
    %v4739 = vsub.f32 %v4717, %v4735
    %v4740 = vsub.f32 %v4718, %v4736
    %v4741 = vsub.f32 %v4719, %v4737
    %v4742 = vmul.f32 %v4738, %v4738
    %v4743 = vmul.f32 %v4739, %v4739
    %v4744 = vmul.f32 %v4740, %v4740
    %v4745 = vmul.f32 %v4741, %v4741
    %v4746 = vsel %vm107, %v4742, 0.0
    %4747 = vadd.xlane.f32.xlu0 %v4746
    %v4748 = vpop.xlane.xlu0 %4747
    %v4749 = vsel %vm107, %v4743, 0.0
    %4750 = vadd.xlane.f32.xlu0 %v4749
    %v4751 = vpop.xlane.xlu0 %4750
    %v4752 = vsel %vm107, %v4744, 0.0
    %4753 = vadd.xlane.f32.xlu0 %v4752
    %v4754 = vpop.xlane.xlu0 %4753
    %v4755 = vsel %vm107, %v4745, 0.0
    %4756 = vadd.xlane.f32.xlu0 %v4755
    %v4757 = vpop.xlane.xlu0 %4756
    %v4758 = vmul.f32 %v4748, %v2002
    %v4759 = vmul.f32 %v4751, %v2002
    %v4760 = vmul.f32 %v4754, %v2002
    %v4761 = vmul.f32 %v4757, %v2002
    %v4762 = vadd.f32 %v4758, 1e-05
    %v4763 = vadd.f32 %v4759, 1e-05
    %v4764 = vadd.f32 %v4760, 1e-05
    %v4765 = vadd.f32 %v4761, 1e-05
    %v4766 = vrsqrt.pop %v4762
    %v4767 = vrsqrt.pop %v4763
    %v4768 = vrsqrt.pop %v4764
    %v4769 = vrsqrt.pop %v4765
    %v4770 = vmul.f32 %v4738, %v4766
    %v4771 = vmul.f32 %v4739, %v4767
    %v4772 = vmul.f32 %v4740, %v4768
    %v4773 = vmul.f32 %v4741, %v4769
    %v4775 = vlaneseq
    %v4776 = vshrl.u32 %v4775, 7
    %v4777 = vsub.s32 0, %v4776
    %v4778 = vrot.slane %v4720, %v4777
    %v4780 = vmul.f32 %v4770, %v4778
    %v4781 = vmul.f32 %v4771, %v4778
    %v4782 = vmul.f32 %v4772, %v4778
    %v4783 = vmul.f32 %v4773, %v4778
    %v4785 = vlaneseq
    %v4786 = vshrl.u32 %v4785, 7
    %v4787 = vsub.s32 0, %v4786
    %v4788 = vrot.slane %v4721, %v4787
    %v4790 = vadd.f32 %v4780, %v4788
    %v4791 = vadd.f32 %v4781, %v4788
    %v4792 = vadd.f32 %v4782, %v4788
    %v4793 = vadd.f32 %v4783, %v4788
    %v4794 = vld [vmem:[%s17] sm:$0xff]
    %v4795 = vld [vmem:[%s17 + $0x8] sm:$0xff]
    %v4796 = vld [vmem:[%s17 + $0x10] sm:$0xff]
    %v4797 = vld [vmem:[%s17 + $0x18] sm:$0xff]
    %v4798 = vld [vmem:[%s17 + $0x20] sm:$0xff]
    %v4799 = vld [vmem:[%s17 + $0x28] sm:$0xff]
    %v4800 = vld [vmem:[%s17 + $0x30] sm:$0xff]
    %v4801 = vld [vmem:[%s17 + $0x38] sm:$0xff]
    %v4802 = vld [vmem:[%s18] sm:$0x1]
    %v4804 = vlaneseq
    %v4805 = vshrl.u32 %v4804, 7
    %v4806 = vsub.s32 0, %v4805
    %v4807 = vrot.slane %v4802, %v4806
    %v4810 = vsel %vm107, %v4790, 0
    %v4813 = vsel %vm107, %v4791, 0
    %v4816 = vsel %vm107, %v4792, 0
    %v4819 = vsel %vm107, %v4793, 0
    %4821 = vmatprep.subr.mxu0 0.0
    %4822 = vmatpush1.msra.mxu0 %v4794
    %4823 = vmatprep.subr.mxu0 0.0
    %4824 = vmatpush1.msra.mxu0 %v4795
    %4825 = vmatprep.subr.mxu0 0.0
    %4826 = vmatpush1.msra.mxu0 %v4796
    %4827 = vmatprep.subr.mxu0 0.0
    %4828 = vmatpush1.msra.mxu0 %v4797
    %4829 = vmatprep.subr.mxu0 0.0
    %4830 = vmatpush1.msra.mxu0 %v4798
    %4831 = vmatprep.subr.mxu0 0.0
    %4832 = vmatpush1.msra.mxu0 %v4799
    %4833 = vmatprep.subr.mxu0 0.0
    %4834 = vmatpush1.msra.mxu0 %v4800
    %4835 = vmatprep.subr.mxu0 0.0
    %4836 = vmatpush1.msra.mxu0 %v4801
    %4837 = vmatprep.subr.mxu0 0.0
    %4838 = vmatpush1.msra.mxu0 0.0
    %4839 = vmatprep.subr.mxu0 0.0
    %4840 = vmatpush1.msra.mxu0 0.0
    %4841 = vmatprep.subr.mxu0 0.0
    %4842 = vmatpush1.msra.mxu0 0.0
    %4843 = vmatprep.subr.mxu0 0.0
    %4844 = vmatpush1.msra.mxu0 0.0
    %4845 = vmatprep.subr.mxu0 0.0
    %4846 = vmatpush1.msra.mxu0 0.0
    %4847 = vmatprep.subr.mxu0 0.0
    %4848 = vmatpush1.msra.mxu0 0.0
    %4849 = vmatprep.subr.mxu0 0.0
    %4850 = vmatpush1.msra.mxu0 0.0
    %4851 = vmatprep.subr.mxu0 0.0
    %4852 = vmatpush1.msra.mxu0 0.0
    %4853 = vmatprep.subr.mxu0 0.0
    %4854 = vmatpush1.msra.mxu0 0.0
    %4855 = vmatprep.subr.mxu0 0.0
    %4856 = vmatpush1.msra.mxu0 0.0
    %4857 = vmatprep.subr.mxu0 0.0
    %4858 = vmatpush1.msra.mxu0 0.0
    %4859 = vmatprep.subr.mxu0 0.0
    %4860 = vmatpush1.msra.mxu0 0.0
    %4861 = vmatprep.subr.mxu0 0.0
    %4862 = vmatpush1.msra.mxu0 0.0
    %4863 = vmatprep.subr.mxu0 0.0
    %4864 = vmatpush1.msra.mxu0 0.0
    %4865 = vmatprep.subr.mxu0 0.0
    %4866 = vmatpush1.msra.mxu0 0.0
    %4867 = vmatprep.subr.mxu0 0.0
    %4868 = vmatpush1.msra.mxu0 0.0
    %4869 = vmatprep.subr.mxu0 0.0
    %4870 = vmatpush1.msra.mxu0 0.0
    %4871 = vmatprep.subr.mxu0 0.0
    %4872 = vmatpush1.msra.mxu0 0.0
    %4873 = vmatprep.subr.mxu0 0.0
    %4874 = vmatpush1.msra.mxu0 0.0
    %4875 = vmatprep.subr.mxu0 0.0
    %4876 = vmatpush1.msra.mxu0 0.0
    %4877 = vmatprep.subr.mxu0 0.0
    %4878 = vmatpush1.msra.mxu0 0.0
    %4879 = vmatprep.subr.mxu0 0.0
    %4880 = vmatpush1.msra.mxu0 0.0
    %4881 = vmatprep.subr.mxu0 0.0
    %4882 = vmatpush1.msra.mxu0 0.0
    %4883 = vmatprep.subr.mxu0 0.0
    %4884 = vmatpush1.msra.mxu0 0.0
    %4885 = vmatprep.mubr.f32.mxu0 0.0
    %4886 = vmatmul.mubr.f32.gmra.mrb[0].mxu0 %v4810
    %v4887 = vpop.f32.mrb[0].mxu0
    %v4888 = vadd.f32 %v4807, %v4887
    %v4889 = vpop.f32.mrb[0].mxu0
    %4890 = vmatprep.mubr.f32.mxu0 0.0
    %4891 = vmatmul.mubr.f32.gmra.mrb[0].mxu0 %v4813
    %v4892 = vpop.f32.mrb[0].mxu0
    %v4893 = vadd.f32 %v4807, %v4892
    %v4894 = vpop.f32.mrb[0].mxu0
    %4895 = vmatprep.mubr.f32.mxu0 0.0
    %4896 = vmatmul.mubr.f32.gmra.mrb[0].mxu0 %v4816
    %v4897 = vpop.f32.mrb[0].mxu0
    %v4898 = vadd.f32 %v4807, %v4897
    %v4899 = vpop.f32.mrb[0].mxu0
    %4900 = vmatprep.mubr.f32.mxu0 0.0
    %4901 = vmatmul.mubr.f32.gmra.mrb[0].mxu0 %v4819
    %v4902 = vpop.f32.mrb[0].mxu0
    %v4903 = vadd.f32 %v4807, %v4902
    %v4904 = vpop.f32.mrb[0].mxu0
    %4905 = vdwg.mxu0
    %4906 = vst.msk [vmem:[#allocation2] sm:$0xff] %vm107, %v4888
    %4907 = vst.msk [vmem:[#allocation2 + $0x8] sm:$0xff] %vm107, %v4893
    %4908 = vst.msk [vmem:[#allocation2 + $0x10] sm:$0xff] %vm107, %v4898
    %4909 = vst.msk [vmem:[#allocation2 + $0x18] sm:$0xff] %vm107, %v4903
    // Predicated region
    $region78: #{tpu_custom_call.1} parent=1 // pred_check
      _
    $region79: #{tpu_custom_call.1} parent=1 // pred_check_branch
      %4911 = sbr.rel (0) target = $region81
    $region80: #{tpu_custom_call.1} parent=1 // pred_region
      %s4913 = ssub.s32 512, 512
      %4914 = vsyncadd [#allocation3], %s4913
      %s4915 = sshll.u32 [#allocation2], 4
      %s4916 = int_to_ptr.vmem [resolvable:$true] %s4915
      %4921 = dma.vmem_to_hbm [thread:$0]  %s4916, 512, %s19, [#allocation3], 128, 128, 8
    $region81: #{tpu_custom_call.1} parent=1 // pred_fallthru
      _
    // Predicated region
    $region82: #{tpu_custom_call.1} parent=1 // pred_check
      _
    $region83: #{tpu_custom_call.1} parent=1 // pred_check_branch
      %4923 = sbr.rel (0) target = $region85
    $region84: #{tpu_custom_call.1} parent=1 // pred_region
      %4924 = dma.done [#allocation3], 512
    $region85: #{tpu_custom_call.1} parent=1 // pred_fallthru
      _
    %4925 = vsyncpa [#allocation3], 1

</llo_original>
